<compile_context>
chip_gen: v7x
topology: tpu7x:2x2x1
jax: 0.10.0
libtpu: 0.0.40
codegen_flags: <defaults>
</compile_context>

<pallas_src>
import math
import numpy as np
import jax
import jax.numpy as jnp
from jax import lax
from jax.experimental import pallas as pl
from jax.experimental.pallas import tpu as pltpu

# ----------------------------- configuration -------------------------------
VOCAB_SIZE = 32
EMBED_DIM = 32                     # d_model
ORBIT_HIERARCHY = (4, 8)           # len == 2 -> 16 dims per orbit, 8 (x,y) pairs
NUM_CLASSES = 4
MAX_SEQ_LEN = 128
NUM_LAYERS = 4
NHEAD = 8
HEAD_DIM = EMBED_DIM // NHEAD      # 4
FFN_DIM = EMBED_DIM * 2            # 64
SIGMA = 0.2
LN_EPS = 1e-5

BATCH = 2
SEQ = 8


# ------------------------------ Pallas kernel ------------------------------
def transformer_classifier_kernel(
    x_ref,        # (BS, D)           whole batch, rows stacked
    wa_ref,       # (L, D, 4D)        [:, :, :3D] = Wqkv (Q pre-scaled), [:, :, 3D:] = Wo
    wf_ref,       # (L, D, 2F)        [:, :, :F] = W1 [in,out], [:, :, F:] = W2 [out,in]
    bias_ref,     # (L, 8, 4D)        rows: bqkv, bo, b1, b2, ln1w, ln1b, ln2w, ln2b
    const_ref,    # (BS+B, H*BS)      rows 0:BS   = additive attn bias (block-diag, head-tiled)
                  #                   rows BS:BS+B, cols 0:BS = mean-pool matrix (1/S blocks)
    kvmask_ref,   # (H*BS, D)         0/1: row h*BS+n "owns" lanes h*dh:(h+1)*dh
    cls_ref,      # (D + D//2 + 2, D) classifier slab: cw1 | cw2 | cb1 | cb2
    out_ref,      # (B, C)
):
    BS, D = x_ref.shape
    B, C = out_ref.shape
    L = wa_ref.shape[0]
    F = wf_ref.shape[2] // 2
    H = kvmask_ref.shape[0] // BS
    Dh = D // 2                     # classifier hidden width

    def layer_norm(v, w, b):
        # one-pass statistics: two independent lane reductions (E[x], E[x^2])
        mu = jnp.mean(v, axis=-1, keepdims=True)
        ms = jnp.mean(v * v, axis=-1, keepdims=True)
        var = jnp.maximum(ms - mu * mu, 0.0)
        return (v - mu) * lax.rsqrt(var + LN_EPS) * w + b

    attn_bias = const_ref[0:BS, :]            # (BS, H*BS), 0 / -1e30
    pool = const_ref[BS:BS + B, 0:BS]         # (B, BS)

    x = x_ref[...]                            # (BS, D)

    for l in range(L):                        # static unroll (4 layers)
        wa = wa_ref[l]                        # (D, 4D)
        wf = wf_ref[l]                        # (D, 2F)
        bb = bias_ref[l]                      # (8, 4D)
        kvm = kvmask_ref[...]                 # (H*BS, D)  (re-loaded per layer: short live range)

        wqkv = wa[:, 0:3 * D]
        wo = wa[:, 3 * D:4 * D]
        w1 = wf[:, 0:F]
        w2 = wf[:, F:2 * F]                   # torch [out,in] layout -> used via trans_b

        bqkv = bb[0:1, 0:3 * D]
        bo = bb[1:2, 0:D]
        b1 = bb[2:3, 0:F]
        b2 = bb[3:4, 0:D]
        ln1w = bb[4:5, 0:D]
        ln1b = bb[5:6, 0:D]
        ln2w = bb[6:7, 0:D]
        ln2b = bb[7:8, 0:D]

        # ---- fused QKV projection: one (BS,D)x(D,3D) MXU op (Q pre-scaled) ----
        qkv = jnp.dot(x, wqkv, preferred_element_type=jnp.float32) + bqkv     # (BS, 3D)
        q = qkv[:, 0:D]
        k = qkv[:, D:2 * D]
        v = qkv[:, 2 * D:3 * D]

        # ---- lane-dense multi-head attention: all H*BS key slots on the lane axis ----
        # block-diagonal key slab (H*BS, D): row h*BS+n holds key n restricted to head h dims
        k_bd = jnp.concatenate([k] * H, axis=0) * kvm
        # scores s[q, h*BS+n] = q_scaled[q, head-h dims] . k[n, head-h dims]   (one matmul)
        s = lax.dot_general(q, k_bd, (((1,), (1,)), ((), ())),
                            preferred_element_type=jnp.float32)               # (BS, H*BS)
        # un-normalized softmax; max-subtraction dropped (logits O(1), scale pre-folded;
        # masked entries sit at -1e30 and exp to exactly 0 in f32)
        p = jnp.exp(s + attn_bias)                                            # (BS, H*BS)
        # per-(query, head) denominators, already broadcast onto the head-dim lanes
        denom = jnp.dot(p, kvm, preferred_element_type=jnp.float32)           # (BS, D)

        # block-diagonal value slab and P@V -> head-concatenated context (one matmul)
        v_bd = jnp.concatenate([v] * H, axis=0) * kvm
        ctx = jnp.dot(p, v_bd, preferred_element_type=jnp.float32)            # (BS, D)
        ctx = ctx / denom                  # tiny (BS,D) divide instead of full-p divide

        # fused output projection over the head-concat context
        attn = jnp.dot(ctx, wo, preferred_element_type=jnp.float32) + bo
        x = layer_norm(x + attn, ln1w, ln1b)

        # ---- feed forward ----
        hdn = jnp.dot(x, w1, preferred_element_type=jnp.float32) + b1
        hdn = jnp.maximum(hdn, 0.0)
        ffn = lax.dot_general(hdn, w2, (((1,), (1,)), ((), ())),
                              preferred_element_type=jnp.float32) + b2
        x = layer_norm(x + ffn, ln2w, ln2b)

    # ---- per-example mean pooling (tiny matmul) + classifier head ----
    pooled = jnp.dot(pool, x, preferred_element_type=jnp.float32)             # (B, D)

    cw1 = cls_ref[0:D, 0:Dh]
    cw2 = cls_ref[D:D + Dh, 0:C]
    cb1 = cls_ref[D + Dh:D + Dh + 1, 0:Dh]
    cb2 = cls_ref[D + Dh + 1:D + Dh + 2, 0:C]

    hcls = jnp.maximum(jnp.dot(pooled, cw1, preferred_element_type=jnp.float32) + cb1, 0.0)
    out_ref[...] = jnp.dot(hcls, cw2, preferred_element_type=jnp.float32) + cb2


def run_transformer_classifier(x_emb, params):
    """x_emb: (B, S, D) float32 embeddings (already includes positional encoding)."""
    B, S, D = x_emb.shape
    BS = B * S
    H, dh = NHEAD, HEAD_DIM
    x2d = x_emb.reshape(BS, D).astype(jnp.float32)

    # shape-dependent constants, precomputed host-side (no in-kernel iota / int-div)
    ex = np.arange(BS) // S
    attn_bias = np.where(ex[:, None] == ex[None, :], 0.0, -1e30).astype(np.float32)  # (BS,BS)
    const_slab = np.zeros((BS + B, H * BS), np.float32)
    const_slab[:BS, :] = np.tile(attn_bias, (1, H))                                  # head-tiled
    const_slab[BS:, :BS] = (ex[None, :] == np.arange(B)[:, None]).astype(np.float32) / S
    kvmask = (np.arange(H * BS)[:, None] // BS
              == np.arange(D)[None, :] // dh).astype(np.float32)                     # (H*BS, D)

    ordered = [x2d, params["wa"], params["wf"], params["bias_slab"],
               jnp.asarray(const_slab), jnp.asarray(kvmask), params["cls_slab"]]

    def full_spec(arr):
        nd = arr.ndim
        return pl.BlockSpec(arr.shape, lambda i, _n=nd: (0,) * _n)

    # Single kernel invocation: the whole problem (~250 KB of operands) lives in VMEM,
    # so a per-batch grid would be pure pipeline overhead at this size.
    # TODO(synk): for large B (esp. v7x: 2 TensorCores / 64 MiB VMEM) put the batch on a
    # leading "parallel" grid axis instead of flattening it into block-diag attention.
    out = pl.pallas_call(
        transformer_classifier_kernel,
        out_shape=jax.ShapeDtypeStruct((B, NUM_CLASSES), jnp.float32),
        grid=(1,),
        in_specs=[full_spec(a) for a in ordered],
        out_specs=pl.BlockSpec((B, NUM_CLASSES), lambda i: (0, 0)),
        compiler_params=pltpu.CompilerParams(
            dimension_semantics=("arbitrary",)),
    )(*ordered)
    return out                                                        # (B, C)


# --------------------------- embedding (JAX glue) ---------------------------
def build_vocab_mapping(vocab_size, hierarchy):
    m = np.zeros((vocab_size, len(hierarchy)), dtype=np.int32)
    for vid in range(vocab_size):
        rem = vid
        idxs = []
        for Z in reversed(hierarchy):
            idxs.append(rem % Z)
            rem //= Z
        m[vid] = list(reversed(idxs))
    return jnp.asarray(m)


def multi_orbit_embedding(token_ids, vocab_map, orbit_params):
    """token_ids: (B, S) int32 -> (B, S, EMBED_DIM) float32."""
    multi_idx = vocab_map[token_ids]                                  # (B, S, n_orbits)
    embs = []
    for i, Z in enumerate(ORBIT_HIERARCHY):
        R, Cx, Cy = orbit_params[i]
        i_prime = (multi_idx[..., i] % Z).astype(jnp.float32)
        theta = (2.0 * np.pi * i_prime / Z
                 + SIGMA * jnp.sin(4.0 * np.pi * i_prime / Z))
        cos_t = jnp.cos(theta)[..., None]                             # (B, S, 1)
        sin_t = jnp.sin(theta)[..., None]
        xs = Cx + R * cos_t                                           # (B, S, n_pairs)
        ys = Cy + R * sin_t
        emb = jnp.stack([xs, ys], axis=-1)                            # (B, S, n_pairs, 2)
        emb = emb.reshape(*token_ids.shape, -1)                       # x0,y0,x1,y1,...
        embs.append(emb)
    return jnp.concatenate(embs, axis=-1)


# ------------------------------ parameter init ------------------------------
def init_params(key):
    D, F, C = EMBED_DIM, FFN_DIM, NUM_CLASSES
    L, H, dh = NUM_LAYERS, NHEAD, HEAD_DIM
    n_orbits = len(ORBIT_HIERARCHY)
    d_per_orbit = D // n_orbits
    n_pairs = d_per_orbit // 2

    keys = iter(jax.random.split(key, 128))
    nrm = lambda shape, s: s * jax.random.normal(next(keys), shape, jnp.float32)

    orbit_params = []
    for _ in ORBIT_HIERARCHY:
        R = jnp.ones((n_pairs,), jnp.float32) * 0.5
        Cx = nrm((n_pairs,), 0.1)
        Cy = nrm((n_pairs,), 0.1)
        orbit_params.append((R, Cx, Cy))

    pos_encoding = nrm((MAX_SEQ_LEN, D), 0.1)

    wqkv = nrm((L, 3 * D, D), 1.0 / math.sqrt(D))
    bqkv = nrm((L, 1, 3 * D), 0.02)
    wo   = nrm((L, D, D),     1.0 / math.sqrt(D))
    bo   = nrm((L, 1, D),     0.02)
    w1   = nrm((L, F, D),     1.0 / math.sqrt(D))
    b1   = nrm((L, 1, F),     0.02)
    w2   = nrm((L, D, F),     1.0 / math.sqrt(F))
    b2   = nrm((L, 1, D),     0.02)
    ln1w = jnp.ones((L, 1, D), jnp.float32)
    ln1b = jnp.zeros((L, 1, D), jnp.float32)
    ln2w = jnp.ones((L, 1, D), jnp.float32)
    ln2b = jnp.zeros((L, 1, D), jnp.float32)

    cw1 = nrm((D // 2, D), 1.0 / math.sqrt(D))
    cb1 = nrm((1, D // 2), 0.02)
    cw2 = nrm((C, D // 2), 1.0 / math.sqrt(D // 2))
    cb2 = nrm((1, C), 0.02)

    # [in, out] layouts for the reference / standard math.
    wqkv_t = jnp.transpose(wqkv, (0, 2, 1))                # (L, D, 3D)
    wo_t   = jnp.transpose(wo, (0, 2, 1))                  # (L, D, D)
    w1_t   = jnp.transpose(w1, (0, 2, 1))                  # (L, D, F)
    w2_t   = jnp.transpose(w2, (0, 2, 1))                  # (L, F, D)
    cw1_t  = jnp.transpose(cw1, (1, 0))                    # (D, D//2)
    cw2_t  = jnp.transpose(cw2, (1, 0))                    # (D//2, C)

    # ---- kernel-side lane-dense slabs (one-time weight transforms) ----
    scale = 1.0 / math.sqrt(dh)
    wqkv_scaled = jnp.concatenate([wqkv_t[:, :, :D] * scale, wqkv_t[:, :, D:]], axis=-1)
    wa = jnp.concatenate([wqkv_scaled, wo_t], axis=-1)     # (L, D, 4D)  = (4, 32, 128)
    wf = jnp.concatenate([w1_t, w2], axis=-1)              # (L, D, 2F)  = (4, 32, 128)

    bqkv_scaled = jnp.concatenate([bqkv[:, 0, :D] * scale, bqkv[:, 0, D:]], axis=-1)
    bias_slab = jnp.zeros((L, 8, 4 * D), jnp.float32)      # one lane-dense bias/LN slab
    bias_slab = bias_slab.at[:, 0, :3 * D].set(bqkv_scaled)
    bias_slab = bias_slab.at[:, 1, :D].set(bo[:, 0])
    bias_slab = bias_slab.at[:, 2, :F].set(b1[:, 0])
    bias_slab = bias_slab.at[:, 3, :D].set(b2[:, 0])
    bias_slab = bias_slab.at[:, 4, :D].set(ln1w[:, 0])
    bias_slab = bias_slab.at[:, 5, :D].set(ln1b[:, 0])
    bias_slab = bias_slab.at[:, 6, :D].set(ln2w[:, 0])
    bias_slab = bias_slab.at[:, 7, :D].set(ln2b[:, 0])

    cls_slab = jnp.zeros((D + D // 2 + 2, D), jnp.float32)
    cls_slab = cls_slab.at[0:D, 0:D // 2].set(cw1_t)
    cls_slab = cls_slab.at[D:D + D // 2, 0:C].set(cw2_t)
    cls_slab = cls_slab.at[D + D // 2, 0:D // 2].set(cb1[0])
    cls_slab = cls_slab.at[D + D // 2 + 1, 0:C].set(cb2[0])

    params = dict(
        orbit_params=orbit_params,
        pos_encoding=pos_encoding,
        # reference-layout weights
        wqkv_t=wqkv_t, bqkv=bqkv, wo_t=wo_t, bo=bo,
        w1_t=w1_t, b1=b1, w2_t=w2_t, b2=b2,
        ln1w=ln1w, ln1b=ln1b, ln2w=ln2w, ln2b=ln2b,
        cw1_t=cw1_t, cb1=cb1, cw2_t=cw2_t, cb2=cb2,
        # kernel-layout lane-dense slabs (scale folded into Q)
        wa=wa, wf=wf, bias_slab=bias_slab, cls_slab=cls_slab,
    )
    return params


# --------------------------- pure-JAX reference -----------------------------
def reference_forward(x_emb, p):
    def ln(v, w, b):
        mu = jnp.mean(v, axis=-1, keepdims=True)
        var = jnp.mean((v - mu) ** 2, axis=-1, keepdims=True)
        return (v - mu) * lax.rsqrt(var + LN_EPS) * w + b

    def one_example(x):                                   # x: (S, D)
        D = EMBED_DIM
        for l in range(NUM_LAYERS):
            qkv = x @ p["wqkv_t"][l] + p["bqkv"][l]
            q, k, v = qkv[:, :D], qkv[:, D:2 * D], qkv[:, 2 * D:]
            attn = jnp.zeros_like(x)
            for h in range(NHEAD):
                sl = slice(h * HEAD_DIM, (h + 1) * HEAD_DIM)
                s = (q[:, sl] @ k[:, sl].T) / math.sqrt(HEAD_DIM)
                pr = jax.nn.softmax(s, axis=-1)
                attn = attn + (pr @ v[:, sl]) @ p["wo_t"][l][sl, :]
            attn = attn + p["bo"][l]
            x = ln(x + attn, p["ln1w"][l], p["ln1b"][l])
            ffn = jnp.maximum(x @ p["w1_t"][l] + p["b1"][l], 0.0) @ p["w2_t"][l] + p["b2"][l]
            x = ln(x + ffn, p["ln2w"][l], p["ln2b"][l])
        pooled = jnp.mean(x, axis=0, keepdims=True)
        h = jnp.maximum(pooled @ p["cw1_t"] + p["cb1"], 0.0)
        return (h @ p["cw2_t"] + p["cb2"])[0]

    return jax.vmap(one_example)(x_emb)


# ----------------------------------- main -----------------------------------
def orbit_compressor_forward(input_ids, params, vocab_map):
    emb = multi_orbit_embedding(input_ids, vocab_map, params["orbit_params"])
    seq_len = input_ids.shape[1]
    emb = emb + params["pos_encoding"][:seq_len][None, :, :]
    return run_transformer_classifier(emb.astype(jnp.float32), params), emb


if __name__ == "__main__":
    key = jax.random.PRNGKey(0)
    k_param, k_ids = jax.random.split(key)

    params = init_params(k_param)
    vocab_map = build_vocab_mapping(VOCAB_SIZE, ORBIT_HIERARCHY)

    input_ids = jax.random.randint(k_ids, (BATCH, SEQ), 0, VOCAB_SIZE, dtype=jnp.int32)

    logits, emb = orbit_compressor_forward(input_ids, params, vocab_map)
    logits = jax.block_until_ready(logits)
    assert logits.shape == (BATCH, NUM_CLASSES)

    # sanity check against a pure-JAX reference of the same math (tight f32 tol)
    ref = jax.block_until_ready(reference_forward(emb.astype(jnp.float32), params))
    np.testing.assert_allclose(np.asarray(logits), np.asarray(ref), rtol=1e-4, atol=1e-4)

    print("KERNEL_OK")
</pallas_src>

<mosaic_0001>
module attributes {stable_mosaic.version = 11 : i64} {
  func.func @transformer_classifier_kernel(%arg0: i32, %arg1: memref<16x32xf32, #tpu.memory_space<vmem>>, %arg2: memref<4x32x128xf32, #tpu.memory_space<vmem>>, %arg3: memref<4x32x128xf32, #tpu.memory_space<vmem>>, %arg4: memref<4x8x128xf32, #tpu.memory_space<vmem>>, %arg5: memref<18x128xf32, #tpu.memory_space<vmem>>, %arg6: memref<128x32xf32, #tpu.memory_space<vmem>>, %arg7: memref<50x32xf32, #tpu.memory_space<vmem>>, %arg8: memref<2x4xf32, #tpu.memory_space<vmem>>) attributes {dimension_semantics = [#tpu.dimension_semantics<arbitrary>], iteration_bounds = array<i64: 1>, scalar_prefetch = 0 : i64, scratch_operands = 0 : i64, tpu.core_type = #tpu.core_type<tc>, window_params = [{pipeline_mode = #tpu.pipeline_mode<synchronous>, transform_indices = @transform_0, window_bounds = array<i64: 16, 32>}, {pipeline_mode = #tpu.pipeline_mode<synchronous>, transform_indices = @transform_1, window_bounds = array<i64: 4, 32, 128>}, {pipeline_mode = #tpu.pipeline_mode<synchronous>, transform_indices = @transform_2, window_bounds = array<i64: 4, 32, 128>}, {pipeline_mode = #tpu.pipeline_mode<synchronous>, transform_indices = @transform_3, window_bounds = array<i64: 4, 8, 128>}, {pipeline_mode = #tpu.pipeline_mode<synchronous>, transform_indices = @transform_4, window_bounds = array<i64: 18, 128>}, {pipeline_mode = #tpu.pipeline_mode<synchronous>, transform_indices = @transform_5, window_bounds = array<i64: 128, 32>}, {pipeline_mode = #tpu.pipeline_mode<synchronous>, transform_indices = @transform_6, window_bounds = array<i64: 50, 32>}, {pipeline_mode = #tpu.pipeline_mode<synchronous>, transform_indices = @transform_7, window_bounds = array<i64: 2, 4>}]} {
    %c0 = arith.constant 0 : index
    %c0_0 = arith.constant 0 : index
    %0 = vector.load %arg5[%c0, %c0_0] : memref<18x128xf32, #tpu.memory_space<vmem>>, vector<16x128xf32>
    %c16 = arith.constant 16 : index
    %c0_1 = arith.constant 0 : index
    %1 = vector.load %arg5[%c16, %c0_1] : memref<18x128xf32, #tpu.memory_space<vmem>>, vector<2x16xf32>
    %c0_2 = arith.constant 0 : index
    %c0_3 = arith.constant 0 : index
    %2 = vector.load %arg1[%c0_2, %c0_3] : memref<16x32xf32, #tpu.memory_space<vmem>>, vector<16x32xf32>
    %c0_4 = arith.constant 0 : index
    %c0_5 = arith.constant 0 : index
    %c0_6 = arith.constant 0 : index
    %3 = vector.load %arg2[%c0_4, %c0_5, %c0_6] : memref<4x32x128xf32, #tpu.memory_space<vmem>>, vector<1x32x128xf32>
    %4 = vector.shape_cast %3 : vector<1x32x128xf32> to vector<32x128xf32>
    %c0_7 = arith.constant 0 : index
    %c0_8 = arith.constant 0 : index
    %c0_9 = arith.constant 0 : index
    %5 = vector.load %arg3[%c0_7, %c0_8, %c0_9] : memref<4x32x128xf32, #tpu.memory_space<vmem>>, vector<1x32x128xf32>
    %6 = vector.shape_cast %5 : vector<1x32x128xf32> to vector<32x128xf32>
    %c0_10 = arith.constant 0 : index
    %c0_11 = arith.constant 0 : index
    %c0_12 = arith.constant 0 : index
    %7 = vector.load %arg4[%c0_10, %c0_11, %c0_12] : memref<4x8x128xf32, #tpu.memory_space<vmem>>, vector<1x8x128xf32>
    %8 = vector.shape_cast %7 : vector<1x8x128xf32> to vector<8x128xf32>
    %c0_13 = arith.constant 0 : index
    %c0_14 = arith.constant 0 : index
    %9 = vector.load %arg6[%c0_13, %c0_14] : memref<128x32xf32, #tpu.memory_space<vmem>>, vector<128x32xf32>
    %10 = vector.extract_strided_slice %4 {offsets = [0, 0], sizes = [32, 96], strides = [1, 1]} : vector<32x128xf32> to vector<32x96xf32>
    %11 = vector.extract_strided_slice %4 {offsets = [0, 96], sizes = [32, 32], strides = [1, 1]} : vector<32x128xf32> to vector<32x32xf32>
    %12 = vector.extract_strided_slice %6 {offsets = [0, 0], sizes = [32, 64], strides = [1, 1]} : vector<32x128xf32> to vector<32x64xf32>
    %13 = vector.extract_strided_slice %6 {offsets = [0, 64], sizes = [32, 64], strides = [1, 1]} : vector<32x128xf32> to vector<32x64xf32>
    %14 = vector.extract_strided_slice %8 {offsets = [0, 0], sizes = [1, 96], strides = [1, 1]} : vector<8x128xf32> to vector<1x96xf32>
    %15 = vector.extract_strided_slice %8 {offsets = [1, 0], sizes = [1, 32], strides = [1, 1]} : vector<8x128xf32> to vector<1x32xf32>
    %16 = vector.extract_strided_slice %8 {offsets = [2, 0], sizes = [1, 64], strides = [1, 1]} : vector<8x128xf32> to vector<1x64xf32>
    %17 = vector.extract_strided_slice %8 {offsets = [3, 0], sizes = [1, 32], strides = [1, 1]} : vector<8x128xf32> to vector<1x32xf32>
    %18 = vector.extract_strided_slice %8 {offsets = [4, 0], sizes = [1, 32], strides = [1, 1]} : vector<8x128xf32> to vector<1x32xf32>
    %19 = vector.extract_strided_slice %8 {offsets = [5, 0], sizes = [1, 32], strides = [1, 1]} : vector<8x128xf32> to vector<1x32xf32>
    %20 = vector.extract_strided_slice %8 {offsets = [6, 0], sizes = [1, 32], strides = [1, 1]} : vector<8x128xf32> to vector<1x32xf32>
    %21 = vector.extract_strided_slice %8 {offsets = [7, 0], sizes = [1, 32], strides = [1, 1]} : vector<8x128xf32> to vector<1x32xf32>
    %cst = arith.constant dense<0.000000e+00> : vector<16x96xf32>
    %22 = tpu.matmul %2, %10, %cst {dimension_numbers = #tpu.dot_dimension_numbers<[1], [0], [0], [1], [0, 0, 1, 1], [], []>} : vector<16x32xf32>, vector<32x96xf32>, vector<16x96xf32> -> vector<16x96xf32>
    %23 = vector.broadcast %14 : vector<1x96xf32> to vector<16x96xf32>
    %24 = arith.addf %22, %23 : vector<16x96xf32>
    %25 = vector.extract_strided_slice %24 {offsets = [0, 0], sizes = [16, 32], strides = [1, 1]} : vector<16x96xf32> to vector<16x32xf32>
    %26 = vector.extract_strided_slice %24 {offsets = [0, 32], sizes = [16, 32], strides = [1, 1]} : vector<16x96xf32> to vector<16x32xf32>
    %27 = vector.extract_strided_slice %24 {offsets = [0, 64], sizes = [16, 32], strides = [1, 1]} : vector<16x96xf32> to vector<16x32xf32>
    %28 = tpu.concatenate %26, %26, %26, %26, %26, %26, %26, %26 in 0 : vector<16x32xf32>, vector<16x32xf32>, vector<16x32xf32>, vector<16x32xf32>, vector<16x32xf32>, vector<16x32xf32>, vector<16x32xf32>, vector<16x32xf32> -> vector<128x32xf32>
    %29 = arith.mulf %28, %9 : vector<128x32xf32>
    %cst_15 = arith.constant dense<0.000000e+00> : vector<16x128xf32>
    %30 = tpu.matmul %25, %29, %cst_15 {dimension_numbers = #tpu.dot_dimension_numbers<[1], [1], [0], [0], [0, 0, 1, 0], [], []>} : vector<16x32xf32>, vector<128x32xf32>, vector<16x128xf32> -> vector<16x128xf32>
    %31 = arith.addf %30, %0 : vector<16x128xf32>
    %32 = math.exp %31 : vector<16x128xf32>
    %cst_16 = arith.constant dense<0.000000e+00> : vector<16x32xf32>
    %33 = tpu.matmul %32, %9, %cst_16 {dimension_numbers = #tpu.dot_dimension_numbers<[1], [0], [0], [1], [0, 0, 1, 1], [], []>} : vector<16x128xf32>, vector<128x32xf32>, vector<16x32xf32> -> vector<16x32xf32>
    %34 = tpu.concatenate %27, %27, %27, %27, %27, %27, %27, %27 in 0 : vector<16x32xf32>, vector<16x32xf32>, vector<16x32xf32>, vector<16x32xf32>, vector<16x32xf32>, vector<16x32xf32>, vector<16x32xf32>, vector<16x32xf32> -> vector<128x32xf32>
    %35 = arith.mulf %34, %9 : vector<128x32xf32>
    %cst_17 = arith.constant dense<0.000000e+00> : vector<16x32xf32>
    %36 = tpu.matmul %32, %35, %cst_17 {dimension_numbers = #tpu.dot_dimension_numbers<[1], [0], [0], [1], [0, 0, 1, 1], [], []>} : vector<16x128xf32>, vector<128x32xf32>, vector<16x32xf32> -> vector<16x32xf32>
    %37 = arith.divf %36, %33 : vector<16x32xf32>
    %cst_18 = arith.constant dense<0.000000e+00> : vector<16x32xf32>
    %38 = tpu.matmul %37, %11, %cst_18 {dimension_numbers = #tpu.dot_dimension_numbers<[1], [0], [0], [1], [0, 0, 1, 1], [], []>} : vector<16x32xf32>, vector<32x32xf32>, vector<16x32xf32> -> vector<16x32xf32>
    %39 = vector.broadcast %15 : vector<1x32xf32> to vector<16x32xf32>
    %40 = arith.addf %38, %39 : vector<16x32xf32>
    %41 = arith.addf %2, %40 : vector<16x32xf32>
    %cst_19 = arith.constant dense<0.000000e+00> : vector<16xf32>
    %42 = vector.multi_reduction <add>, %41, %cst_19 [1] : vector<16x32xf32> to vector<16xf32>
    %43 = vector.shape_cast %42 : vector<16xf32> to vector<16x1xf32>
    %cst_20 = arith.constant 3.200000e+01 : f32
    %44 = vector.broadcast %cst_20 : f32 to vector<16x1xf32>
    %45 = arith.divf %43, %44 : vector<16x1xf32>
    %46 = arith.mulf %41, %41 : vector<16x32xf32>
    %cst_21 = arith.constant dense<0.000000e+00> : vector<16xf32>
    %47 = vector.multi_reduction <add>, %46, %cst_21 [1] : vector<16x32xf32> to vector<16xf32>
    %48 = vector.shape_cast %47 : vector<16xf32> to vector<16x1xf32>
    %cst_22 = arith.constant 3.200000e+01 : f32
    %49 = vector.broadcast %cst_22 : f32 to vector<16x1xf32>
    %50 = arith.divf %48, %49 : vector<16x1xf32>
    %51 = arith.mulf %45, %45 : vector<16x1xf32>
    %52 = arith.subf %50, %51 : vector<16x1xf32>
    %cst_23 = arith.constant 0.000000e+00 : f32
    %53 = vector.broadcast %cst_23 : f32 to vector<16x1xf32>
    %54 = arith.maximumf %52, %53 : vector<16x1xf32>
    %55 = vector.broadcast %45 : vector<16x1xf32> to vector<16x32xf32>
    %56 = arith.subf %41, %55 : vector<16x32xf32>
    %cst_24 = arith.constant 9.99999974E-6 : f32
    %57 = vector.broadcast %cst_24 : f32 to vector<16x1xf32>
    %58 = arith.addf %54, %57 : vector<16x1xf32>
    %59 = math.rsqrt %58 : vector<16x1xf32>
    %60 = vector.broadcast %59 : vector<16x1xf32> to vector<16x32xf32>
    %61 = arith.mulf %56, %60 : vector<16x32xf32>
    %62 = vector.broadcast %18 : vector<1x32xf32> to vector<16x32xf32>
    %63 = arith.mulf %61, %62 : vector<16x32xf32>
    %64 = vector.broadcast %19 : vector<1x32xf32> to vector<16x32xf32>
    %65 = arith.addf %63, %64 : vector<16x32xf32>
    %cst_25 = arith.constant dense<0.000000e+00> : vector<16x64xf32>
    %66 = tpu.matmul %65, %12, %cst_25 {dimension_numbers = #tpu.dot_dimension_numbers<[1], [0], [0], [1], [0, 0, 1, 1], [], []>} : vector<16x32xf32>, vector<32x64xf32>, vector<16x64xf32> -> vector<16x64xf32>
    %67 = vector.broadcast %16 : vector<1x64xf32> to vector<16x64xf32>
    %68 = arith.addf %66, %67 : vector<16x64xf32>
    %cst_26 = arith.constant 0.000000e+00 : f32
    %69 = vector.broadcast %cst_26 : f32 to vector<16x64xf32>
    %70 = arith.maximumf %68, %69 : vector<16x64xf32>
    %cst_27 = arith.constant dense<0.000000e+00> : vector<16x32xf32>
    %71 = tpu.matmul %70, %13, %cst_27 {dimension_numbers = #tpu.dot_dimension_numbers<[1], [1], [0], [0], [0, 0, 1, 0], [], []>} : vector<16x64xf32>, vector<32x64xf32>, vector<16x32xf32> -> vector<16x32xf32>
    %72 = vector.broadcast %17 : vector<1x32xf32> to vector<16x32xf32>
    %73 = arith.addf %71, %72 : vector<16x32xf32>
    %74 = arith.addf %65, %73 : vector<16x32xf32>
    %cst_28 = arith.constant dense<0.000000e+00> : vector<16xf32>
    %75 = vector.multi_reduction <add>, %74, %cst_28 [1] : vector<16x32xf32> to vector<16xf32>
    %76 = vector.shape_cast %75 : vector<16xf32> to vector<16x1xf32>
    %cst_29 = arith.constant 3.200000e+01 : f32
    %77 = vector.broadcast %cst_29 : f32 to vector<16x1xf32>
    %78 = arith.divf %76, %77 : vector<16x1xf32>
    %79 = arith.mulf %74, %74 : vector<16x32xf32>
    %cst_30 = arith.constant dense<0.000000e+00> : vector<16xf32>
    %80 = vector.multi_reduction <add>, %79, %cst_30 [1] : vector<16x32xf32> to vector<16xf32>
    %81 = vector.shape_cast %80 : vector<16xf32> to vector<16x1xf32>
    %cst_31 = arith.constant 3.200000e+01 : f32
    %82 = vector.broadcast %cst_31 : f32 to vector<16x1xf32>
    %83 = arith.divf %81, %82 : vector<16x1xf32>
    %84 = arith.mulf %78, %78 : vector<16x1xf32>
    %85 = arith.subf %83, %84 : vector<16x1xf32>
    %cst_32 = arith.constant 0.000000e+00 : f32
    %86 = vector.broadcast %cst_32 : f32 to vector<16x1xf32>
    %87 = arith.maximumf %85, %86 : vector<16x1xf32>
    %88 = vector.broadcast %78 : vector<16x1xf32> to vector<16x32xf32>
    %89 = arith.subf %74, %88 : vector<16x32xf32>
    %cst_33 = arith.constant 9.99999974E-6 : f32
    %90 = vector.broadcast %cst_33 : f32 to vector<16x1xf32>
    %91 = arith.addf %87, %90 : vector<16x1xf32>
    %92 = math.rsqrt %91 : vector<16x1xf32>
    %93 = vector.broadcast %92 : vector<16x1xf32> to vector<16x32xf32>
    %94 = arith.mulf %89, %93 : vector<16x32xf32>
    %95 = vector.broadcast %20 : vector<1x32xf32> to vector<16x32xf32>
    %96 = arith.mulf %94, %95 : vector<16x32xf32>
    %97 = vector.broadcast %21 : vector<1x32xf32> to vector<16x32xf32>
    %98 = arith.addf %96, %97 : vector<16x32xf32>
    %c1 = arith.constant 1 : index
    %c0_34 = arith.constant 0 : index
    %c0_35 = arith.constant 0 : index
    %99 = vector.load %arg2[%c1, %c0_34, %c0_35] : memref<4x32x128xf32, #tpu.memory_space<vmem>>, vector<1x32x128xf32>
    %100 = vector.shape_cast %99 : vector<1x32x128xf32> to vector<32x128xf32>
    %c1_36 = arith.constant 1 : index
    %c0_37 = arith.constant 0 : index
    %c0_38 = arith.constant 0 : index
    %101 = vector.load %arg3[%c1_36, %c0_37, %c0_38] : memref<4x32x128xf32, #tpu.memory_space<vmem>>, vector<1x32x128xf32>
    %102 = vector.shape_cast %101 : vector<1x32x128xf32> to vector<32x128xf32>
    %c1_39 = arith.constant 1 : index
    %c0_40 = arith.constant 0 : index
    %c0_41 = arith.constant 0 : index
    %103 = vector.load %arg4[%c1_39, %c0_40, %c0_41] : memref<4x8x128xf32, #tpu.memory_space<vmem>>, vector<1x8x128xf32>
    %104 = vector.shape_cast %103 : vector<1x8x128xf32> to vector<8x128xf32>
    %c0_42 = arith.constant 0 : index
    %c0_43 = arith.constant 0 : index
    %105 = vector.load %arg6[%c0_42, %c0_43] : memref<128x32xf32, #tpu.memory_space<vmem>>, vector<128x32xf32>
    %106 = vector.extract_strided_slice %100 {offsets = [0, 0], sizes = [32, 96], strides = [1, 1]} : vector<32x128xf32> to vector<32x96xf32>
    %107 = vector.extract_strided_slice %100 {offsets = [0, 96], sizes = [32, 32], strides = [1, 1]} : vector<32x128xf32> to vector<32x32xf32>
    %108 = vector.extract_strided_slice %102 {offsets = [0, 0], sizes = [32, 64], strides = [1, 1]} : vector<32x128xf32> to vector<32x64xf32>
    %109 = vector.extract_strided_slice %102 {offsets = [0, 64], sizes = [32, 64], strides = [1, 1]} : vector<32x128xf32> to vector<32x64xf32>
    %110 = vector.extract_strided_slice %104 {offsets = [0, 0], sizes = [1, 96], strides = [1, 1]} : vector<8x128xf32> to vector<1x96xf32>
    %111 = vector.extract_strided_slice %104 {offsets = [1, 0], sizes = [1, 32], strides = [1, 1]} : vector<8x128xf32> to vector<1x32xf32>
    %112 = vector.extract_strided_slice %104 {offsets = [2, 0], sizes = [1, 64], strides = [1, 1]} : vector<8x128xf32> to vector<1x64xf32>
    %113 = vector.extract_strided_slice %104 {offsets = [3, 0], sizes = [1, 32], strides = [1, 1]} : vector<8x128xf32> to vector<1x32xf32>
    %114 = vector.extract_strided_slice %104 {offsets = [4, 0], sizes = [1, 32], strides = [1, 1]} : vector<8x128xf32> to vector<1x32xf32>
    %115 = vector.extract_strided_slice %104 {offsets = [5, 0], sizes = [1, 32], strides = [1, 1]} : vector<8x128xf32> to vector<1x32xf32>
    %116 = vector.extract_strided_slice %104 {offsets = [6, 0], sizes = [1, 32], strides = [1, 1]} : vector<8x128xf32> to vector<1x32xf32>
    %117 = vector.extract_strided_slice %104 {offsets = [7, 0], sizes = [1, 32], strides = [1, 1]} : vector<8x128xf32> to vector<1x32xf32>
    %cst_44 = arith.constant dense<0.000000e+00> : vector<16x96xf32>
    %118 = tpu.matmul %98, %106, %cst_44 {dimension_numbers = #tpu.dot_dimension_numbers<[1], [0], [0], [1], [0, 0, 1, 1], [], []>} : vector<16x32xf32>, vector<32x96xf32>, vector<16x96xf32> -> vector<16x96xf32>
    %119 = vector.broadcast %110 : vector<1x96xf32> to vector<16x96xf32>
    %120 = arith.addf %118, %119 : vector<16x96xf32>
    %121 = vector.extract_strided_slice %120 {offsets = [0, 0], sizes = [16, 32], strides = [1, 1]} : vector<16x96xf32> to vector<16x32xf32>
    %122 = vector.extract_strided_slice %120 {offsets = [0, 32], sizes = [16, 32], strides = [1, 1]} : vector<16x96xf32> to vector<16x32xf32>
    %123 = vector.extract_strided_slice %120 {offsets = [0, 64], sizes = [16, 32], strides = [1, 1]} : vector<16x96xf32> to vector<16x32xf32>
    %124 = tpu.concatenate %122, %122, %122, %122, %122, %122, %122, %122 in 0 : vector<16x32xf32>, vector<16x32xf32>, vector<16x32xf32>, vector<16x32xf32>, vector<16x32xf32>, vector<16x32xf32>, vector<16x32xf32>, vector<16x32xf32> -> vector<128x32xf32>
    %125 = arith.mulf %124, %105 : vector<128x32xf32>
    %cst_45 = arith.constant dense<0.000000e+00> : vector<16x128xf32>
    %126 = tpu.matmul %121, %125, %cst_45 {dimension_numbers = #tpu.dot_dimension_numbers<[1], [1], [0], [0], [0, 0, 1, 0], [], []>} : vector<16x32xf32>, vector<128x32xf32>, vector<16x128xf32> -> vector<16x128xf32>
    %127 = arith.addf %126, %0 : vector<16x128xf32>
    %128 = math.exp %127 : vector<16x128xf32>
    %cst_46 = arith.constant dense<0.000000e+00> : vector<16x32xf32>
    %129 = tpu.matmul %128, %105, %cst_46 {dimension_numbers = #tpu.dot_dimension_numbers<[1], [0], [0], [1], [0, 0, 1, 1], [], []>} : vector<16x128xf32>, vector<128x32xf32>, vector<16x32xf32> -> vector<16x32xf32>
    %130 = tpu.concatenate %123, %123, %123, %123, %123, %123, %123, %123 in 0 : vector<16x32xf32>, vector<16x32xf32>, vector<16x32xf32>, vector<16x32xf32>, vector<16x32xf32>, vector<16x32xf32>, vector<16x32xf32>, vector<16x32xf32> -> vector<128x32xf32>
    %131 = arith.mulf %130, %105 : vector<128x32xf32>
    %cst_47 = arith.constant dense<0.000000e+00> : vector<16x32xf32>
    %132 = tpu.matmul %128, %131, %cst_47 {dimension_numbers = #tpu.dot_dimension_numbers<[1], [0], [0], [1], [0, 0, 1, 1], [], []>} : vector<16x128xf32>, vector<128x32xf32>, vector<16x32xf32> -> vector<16x32xf32>
    %133 = arith.divf %132, %129 : vector<16x32xf32>
    %cst_48 = arith.constant dense<0.000000e+00> : vector<16x32xf32>
    %134 = tpu.matmul %133, %107, %cst_48 {dimension_numbers = #tpu.dot_dimension_numbers<[1], [0], [0], [1], [0, 0, 1, 1], [], []>} : vector<16x32xf32>, vector<32x32xf32>, vector<16x32xf32> -> vector<16x32xf32>
    %135 = vector.broadcast %111 : vector<1x32xf32> to vector<16x32xf32>
    %136 = arith.addf %134, %135 : vector<16x32xf32>
    %137 = arith.addf %98, %136 : vector<16x32xf32>
    %cst_49 = arith.constant dense<0.000000e+00> : vector<16xf32>
    %138 = vector.multi_reduction <add>, %137, %cst_49 [1] : vector<16x32xf32> to vector<16xf32>
    %139 = vector.shape_cast %138 : vector<16xf32> to vector<16x1xf32>
    %cst_50 = arith.constant 3.200000e+01 : f32
    %140 = vector.broadcast %cst_50 : f32 to vector<16x1xf32>
    %141 = arith.divf %139, %140 : vector<16x1xf32>
    %142 = arith.mulf %137, %137 : vector<16x32xf32>
    %cst_51 = arith.constant dense<0.000000e+00> : vector<16xf32>
    %143 = vector.multi_reduction <add>, %142, %cst_51 [1] : vector<16x32xf32> to vector<16xf32>
    %144 = vector.shape_cast %143 : vector<16xf32> to vector<16x1xf32>
    %cst_52 = arith.constant 3.200000e+01 : f32
    %145 = vector.broadcast %cst_52 : f32 to vector<16x1xf32>
    %146 = arith.divf %144, %145 : vector<16x1xf32>
    %147 = arith.mulf %141, %141 : vector<16x1xf32>
    %148 = arith.subf %146, %147 : vector<16x1xf32>
    %cst_53 = arith.constant 0.000000e+00 : f32
    %149 = vector.broadcast %cst_53 : f32 to vector<16x1xf32>
    %150 = arith.maximumf %148, %149 : vector<16x1xf32>
    %151 = vector.broadcast %141 : vector<16x1xf32> to vector<16x32xf32>
    %152 = arith.subf %137, %151 : vector<16x32xf32>
    %cst_54 = arith.constant 9.99999974E-6 : f32
    %153 = vector.broadcast %cst_54 : f32 to vector<16x1xf32>
    %154 = arith.addf %150, %153 : vector<16x1xf32>
    %155 = math.rsqrt %154 : vector<16x1xf32>
    %156 = vector.broadcast %155 : vector<16x1xf32> to vector<16x32xf32>
    %157 = arith.mulf %152, %156 : vector<16x32xf32>
    %158 = vector.broadcast %114 : vector<1x32xf32> to vector<16x32xf32>
    %159 = arith.mulf %157, %158 : vector<16x32xf32>
    %160 = vector.broadcast %115 : vector<1x32xf32> to vector<16x32xf32>
    %161 = arith.addf %159, %160 : vector<16x32xf32>
    %cst_55 = arith.constant dense<0.000000e+00> : vector<16x64xf32>
    %162 = tpu.matmul %161, %108, %cst_55 {dimension_numbers = #tpu.dot_dimension_numbers<[1], [0], [0], [1], [0, 0, 1, 1], [], []>} : vector<16x32xf32>, vector<32x64xf32>, vector<16x64xf32> -> vector<16x64xf32>
    %163 = vector.broadcast %112 : vector<1x64xf32> to vector<16x64xf32>
    %164 = arith.addf %162, %163 : vector<16x64xf32>
    %cst_56 = arith.constant 0.000000e+00 : f32
    %165 = vector.broadcast %cst_56 : f32 to vector<16x64xf32>
    %166 = arith.maximumf %164, %165 : vector<16x64xf32>
    %cst_57 = arith.constant dense<0.000000e+00> : vector<16x32xf32>
    %167 = tpu.matmul %166, %109, %cst_57 {dimension_numbers = #tpu.dot_dimension_numbers<[1], [1], [0], [0], [0, 0, 1, 0], [], []>} : vector<16x64xf32>, vector<32x64xf32>, vector<16x32xf32> -> vector<16x32xf32>
    %168 = vector.broadcast %113 : vector<1x32xf32> to vector<16x32xf32>
    %169 = arith.addf %167, %168 : vector<16x32xf32>
    %170 = arith.addf %161, %169 : vector<16x32xf32>
    %cst_58 = arith.constant dense<0.000000e+00> : vector<16xf32>
    %171 = vector.multi_reduction <add>, %170, %cst_58 [1] : vector<16x32xf32> to vector<16xf32>
    %172 = vector.shape_cast %171 : vector<16xf32> to vector<16x1xf32>
    %cst_59 = arith.constant 3.200000e+01 : f32
    %173 = vector.broadcast %cst_59 : f32 to vector<16x1xf32>
    %174 = arith.divf %172, %173 : vector<16x1xf32>
    %175 = arith.mulf %170, %170 : vector<16x32xf32>
    %cst_60 = arith.constant dense<0.000000e+00> : vector<16xf32>
    %176 = vector.multi_reduction <add>, %175, %cst_60 [1] : vector<16x32xf32> to vector<16xf32>
    %177 = vector.shape_cast %176 : vector<16xf32> to vector<16x1xf32>
    %cst_61 = arith.constant 3.200000e+01 : f32
    %178 = vector.broadcast %cst_61 : f32 to vector<16x1xf32>
    %179 = arith.divf %177, %178 : vector<16x1xf32>
    %180 = arith.mulf %174, %174 : vector<16x1xf32>
    %181 = arith.subf %179, %180 : vector<16x1xf32>
    %cst_62 = arith.constant 0.000000e+00 : f32
    %182 = vector.broadcast %cst_62 : f32 to vector<16x1xf32>
    %183 = arith.maximumf %181, %182 : vector<16x1xf32>
    %184 = vector.broadcast %174 : vector<16x1xf32> to vector<16x32xf32>
    %185 = arith.subf %170, %184 : vector<16x32xf32>
    %cst_63 = arith.constant 9.99999974E-6 : f32
    %186 = vector.broadcast %cst_63 : f32 to vector<16x1xf32>
    %187 = arith.addf %183, %186 : vector<16x1xf32>
    %188 = math.rsqrt %187 : vector<16x1xf32>
    %189 = vector.broadcast %188 : vector<16x1xf32> to vector<16x32xf32>
    %190 = arith.mulf %185, %189 : vector<16x32xf32>
    %191 = vector.broadcast %116 : vector<1x32xf32> to vector<16x32xf32>
    %192 = arith.mulf %190, %191 : vector<16x32xf32>
    %193 = vector.broadcast %117 : vector<1x32xf32> to vector<16x32xf32>
    %194 = arith.addf %192, %193 : vector<16x32xf32>
    %c2 = arith.constant 2 : index
    %c0_64 = arith.constant 0 : index
    %c0_65 = arith.constant 0 : index
    %195 = vector.load %arg2[%c2, %c0_64, %c0_65] : memref<4x32x128xf32, #tpu.memory_space<vmem>>, vector<1x32x128xf32>
    %196 = vector.shape_cast %195 : vector<1x32x128xf32> to vector<32x128xf32>
    %c2_66 = arith.constant 2 : index
    %c0_67 = arith.constant 0 : index
    %c0_68 = arith.constant 0 : index
    %197 = vector.load %arg3[%c2_66, %c0_67, %c0_68] : memref<4x32x128xf32, #tpu.memory_space<vmem>>, vector<1x32x128xf32>
    %198 = vector.shape_cast %197 : vector<1x32x128xf32> to vector<32x128xf32>
    %c2_69 = arith.constant 2 : index
    %c0_70 = arith.constant 0 : index
    %c0_71 = arith.constant 0 : index
    %199 = vector.load %arg4[%c2_69, %c0_70, %c0_71] : memref<4x8x128xf32, #tpu.memory_space<vmem>>, vector<1x8x128xf32>
    %200 = vector.shape_cast %199 : vector<1x8x128xf32> to vector<8x128xf32>
    %c0_72 = arith.constant 0 : index
    %c0_73 = arith.constant 0 : index
    %201 = vector.load %arg6[%c0_72, %c0_73] : memref<128x32xf32, #tpu.memory_space<vmem>>, vector<128x32xf32>
    %202 = vector.extract_strided_slice %196 {offsets = [0, 0], sizes = [32, 96], strides = [1, 1]} : vector<32x128xf32> to vector<32x96xf32>
    %203 = vector.extract_strided_slice %196 {offsets = [0, 96], sizes = [32, 32], strides = [1, 1]} : vector<32x128xf32> to vector<32x32xf32>
    %204 = vector.extract_strided_slice %198 {offsets = [0, 0], sizes = [32, 64], strides = [1, 1]} : vector<32x128xf32> to vector<32x64xf32>
    %205 = vector.extract_strided_slice %198 {offsets = [0, 64], sizes = [32, 64], strides = [1, 1]} : vector<32x128xf32> to vector<32x64xf32>
    %206 = vector.extract_strided_slice %200 {offsets = [0, 0], sizes = [1, 96], strides = [1, 1]} : vector<8x128xf32> to vector<1x96xf32>
    %207 = vector.extract_strided_slice %200 {offsets = [1, 0], sizes = [1, 32], strides = [1, 1]} : vector<8x128xf32> to vector<1x32xf32>
    %208 = vector.extract_strided_slice %200 {offsets = [2, 0], sizes = [1, 64], strides = [1, 1]} : vector<8x128xf32> to vector<1x64xf32>
    %209 = vector.extract_strided_slice %200 {offsets = [3, 0], sizes = [1, 32], strides = [1, 1]} : vector<8x128xf32> to vector<1x32xf32>
    %210 = vector.extract_strided_slice %200 {offsets = [4, 0], sizes = [1, 32], strides = [1, 1]} : vector<8x128xf32> to vector<1x32xf32>
    %211 = vector.extract_strided_slice %200 {offsets = [5, 0], sizes = [1, 32], strides = [1, 1]} : vector<8x128xf32> to vector<1x32xf32>
    %212 = vector.extract_strided_slice %200 {offsets = [6, 0], sizes = [1, 32], strides = [1, 1]} : vector<8x128xf32> to vector<1x32xf32>
    %213 = vector.extract_strided_slice %200 {offsets = [7, 0], sizes = [1, 32], strides = [1, 1]} : vector<8x128xf32> to vector<1x32xf32>
    %cst_74 = arith.constant dense<0.000000e+00> : vector<16x96xf32>
    %214 = tpu.matmul %194, %202, %cst_74 {dimension_numbers = #tpu.dot_dimension_numbers<[1], [0], [0], [1], [0, 0, 1, 1], [], []>} : vector<16x32xf32>, vector<32x96xf32>, vector<16x96xf32> -> vector<16x96xf32>
    %215 = vector.broadcast %206 : vector<1x96xf32> to vector<16x96xf32>
    %216 = arith.addf %214, %215 : vector<16x96xf32>
    %217 = vector.extract_strided_slice %216 {offsets = [0, 0], sizes = [16, 32], strides = [1, 1]} : vector<16x96xf32> to vector<16x32xf32>
    %218 = vector.extract_strided_slice %216 {offsets = [0, 32], sizes = [16, 32], strides = [1, 1]} : vector<16x96xf32> to vector<16x32xf32>
    %219 = vector.extract_strided_slice %216 {offsets = [0, 64], sizes = [16, 32], strides = [1, 1]} : vector<16x96xf32> to vector<16x32xf32>
    %220 = tpu.concatenate %218, %218, %218, %218, %218, %218, %218, %218 in 0 : vector<16x32xf32>, vector<16x32xf32>, vector<16x32xf32>, vector<16x32xf32>, vector<16x32xf32>, vector<16x32xf32>, vector<16x32xf32>, vector<16x32xf32> -> vector<128x32xf32>
    %221 = arith.mulf %220, %201 : vector<128x32xf32>
    %cst_75 = arith.constant dense<0.000000e+00> : vector<16x128xf32>
    %222 = tpu.matmul %217, %221, %cst_75 {dimension_numbers = #tpu.dot_dimension_numbers<[1], [1], [0], [0], [0, 0, 1, 0], [], []>} : vector<16x32xf32>, vector<128x32xf32>, vector<16x128xf32> -> vector<16x128xf32>
    %223 = arith.addf %222, %0 : vector<16x128xf32>
    %224 = math.exp %223 : vector<16x128xf32>
    %cst_76 = arith.constant dense<0.000000e+00> : vector<16x32xf32>
    %225 = tpu.matmul %224, %201, %cst_76 {dimension_numbers = #tpu.dot_dimension_numbers<[1], [0], [0], [1], [0, 0, 1, 1], [], []>} : vector<16x128xf32>, vector<128x32xf32>, vector<16x32xf32> -> vector<16x32xf32>
    %226 = tpu.concatenate %219, %219, %219, %219, %219, %219, %219, %219 in 0 : vector<16x32xf32>, vector<16x32xf32>, vector<16x32xf32>, vector<16x32xf32>, vector<16x32xf32>, vector<16x32xf32>, vector<16x32xf32>, vector<16x32xf32> -> vector<128x32xf32>
    %227 = arith.mulf %226, %201 : vector<128x32xf32>
    %cst_77 = arith.constant dense<0.000000e+00> : vector<16x32xf32>
    %228 = tpu.matmul %224, %227, %cst_77 {dimension_numbers = #tpu.dot_dimension_numbers<[1], [0], [0], [1], [0, 0, 1, 1], [], []>} : vector<16x128xf32>, vector<128x32xf32>, vector<16x32xf32> -> vector<16x32xf32>
    %229 = arith.divf %228, %225 : vector<16x32xf32>
    %cst_78 = arith.constant dense<0.000000e+00> : vector<16x32xf32>
    %230 = tpu.matmul %229, %203, %cst_78 {dimension_numbers = #tpu.dot_dimension_numbers<[1], [0], [0], [1], [0, 0, 1, 1], [], []>} : vector<16x32xf32>, vector<32x32xf32>, vector<16x32xf32> -> vector<16x32xf32>
    %231 = vector.broadcast %207 : vector<1x32xf32> to vector<16x32xf32>
    %232 = arith.addf %230, %231 : vector<16x32xf32>
    %233 = arith.addf %194, %232 : vector<16x32xf32>
    %cst_79 = arith.constant dense<0.000000e+00> : vector<16xf32>
    %234 = vector.multi_reduction <add>, %233, %cst_79 [1] : vector<16x32xf32> to vector<16xf32>
    %235 = vector.shape_cast %234 : vector<16xf32> to vector<16x1xf32>
    %cst_80 = arith.constant 3.200000e+01 : f32
    %236 = vector.broadcast %cst_80 : f32 to vector<16x1xf32>
    %237 = arith.divf %235, %236 : vector<16x1xf32>
    %238 = arith.mulf %233, %233 : vector<16x32xf32>
    %cst_81 = arith.constant dense<0.000000e+00> : vector<16xf32>
    %239 = vector.multi_reduction <add>, %238, %cst_81 [1] : vector<16x32xf32> to vector<16xf32>
    %240 = vector.shape_cast %239 : vector<16xf32> to vector<16x1xf32>
    %cst_82 = arith.constant 3.200000e+01 : f32
    %241 = vector.broadcast %cst_82 : f32 to vector<16x1xf32>
    %242 = arith.divf %240, %241 : vector<16x1xf32>
    %243 = arith.mulf %237, %237 : vector<16x1xf32>
    %244 = arith.subf %242, %243 : vector<16x1xf32>
    %cst_83 = arith.constant 0.000000e+00 : f32
    %245 = vector.broadcast %cst_83 : f32 to vector<16x1xf32>
    %246 = arith.maximumf %244, %245 : vector<16x1xf32>
    %247 = vector.broadcast %237 : vector<16x1xf32> to vector<16x32xf32>
    %248 = arith.subf %233, %247 : vector<16x32xf32>
    %cst_84 = arith.constant 9.99999974E-6 : f32
    %249 = vector.broadcast %cst_84 : f32 to vector<16x1xf32>
    %250 = arith.addf %246, %249 : vector<16x1xf32>
    %251 = math.rsqrt %250 : vector<16x1xf32>
    %252 = vector.broadcast %251 : vector<16x1xf32> to vector<16x32xf32>
    %253 = arith.mulf %248, %252 : vector<16x32xf32>
    %254 = vector.broadcast %210 : vector<1x32xf32> to vector<16x32xf32>
    %255 = arith.mulf %253, %254 : vector<16x32xf32>
    %256 = vector.broadcast %211 : vector<1x32xf32> to vector<16x32xf32>
    %257 = arith.addf %255, %256 : vector<16x32xf32>
    %cst_85 = arith.constant dense<0.000000e+00> : vector<16x64xf32>
    %258 = tpu.matmul %257, %204, %cst_85 {dimension_numbers = #tpu.dot_dimension_numbers<[1], [0], [0], [1], [0, 0, 1, 1], [], []>} : vector<16x32xf32>, vector<32x64xf32>, vector<16x64xf32> -> vector<16x64xf32>
    %259 = vector.broadcast %208 : vector<1x64xf32> to vector<16x64xf32>
    %260 = arith.addf %258, %259 : vector<16x64xf32>
    %cst_86 = arith.constant 0.000000e+00 : f32
    %261 = vector.broadcast %cst_86 : f32 to vector<16x64xf32>
    %262 = arith.maximumf %260, %261 : vector<16x64xf32>
    %cst_87 = arith.constant dense<0.000000e+00> : vector<16x32xf32>
    %263 = tpu.matmul %262, %205, %cst_87 {dimension_numbers = #tpu.dot_dimension_numbers<[1], [1], [0], [0], [0, 0, 1, 0], [], []>} : vector<16x64xf32>, vector<32x64xf32>, vector<16x32xf32> -> vector<16x32xf32>
    %264 = vector.broadcast %209 : vector<1x32xf32> to vector<16x32xf32>
    %265 = arith.addf %263, %264 : vector<16x32xf32>
    %266 = arith.addf %257, %265 : vector<16x32xf32>
    %cst_88 = arith.constant dense<0.000000e+00> : vector<16xf32>
    %267 = vector.multi_reduction <add>, %266, %cst_88 [1] : vector<16x32xf32> to vector<16xf32>
    %268 = vector.shape_cast %267 : vector<16xf32> to vector<16x1xf32>
    %cst_89 = arith.constant 3.200000e+01 : f32
    %269 = vector.broadcast %cst_89 : f32 to vector<16x1xf32>
    %270 = arith.divf %268, %269 : vector<16x1xf32>
    %271 = arith.mulf %266, %266 : vector<16x32xf32>
    %cst_90 = arith.constant dense<0.000000e+00> : vector<16xf32>
    %272 = vector.multi_reduction <add>, %271, %cst_90 [1] : vector<16x32xf32> to vector<16xf32>
    %273 = vector.shape_cast %272 : vector<16xf32> to vector<16x1xf32>
    %cst_91 = arith.constant 3.200000e+01 : f32
    %274 = vector.broadcast %cst_91 : f32 to vector<16x1xf32>
    %275 = arith.divf %273, %274 : vector<16x1xf32>
    %276 = arith.mulf %270, %270 : vector<16x1xf32>
    %277 = arith.subf %275, %276 : vector<16x1xf32>
    %cst_92 = arith.constant 0.000000e+00 : f32
    %278 = vector.broadcast %cst_92 : f32 to vector<16x1xf32>
    %279 = arith.maximumf %277, %278 : vector<16x1xf32>
    %280 = vector.broadcast %270 : vector<16x1xf32> to vector<16x32xf32>
    %281 = arith.subf %266, %280 : vector<16x32xf32>
    %cst_93 = arith.constant 9.99999974E-6 : f32
    %282 = vector.broadcast %cst_93 : f32 to vector<16x1xf32>
    %283 = arith.addf %279, %282 : vector<16x1xf32>
    %284 = math.rsqrt %283 : vector<16x1xf32>
    %285 = vector.broadcast %284 : vector<16x1xf32> to vector<16x32xf32>
    %286 = arith.mulf %281, %285 : vector<16x32xf32>
    %287 = vector.broadcast %212 : vector<1x32xf32> to vector<16x32xf32>
    %288 = arith.mulf %286, %287 : vector<16x32xf32>
    %289 = vector.broadcast %213 : vector<1x32xf32> to vector<16x32xf32>
    %290 = arith.addf %288, %289 : vector<16x32xf32>
    %c3 = arith.constant 3 : index
    %c0_94 = arith.constant 0 : index
    %c0_95 = arith.constant 0 : index
    %291 = vector.load %arg2[%c3, %c0_94, %c0_95] : memref<4x32x128xf32, #tpu.memory_space<vmem>>, vector<1x32x128xf32>
    %292 = vector.shape_cast %291 : vector<1x32x128xf32> to vector<32x128xf32>
    %c3_96 = arith.constant 3 : index
    %c0_97 = arith.constant 0 : index
    %c0_98 = arith.constant 0 : index
    %293 = vector.load %arg3[%c3_96, %c0_97, %c0_98] : memref<4x32x128xf32, #tpu.memory_space<vmem>>, vector<1x32x128xf32>
    %294 = vector.shape_cast %293 : vector<1x32x128xf32> to vector<32x128xf32>
    %c3_99 = arith.constant 3 : index
    %c0_100 = arith.constant 0 : index
    %c0_101 = arith.constant 0 : index
    %295 = vector.load %arg4[%c3_99, %c0_100, %c0_101] : memref<4x8x128xf32, #tpu.memory_space<vmem>>, vector<1x8x128xf32>
    %296 = vector.shape_cast %295 : vector<1x8x128xf32> to vector<8x128xf32>
    %c0_102 = arith.constant 0 : index
    %c0_103 = arith.constant 0 : index
    %297 = vector.load %arg6[%c0_102, %c0_103] : memref<128x32xf32, #tpu.memory_space<vmem>>, vector<128x32xf32>
    %298 = vector.extract_strided_slice %292 {offsets = [0, 0], sizes = [32, 96], strides = [1, 1]} : vector<32x128xf32> to vector<32x96xf32>
    %299 = vector.extract_strided_slice %292 {offsets = [0, 96], sizes = [32, 32], strides = [1, 1]} : vector<32x128xf32> to vector<32x32xf32>
    %300 = vector.extract_strided_slice %294 {offsets = [0, 0], sizes = [32, 64], strides = [1, 1]} : vector<32x128xf32> to vector<32x64xf32>
    %301 = vector.extract_strided_slice %294 {offsets = [0, 64], sizes = [32, 64], strides = [1, 1]} : vector<32x128xf32> to vector<32x64xf32>
    %302 = vector.extract_strided_slice %296 {offsets = [0, 0], sizes = [1, 96], strides = [1, 1]} : vector<8x128xf32> to vector<1x96xf32>
    %303 = vector.extract_strided_slice %296 {offsets = [1, 0], sizes = [1, 32], strides = [1, 1]} : vector<8x128xf32> to vector<1x32xf32>
    %304 = vector.extract_strided_slice %296 {offsets = [2, 0], sizes = [1, 64], strides = [1, 1]} : vector<8x128xf32> to vector<1x64xf32>
    %305 = vector.extract_strided_slice %296 {offsets = [3, 0], sizes = [1, 32], strides = [1, 1]} : vector<8x128xf32> to vector<1x32xf32>
    %306 = vector.extract_strided_slice %296 {offsets = [4, 0], sizes = [1, 32], strides = [1, 1]} : vector<8x128xf32> to vector<1x32xf32>
    %307 = vector.extract_strided_slice %296 {offsets = [5, 0], sizes = [1, 32], strides = [1, 1]} : vector<8x128xf32> to vector<1x32xf32>
    %308 = vector.extract_strided_slice %296 {offsets = [6, 0], sizes = [1, 32], strides = [1, 1]} : vector<8x128xf32> to vector<1x32xf32>
    %309 = vector.extract_strided_slice %296 {offsets = [7, 0], sizes = [1, 32], strides = [1, 1]} : vector<8x128xf32> to vector<1x32xf32>
    %cst_104 = arith.constant dense<0.000000e+00> : vector<16x96xf32>
    %310 = tpu.matmul %290, %298, %cst_104 {dimension_numbers = #tpu.dot_dimension_numbers<[1], [0], [0], [1], [0, 0, 1, 1], [], []>} : vector<16x32xf32>, vector<32x96xf32>, vector<16x96xf32> -> vector<16x96xf32>
    %311 = vector.broadcast %302 : vector<1x96xf32> to vector<16x96xf32>
    %312 = arith.addf %310, %311 : vector<16x96xf32>
    %313 = vector.extract_strided_slice %312 {offsets = [0, 0], sizes = [16, 32], strides = [1, 1]} : vector<16x96xf32> to vector<16x32xf32>
    %314 = vector.extract_strided_slice %312 {offsets = [0, 32], sizes = [16, 32], strides = [1, 1]} : vector<16x96xf32> to vector<16x32xf32>
    %315 = vector.extract_strided_slice %312 {offsets = [0, 64], sizes = [16, 32], strides = [1, 1]} : vector<16x96xf32> to vector<16x32xf32>
    %316 = tpu.concatenate %314, %314, %314, %314, %314, %314, %314, %314 in 0 : vector<16x32xf32>, vector<16x32xf32>, vector<16x32xf32>, vector<16x32xf32>, vector<16x32xf32>, vector<16x32xf32>, vector<16x32xf32>, vector<16x32xf32> -> vector<128x32xf32>
    %317 = arith.mulf %316, %297 : vector<128x32xf32>
    %cst_105 = arith.constant dense<0.000000e+00> : vector<16x128xf32>
    %318 = tpu.matmul %313, %317, %cst_105 {dimension_numbers = #tpu.dot_dimension_numbers<[1], [1], [0], [0], [0, 0, 1, 0], [], []>} : vector<16x32xf32>, vector<128x32xf32>, vector<16x128xf32> -> vector<16x128xf32>
    %319 = arith.addf %318, %0 : vector<16x128xf32>
    %320 = math.exp %319 : vector<16x128xf32>
    %cst_106 = arith.constant dense<0.000000e+00> : vector<16x32xf32>
    %321 = tpu.matmul %320, %297, %cst_106 {dimension_numbers = #tpu.dot_dimension_numbers<[1], [0], [0], [1], [0, 0, 1, 1], [], []>} : vector<16x128xf32>, vector<128x32xf32>, vector<16x32xf32> -> vector<16x32xf32>
    %322 = tpu.concatenate %315, %315, %315, %315, %315, %315, %315, %315 in 0 : vector<16x32xf32>, vector<16x32xf32>, vector<16x32xf32>, vector<16x32xf32>, vector<16x32xf32>, vector<16x32xf32>, vector<16x32xf32>, vector<16x32xf32> -> vector<128x32xf32>
    %323 = arith.mulf %322, %297 : vector<128x32xf32>
    %cst_107 = arith.constant dense<0.000000e+00> : vector<16x32xf32>
    %324 = tpu.matmul %320, %323, %cst_107 {dimension_numbers = #tpu.dot_dimension_numbers<[1], [0], [0], [1], [0, 0, 1, 1], [], []>} : vector<16x128xf32>, vector<128x32xf32>, vector<16x32xf32> -> vector<16x32xf32>
    %325 = arith.divf %324, %321 : vector<16x32xf32>
    %cst_108 = arith.constant dense<0.000000e+00> : vector<16x32xf32>
    %326 = tpu.matmul %325, %299, %cst_108 {dimension_numbers = #tpu.dot_dimension_numbers<[1], [0], [0], [1], [0, 0, 1, 1], [], []>} : vector<16x32xf32>, vector<32x32xf32>, vector<16x32xf32> -> vector<16x32xf32>
    %327 = vector.broadcast %303 : vector<1x32xf32> to vector<16x32xf32>
    %328 = arith.addf %326, %327 : vector<16x32xf32>
    %329 = arith.addf %290, %328 : vector<16x32xf32>
    %cst_109 = arith.constant dense<0.000000e+00> : vector<16xf32>
    %330 = vector.multi_reduction <add>, %329, %cst_109 [1] : vector<16x32xf32> to vector<16xf32>
    %331 = vector.shape_cast %330 : vector<16xf32> to vector<16x1xf32>
    %cst_110 = arith.constant 3.200000e+01 : f32
    %332 = vector.broadcast %cst_110 : f32 to vector<16x1xf32>
    %333 = arith.divf %331, %332 : vector<16x1xf32>
    %334 = arith.mulf %329, %329 : vector<16x32xf32>
    %cst_111 = arith.constant dense<0.000000e+00> : vector<16xf32>
    %335 = vector.multi_reduction <add>, %334, %cst_111 [1] : vector<16x32xf32> to vector<16xf32>
    %336 = vector.shape_cast %335 : vector<16xf32> to vector<16x1xf32>
    %cst_112 = arith.constant 3.200000e+01 : f32
    %337 = vector.broadcast %cst_112 : f32 to vector<16x1xf32>
    %338 = arith.divf %336, %337 : vector<16x1xf32>
    %339 = arith.mulf %333, %333 : vector<16x1xf32>
    %340 = arith.subf %338, %339 : vector<16x1xf32>
    %cst_113 = arith.constant 0.000000e+00 : f32
    %341 = vector.broadcast %cst_113 : f32 to vector<16x1xf32>
    %342 = arith.maximumf %340, %341 : vector<16x1xf32>
    %343 = vector.broadcast %333 : vector<16x1xf32> to vector<16x32xf32>
    %344 = arith.subf %329, %343 : vector<16x32xf32>
    %cst_114 = arith.constant 9.99999974E-6 : f32
    %345 = vector.broadcast %cst_114 : f32 to vector<16x1xf32>
    %346 = arith.addf %342, %345 : vector<16x1xf32>
    %347 = math.rsqrt %346 : vector<16x1xf32>
    %348 = vector.broadcast %347 : vector<16x1xf32> to vector<16x32xf32>
    %349 = arith.mulf %344, %348 : vector<16x32xf32>
    %350 = vector.broadcast %306 : vector<1x32xf32> to vector<16x32xf32>
    %351 = arith.mulf %349, %350 : vector<16x32xf32>
    %352 = vector.broadcast %307 : vector<1x32xf32> to vector<16x32xf32>
    %353 = arith.addf %351, %352 : vector<16x32xf32>
    %cst_115 = arith.constant dense<0.000000e+00> : vector<16x64xf32>
    %354 = tpu.matmul %353, %300, %cst_115 {dimension_numbers = #tpu.dot_dimension_numbers<[1], [0], [0], [1], [0, 0, 1, 1], [], []>} : vector<16x32xf32>, vector<32x64xf32>, vector<16x64xf32> -> vector<16x64xf32>
    %355 = vector.broadcast %304 : vector<1x64xf32> to vector<16x64xf32>
    %356 = arith.addf %354, %355 : vector<16x64xf32>
    %cst_116 = arith.constant 0.000000e+00 : f32
    %357 = vector.broadcast %cst_116 : f32 to vector<16x64xf32>
    %358 = arith.maximumf %356, %357 : vector<16x64xf32>
    %cst_117 = arith.constant dense<0.000000e+00> : vector<16x32xf32>
    %359 = tpu.matmul %358, %301, %cst_117 {dimension_numbers = #tpu.dot_dimension_numbers<[1], [1], [0], [0], [0, 0, 1, 0], [], []>} : vector<16x64xf32>, vector<32x64xf32>, vector<16x32xf32> -> vector<16x32xf32>
    %360 = vector.broadcast %305 : vector<1x32xf32> to vector<16x32xf32>
    %361 = arith.addf %359, %360 : vector<16x32xf32>
    %362 = arith.addf %353, %361 : vector<16x32xf32>
    %cst_118 = arith.constant dense<0.000000e+00> : vector<16xf32>
    %363 = vector.multi_reduction <add>, %362, %cst_118 [1] : vector<16x32xf32> to vector<16xf32>
    %364 = vector.shape_cast %363 : vector<16xf32> to vector<16x1xf32>
    %cst_119 = arith.constant 3.200000e+01 : f32
    %365 = vector.broadcast %cst_119 : f32 to vector<16x1xf32>
    %366 = arith.divf %364, %365 : vector<16x1xf32>
    %367 = arith.mulf %362, %362 : vector<16x32xf32>
    %cst_120 = arith.constant dense<0.000000e+00> : vector<16xf32>
    %368 = vector.multi_reduction <add>, %367, %cst_120 [1] : vector<16x32xf32> to vector<16xf32>
    %369 = vector.shape_cast %368 : vector<16xf32> to vector<16x1xf32>
    %cst_121 = arith.constant 3.200000e+01 : f32
    %370 = vector.broadcast %cst_121 : f32 to vector<16x1xf32>
    %371 = arith.divf %369, %370 : vector<16x1xf32>
    %372 = arith.mulf %366, %366 : vector<16x1xf32>
    %373 = arith.subf %371, %372 : vector<16x1xf32>
    %cst_122 = arith.constant 0.000000e+00 : f32
    %374 = vector.broadcast %cst_122 : f32 to vector<16x1xf32>
    %375 = arith.maximumf %373, %374 : vector<16x1xf32>
    %376 = vector.broadcast %366 : vector<16x1xf32> to vector<16x32xf32>
    %377 = arith.subf %362, %376 : vector<16x32xf32>
    %cst_123 = arith.constant 9.99999974E-6 : f32
    %378 = vector.broadcast %cst_123 : f32 to vector<16x1xf32>
    %379 = arith.addf %375, %378 : vector<16x1xf32>
    %380 = math.rsqrt %379 : vector<16x1xf32>
    %381 = vector.broadcast %380 : vector<16x1xf32> to vector<16x32xf32>
    %382 = arith.mulf %377, %381 : vector<16x32xf32>
    %383 = vector.broadcast %308 : vector<1x32xf32> to vector<16x32xf32>
    %384 = arith.mulf %382, %383 : vector<16x32xf32>
    %385 = vector.broadcast %309 : vector<1x32xf32> to vector<16x32xf32>
    %386 = arith.addf %384, %385 : vector<16x32xf32>
    %cst_124 = arith.constant dense<0.000000e+00> : vector<2x32xf32>
    %387 = tpu.matmul %1, %386, %cst_124 {dimension_numbers = #tpu.dot_dimension_numbers<[1], [0], [0], [1], [0, 0, 1, 1], [], []>} : vector<2x16xf32>, vector<16x32xf32>, vector<2x32xf32> -> vector<2x32xf32>
    %c0_125 = arith.constant 0 : index
    %c0_126 = arith.constant 0 : index
    %388 = vector.load %arg7[%c0_125, %c0_126] : memref<50x32xf32, #tpu.memory_space<vmem>>, vector<32x16xf32>
    %c32 = arith.constant 32 : index
    %c0_127 = arith.constant 0 : index
    %389 = vector.load %arg7[%c32, %c0_127] : memref<50x32xf32, #tpu.memory_space<vmem>>, vector<16x4xf32>
    %c48 = arith.constant 48 : index
    %c0_128 = arith.constant 0 : index
    %390 = vector.load %arg7[%c48, %c0_128] : memref<50x32xf32, #tpu.memory_space<vmem>>, vector<1x16xf32>
    %c49 = arith.constant 49 : index
    %c0_129 = arith.constant 0 : index
    %391 = vector.load %arg7[%c49, %c0_129] : memref<50x32xf32, #tpu.memory_space<vmem>>, vector<1x4xf32>
    %cst_130 = arith.constant dense<0.000000e+00> : vector<2x16xf32>
    %392 = tpu.matmul %387, %388, %cst_130 {dimension_numbers = #tpu.dot_dimension_numbers<[1], [0], [0], [1], [0, 0, 1, 1], [], []>} : vector<2x32xf32>, vector<32x16xf32>, vector<2x16xf32> -> vector<2x16xf32>
    %393 = vector.broadcast %390 : vector<1x16xf32> to vector<2x16xf32>
    %394 = arith.addf %392, %393 : vector<2x16xf32>
    %cst_131 = arith.constant 0.000000e+00 : f32
    %395 = vector.broadcast %cst_131 : f32 to vector<2x16xf32>
    %396 = arith.maximumf %394, %395 : vector<2x16xf32>
    %cst_132 = arith.constant dense<0.000000e+00> : vector<2x4xf32>
    %397 = tpu.matmul %396, %389, %cst_132 {dimension_numbers = #tpu.dot_dimension_numbers<[1], [0], [0], [1], [0, 0, 1, 1], [], []>} : vector<2x16xf32>, vector<16x4xf32>, vector<2x4xf32> -> vector<2x4xf32>
    %398 = vector.broadcast %391 : vector<1x4xf32> to vector<2x4xf32>
    %399 = arith.addf %397, %398 : vector<2x4xf32>
    %c0_133 = arith.constant 0 : index
    %c0_134 = arith.constant 0 : index
    %400 = vector.load %arg8[%c0_133, %c0_134] : memref<2x4xf32, #tpu.memory_space<vmem>>, vector<2x4xf32>
    tpu.vector_store %arg8[%c0_133, %c0_134], %399 {strides = array<i32>} : memref<2x4xf32, #tpu.memory_space<vmem>>, vector<2x4xf32>,
    return
  }
  func.func @transform_0(%arg0: i32) -> (i32, i32) {
    %c0_i32 = arith.constant 0 : i32
    %c0_i32_0 = arith.constant 0 : i32
    %c0_i32_1 = arith.constant 0 : i32
    return %c0_i32, %c0_i32_0 : i32, i32
  }
  func.func @transform_1(%arg0: i32) -> (i32, i32, i32) {
    %c0_i32 = arith.constant 0 : i32
    %c0_i32_0 = arith.constant 0 : i32
    %c0_i32_1 = arith.constant 0 : i32
    %c0_i32_2 = arith.constant 0 : i32
    return %c0_i32, %c0_i32_0, %c0_i32_1 : i32, i32, i32
  }
  func.func @transform_2(%arg0: i32) -> (i32, i32, i32) {
    %c0_i32 = arith.constant 0 : i32
    %c0_i32_0 = arith.constant 0 : i32
    %c0_i32_1 = arith.constant 0 : i32
    %c0_i32_2 = arith.constant 0 : i32
    return %c0_i32, %c0_i32_0, %c0_i32_1 : i32, i32, i32
  }
  func.func @transform_3(%arg0: i32) -> (i32, i32, i32) {
    %c0_i32 = arith.constant 0 : i32
    %c0_i32_0 = arith.constant 0 : i32
    %c0_i32_1 = arith.constant 0 : i32
    %c0_i32_2 = arith.constant 0 : i32
    return %c0_i32, %c0_i32_0, %c0_i32_1 : i32, i32, i32
  }
  func.func @transform_4(%arg0: i32) -> (i32, i32) {
    %c0_i32 = arith.constant 0 : i32
    %c0_i32_0 = arith.constant 0 : i32
    %c0_i32_1 = arith.constant 0 : i32
    return %c0_i32, %c0_i32_0 : i32, i32
  }
  func.func @transform_5(%arg0: i32) -> (i32, i32) {
    %c0_i32 = arith.constant 0 : i32
    %c0_i32_0 = arith.constant 0 : i32
    %c0_i32_1 = arith.constant 0 : i32
    return %c0_i32, %c0_i32_0 : i32, i32
  }
  func.func @transform_6(%arg0: i32) -> (i32, i32) {
    %c0_i32 = arith.constant 0 : i32
    %c0_i32_0 = arith.constant 0 : i32
    %c0_i32_1 = arith.constant 0 : i32
    return %c0_i32, %c0_i32_0 : i32, i32
  }
  func.func @transform_7(%arg0: i32) -> (i32, i32) {
    %c0_i32 = arith.constant 0 : i32
    %c0_i32_0 = arith.constant 0 : i32
    %c0_i32_1 = arith.constant 0 : i32
    return %c0_i32, %c0_i32_0 : i32, i32
  }
}

</mosaic_0001>

<llo_original>
// kernel: tpu_custom_call.1
$region0: #{tpu_custom_call.1}
  #allocation0 [shape = 'u32[]', space=smem, size = 0x4, offset = 0x4, fixed_abs, tag = 'smem constant byte address 0x4 - core index']
  #allocation1 [shape = 'u32[144,128]{1,0:T(1,128)}', space=vmem, size = 0x12000, scoped, tag = 'internal scratch']
  %s0 = inlined_call_operand.vmem [shape: f32[16,32], index: 0, kind: input, shape index: {}]
  %s1 = inlined_call_operand.vmem [shape: f32[4,32,128], index: 1, kind: input, shape index: {}]
  %s2 = inlined_call_operand.hbm [shape: f32[4,32,128], index: 2, kind: input, shape index: {}]
  %s3 = inlined_call_operand.vmem [shape: f32[4,8,128], index: 3, kind: input, shape index: {}]
  %s4 = inlined_call_operand.vmem [shape: f32[18,128], index: 4, kind: input, shape index: {}]
  %s5 = inlined_call_operand.vmem [shape: f32[128,32], index: 5, kind: input, shape index: {}]
  %s6 = inlined_call_operand.vmem [shape: f32[50,32], index: 6, kind: input, shape index: {}]
  %s7 = inlined_call_operand.hbm [shape: f32[2,4], index: 7, kind: output, shape index: {}]
  %s8 = sld [smem:[#allocation0]]
  $region42: #{tpu_custom_call.1} parent=0
    _
  %s10 = ssub.s32 1, %s8
  %s11 = scalar_select 0, %s10, %s8
  $region1: #{tpu_custom_call.1} parent=0
    #allocation2 [shape = 'u8[65536]{0}', space=vmem, size = 0x10000, scoped, tag = 'input window, operand 2, single buffered']
    #allocation3 [shape = 's32[1]{0}', space=sflag, size = 0x4, scoped, tag = 'scoped memory for tpu_custom_call.1']
    #allocation4 [shape = 's32[1]{0}', space=sflag, size = 0x4, scoped, tag = 'scoped memory for tpu_custom_call.1']
    #allocation5 [shape = 'u8[1024]{0}', space=vmem, size = 0x400, scoped, tag = 'output window, operand 0, single buffered']
    %12 = vsyncpa [#allocation3], 0
    %13 = vsyncpa [#allocation4], 0
    // Predicated region
    $region2: #{tpu_custom_call.1} parent=1 // pred_check
      _
    $region3: #{tpu_custom_call.1} parent=1 // pred_check_branch
      %15 = sbr.rel (0) target = $region5
    $region4: #{tpu_custom_call.1} parent=1 // pred_region
      _
    $region5: #{tpu_custom_call.1} parent=1 // pred_fallthru
      _
    // Predicated region
    $region6: #{tpu_custom_call.1} parent=1 // pred_check
      _
    $region7: #{tpu_custom_call.1} parent=1 // pred_check_branch
      %17 = sbr.rel (0) target = $region9
    $region8: #{tpu_custom_call.1} parent=1 // pred_region
      _
    $region9: #{tpu_custom_call.1} parent=1 // pred_fallthru
      _
    // Predicated region
    $region10: #{tpu_custom_call.1} parent=1 // pred_check
      _
    $region11: #{tpu_custom_call.1} parent=1 // pred_check_branch
      %19 = sbr.rel (0) target = $region13
    $region12: #{tpu_custom_call.1} parent=1 // pred_region
      %s21 = ssub.s32 2048, 2048
      %22 = vsyncadd [#allocation3], %s21
      %s23 = sshll.u32 [#allocation2], 4
      %s24 = int_to_ptr.vmem [resolvable:$true] %s23
      %29 = dma.hbm_to_vmem [thread:$0]  %s2, 2048, %s24, [#allocation3], 128, 128, 8
    $region13: #{tpu_custom_call.1} parent=1 // pred_fallthru
      _
    // Predicated region
    $region14: #{tpu_custom_call.1} parent=1 // pred_check
      _
    $region15: #{tpu_custom_call.1} parent=1 // pred_check_branch
      %31 = sbr.rel (0) target = $region17
    $region16: #{tpu_custom_call.1} parent=1 // pred_region
      _
    $region17: #{tpu_custom_call.1} parent=1 // pred_fallthru
      _
    // Predicated region
    $region18: #{tpu_custom_call.1} parent=1 // pred_check
      _
    $region19: #{tpu_custom_call.1} parent=1 // pred_check_branch
      %33 = sbr.rel (0) target = $region21
    $region20: #{tpu_custom_call.1} parent=1 // pred_region
      _
    $region21: #{tpu_custom_call.1} parent=1 // pred_fallthru
      _
    // Predicated region
    $region22: #{tpu_custom_call.1} parent=1 // pred_check
      _
    $region23: #{tpu_custom_call.1} parent=1 // pred_check_branch
      %35 = sbr.rel (0) target = $region25
    $region24: #{tpu_custom_call.1} parent=1 // pred_region
      _
    $region25: #{tpu_custom_call.1} parent=1 // pred_fallthru
      _
    // Predicated region
    $region26: #{tpu_custom_call.1} parent=1 // pred_check
      _
    $region27: #{tpu_custom_call.1} parent=1 // pred_check_branch
      %37 = sbr.rel (0) target = $region29
    $region28: #{tpu_custom_call.1} parent=1 // pred_region
      _
    $region29: #{tpu_custom_call.1} parent=1 // pred_fallthru
      _
    // Predicated region
    $region30: #{tpu_custom_call.1} parent=1 // pred_check
      _
    $region31: #{tpu_custom_call.1} parent=1 // pred_check_branch
      %39 = sbr.rel (0) target = $region33
    $region32: #{tpu_custom_call.1} parent=1 // pred_region
      %40 = dma.done [#allocation3], 2048
    $region33: #{tpu_custom_call.1} parent=1 // pred_fallthru
      _
    %v41 = vld [vmem:[%s4] sm:$0xff]
    %v42 = vld [vmem:[%s4 + $0x8] sm:$0xff]
    %v43 = vld [vmem:[%s4 + $0x10] sm:$0x3]
    %v44 = vld [vmem:[%s0] sm:$0xff]
    %v45 = vld [vmem:[%s0 + $0x8] sm:$0xff]
    %v46 = vld [vmem:[%s1] sm:$0xff]
    %v47 = vld [vmem:[%s1 + $0x8] sm:$0xff]
    %v48 = vld [vmem:[%s1 + $0x10] sm:$0xff]
    %v49 = vld [vmem:[%s1 + $0x18] sm:$0xff]
    %v50 = vld [vmem:[#allocation2] sm:$0xff]
    %v51 = vld [vmem:[#allocation2 + $0x8] sm:$0xff]
    %v52 = vld [vmem:[#allocation2 + $0x10] sm:$0xff]
    %v53 = vld [vmem:[#allocation2 + $0x18] sm:$0xff]
    %v54 = vld [vmem:[%s3] sm:$0xff]
    %v55 = vld [vmem:[%s5] sm:$0xff]
    %v56 = vld [vmem:[%s5 + $0x8] sm:$0xff]
    %v57 = vld [vmem:[%s5 + $0x10] sm:$0xff]
    %v58 = vld [vmem:[%s5 + $0x18] sm:$0xff]
    %v59 = vld [vmem:[%s5 + $0x20] sm:$0xff]
    %v60 = vld [vmem:[%s5 + $0x28] sm:$0xff]
    %v61 = vld [vmem:[%s5 + $0x30] sm:$0xff]
    %v62 = vld [vmem:[%s5 + $0x38] sm:$0xff]
    %v63 = vld [vmem:[%s5 + $0x40] sm:$0xff]
    %v64 = vld [vmem:[%s5 + $0x48] sm:$0xff]
    %v65 = vld [vmem:[%s5 + $0x50] sm:$0xff]
    %v66 = vld [vmem:[%s5 + $0x58] sm:$0xff]
    %v67 = vld [vmem:[%s5 + $0x60] sm:$0xff]
    %v68 = vld [vmem:[%s5 + $0x68] sm:$0xff]
    %v69 = vld [vmem:[%s5 + $0x70] sm:$0xff]
    %v70 = vld [vmem:[%s5 + $0x78] sm:$0xff]
    %v71 = vlaneseq
    %v72 = vshrl.u32 %v71, 7
    %v73 = vsub.s32 0, %v72
    %v74 = vrot.slane %v54, %v73
    %vm75 = vcmask 261120
    %v77 = vsel %vm75, %v44, 0
    %v80 = vsel %vm75, %v45, 0
    %82 = vmatprep.subr.mxu0 0.0
    %83 = vmatpush1.msra.mxu0 %v46
    %84 = vmatprep.subr.mxu0 0.0
    %85 = vmatpush1.msra.mxu0 %v47
    %86 = vmatprep.subr.mxu0 0.0
    %87 = vmatpush1.msra.mxu0 %v48
    %88 = vmatprep.subr.mxu0 0.0
    %89 = vmatpush1.msra.mxu0 %v49
    %90 = vmatprep.subr.mxu0 0.0
    %91 = vmatpush1.msra.mxu0 0.0
    %92 = vmatprep.subr.mxu0 0.0
    %93 = vmatpush1.msra.mxu0 0.0
    %94 = vmatprep.subr.mxu0 0.0
    %95 = vmatpush1.msra.mxu0 0.0
    %96 = vmatprep.subr.mxu0 0.0
    %97 = vmatpush1.msra.mxu0 0.0
    %98 = vmatprep.subr.mxu0 0.0
    %99 = vmatpush1.msra.mxu0 0.0
    %100 = vmatprep.subr.mxu0 0.0
    %101 = vmatpush1.msra.mxu0 0.0
    %102 = vmatprep.subr.mxu0 0.0
    %103 = vmatpush1.msra.mxu0 0.0
    %104 = vmatprep.subr.mxu0 0.0
    %105 = vmatpush1.msra.mxu0 0.0
    %106 = vmatprep.subr.mxu0 0.0
    %107 = vmatpush1.msra.mxu0 0.0
    %108 = vmatprep.subr.mxu0 0.0
    %109 = vmatpush1.msra.mxu0 0.0
    %110 = vmatprep.subr.mxu0 0.0
    %111 = vmatpush1.msra.mxu0 0.0
    %112 = vmatprep.subr.mxu0 0.0
    %113 = vmatpush1.msra.mxu0 0.0
    %114 = vmatprep.subr.mxu0 0.0
    %115 = vmatpush1.msra.mxu0 0.0
    %116 = vmatprep.subr.mxu0 0.0
    %117 = vmatpush1.msra.mxu0 0.0
    %118 = vmatprep.subr.mxu0 0.0
    %119 = vmatpush1.msra.mxu0 0.0
    %120 = vmatprep.subr.mxu0 0.0
    %121 = vmatpush1.msra.mxu0 0.0
    %122 = vmatprep.subr.mxu0 0.0
    %123 = vmatpush1.msra.mxu0 0.0
    %124 = vmatprep.subr.mxu0 0.0
    %125 = vmatpush1.msra.mxu0 0.0
    %126 = vmatprep.subr.mxu0 0.0
    %127 = vmatpush1.msra.mxu0 0.0
    %128 = vmatprep.subr.mxu0 0.0
    %129 = vmatpush1.msra.mxu0 0.0
    %130 = vmatprep.subr.mxu0 0.0
    %131 = vmatpush1.msra.mxu0 0.0
    %132 = vmatprep.subr.mxu0 0.0
    %133 = vmatpush1.msra.mxu0 0.0
    %134 = vmatprep.subr.mxu0 0.0
    %135 = vmatpush1.msra.mxu0 0.0
    %136 = vmatprep.subr.mxu0 0.0
    %137 = vmatpush1.msra.mxu0 0.0
    %138 = vmatprep.subr.mxu0 0.0
    %139 = vmatpush1.msra.mxu0 0.0
    %140 = vmatprep.subr.mxu0 0.0
    %141 = vmatpush1.msra.mxu0 0.0
    %142 = vmatprep.subr.mxu0 0.0
    %143 = vmatpush1.msra.mxu0 0.0
    %144 = vmatprep.subr.mxu0 0.0
    %145 = vmatpush1.msra.mxu0 0.0
    %146 = vmatprep.mubr.f32.mxu0 0.0
    %147 = vmatmul.mubr.f32.gmra.mrb[0].mxu0 %v77
    %v148 = vpop.f32.mrb[0].mxu0
    %v149 = vadd.f32 %v74, %v148
    %v150 = vpop.f32.mrb[0].mxu0
    %151 = vmatprep.mubr.f32.mxu0 0.0
    %152 = vmatmul.mubr.f32.gmra.mrb[0].mxu0 %v80
    %v153 = vpop.f32.mrb[0].mxu0
    %v154 = vadd.f32 %v74, %v153
    %v155 = vpop.f32.mrb[0].mxu0
    %156 = vdwg.mxu0
    %173 = vrot.lane.b32.xlu0 %v55, 32
    %v174 = vpop.permute.xlu0 %173
    %175 = vrot.lane.b32.xlu0 %v56, 32
    %v176 = vpop.permute.xlu0 %175
    %177 = vrot.lane.b32.xlu0 %v57, 32
    %v178 = vpop.permute.xlu0 %177
    %179 = vrot.lane.b32.xlu0 %v58, 32
    %v180 = vpop.permute.xlu0 %179
    %181 = vrot.lane.b32.xlu0 %v59, 32
    %v182 = vpop.permute.xlu0 %181
    %183 = vrot.lane.b32.xlu0 %v60, 32
    %v184 = vpop.permute.xlu0 %183
    %185 = vrot.lane.b32.xlu0 %v61, 32
    %v186 = vpop.permute.xlu0 %185
    %187 = vrot.lane.b32.xlu0 %v62, 32
    %v188 = vpop.permute.xlu0 %187
    %189 = vrot.lane.b32.xlu0 %v63, 32
    %v190 = vpop.permute.xlu0 %189
    %191 = vrot.lane.b32.xlu0 %v64, 32
    %v192 = vpop.permute.xlu0 %191
    %193 = vrot.lane.b32.xlu0 %v65, 32
    %v194 = vpop.permute.xlu0 %193
    %195 = vrot.lane.b32.xlu0 %v66, 32
    %v196 = vpop.permute.xlu0 %195
    %197 = vrot.lane.b32.xlu0 %v67, 32
    %v198 = vpop.permute.xlu0 %197
    %199 = vrot.lane.b32.xlu0 %v68, 32
    %v200 = vpop.permute.xlu0 %199
    %201 = vrot.lane.b32.xlu0 %v69, 32
    %v202 = vpop.permute.xlu0 %201
    %203 = vrot.lane.b32.xlu0 %v70, 32
    %v204 = vpop.permute.xlu0 %203
    %v221 = vmul.f32 %v149, %v174
    %v222 = vmul.f32 %v154, %v176
    %v223 = vmul.f32 %v149, %v178
    %v224 = vmul.f32 %v154, %v180
    %v225 = vmul.f32 %v149, %v182
    %v226 = vmul.f32 %v154, %v184
    %v227 = vmul.f32 %v149, %v186
    %v228 = vmul.f32 %v154, %v188
    %v229 = vmul.f32 %v149, %v190
    %v230 = vmul.f32 %v154, %v192
    %v231 = vmul.f32 %v149, %v194
    %v232 = vmul.f32 %v154, %v196
    %v233 = vmul.f32 %v149, %v198
    %v234 = vmul.f32 %v154, %v200
    %v235 = vmul.f32 %v149, %v202
    %v236 = vmul.f32 %v154, %v204
    %253 = vrot.lane.b32.xlu0 %v221, 96
    %v254 = vpop.permute.xlu0 %253
    %255 = vrot.lane.b32.xlu0 %v222, 96
    %v256 = vpop.permute.xlu0 %255
    %257 = vrot.lane.b32.xlu0 %v223, 96
    %v258 = vpop.permute.xlu0 %257
    %259 = vrot.lane.b32.xlu0 %v224, 96
    %v260 = vpop.permute.xlu0 %259
    %261 = vrot.lane.b32.xlu0 %v225, 96
    %v262 = vpop.permute.xlu0 %261
    %263 = vrot.lane.b32.xlu0 %v226, 96
    %v264 = vpop.permute.xlu0 %263
    %265 = vrot.lane.b32.xlu0 %v227, 96
    %v266 = vpop.permute.xlu0 %265
    %267 = vrot.lane.b32.xlu0 %v228, 96
    %v268 = vpop.permute.xlu0 %267
    %269 = vrot.lane.b32.xlu0 %v229, 96
    %v270 = vpop.permute.xlu0 %269
    %271 = vrot.lane.b32.xlu0 %v230, 96
    %v272 = vpop.permute.xlu0 %271
    %273 = vrot.lane.b32.xlu0 %v231, 96
    %v274 = vpop.permute.xlu0 %273
    %275 = vrot.lane.b32.xlu0 %v232, 96
    %v276 = vpop.permute.xlu0 %275
    %277 = vrot.lane.b32.xlu0 %v233, 96
    %v278 = vpop.permute.xlu0 %277
    %279 = vrot.lane.b32.xlu0 %v234, 96
    %v280 = vpop.permute.xlu0 %279
    %281 = vrot.lane.b32.xlu0 %v235, 96
    %v282 = vpop.permute.xlu0 %281
    %283 = vrot.lane.b32.xlu0 %v236, 96
    %v284 = vpop.permute.xlu0 %283
    %v286 = vsel %vm75, %v149, 0
    %v289 = vsel %vm75, %v154, 0
    %v291 = vsel %vm75, %v254, 0
    %v293 = vsel %vm75, %v256, 0
    %v295 = vsel %vm75, %v258, 0
    %v297 = vsel %vm75, %v260, 0
    %v299 = vsel %vm75, %v262, 0
    %v301 = vsel %vm75, %v264, 0
    %v303 = vsel %vm75, %v266, 0
    %v305 = vsel %vm75, %v268, 0
    %v307 = vsel %vm75, %v270, 0
    %v309 = vsel %vm75, %v272, 0
    %v311 = vsel %vm75, %v274, 0
    %v313 = vsel %vm75, %v276, 0
    %v315 = vsel %vm75, %v278, 0
    %v317 = vsel %vm75, %v280, 0
    %v319 = vsel %vm75, %v282, 0
    %v321 = vsel %vm75, %v284, 0
    %323 = vmatprep.subr.mxu0 0.0
    %324 = vmatpush1.xpose.msra.mxu0 %v291
    %325 = vmatprep.subr.mxu0 0.0
    %326 = vmatpush1.xpose.msra.mxu0 %v293
    %327 = vmatprep.subr.mxu0 0.0
    %328 = vmatpush1.xpose.msra.mxu0 %v295
    %329 = vmatprep.subr.mxu0 0.0
    %330 = vmatpush1.xpose.msra.mxu0 %v297
    %331 = vmatprep.subr.mxu0 0.0
    %332 = vmatpush1.xpose.msra.mxu0 %v299
    %333 = vmatprep.subr.mxu0 0.0
    %334 = vmatpush1.xpose.msra.mxu0 %v301
    %335 = vmatprep.subr.mxu0 0.0
    %336 = vmatpush1.xpose.msra.mxu0 %v303
    %337 = vmatprep.subr.mxu0 0.0
    %338 = vmatpush1.xpose.msra.mxu0 %v305
    %339 = vmatprep.subr.mxu0 0.0
    %340 = vmatpush1.xpose.msra.mxu0 %v307
    %341 = vmatprep.subr.mxu0 0.0
    %342 = vmatpush1.xpose.msra.mxu0 %v309
    %343 = vmatprep.subr.mxu0 0.0
    %344 = vmatpush1.xpose.msra.mxu0 %v311
    %345 = vmatprep.subr.mxu0 0.0
    %346 = vmatpush1.xpose.msra.mxu0 %v313
    %347 = vmatprep.subr.mxu0 0.0
    %348 = vmatpush1.xpose.msra.mxu0 %v315
    %349 = vmatprep.subr.mxu0 0.0
    %350 = vmatpush1.xpose.msra.mxu0 %v317
    %351 = vmatprep.subr.mxu0 0.0
    %352 = vmatpush1.xpose.msra.mxu0 %v319
    %353 = vmatprep.subr.mxu0 0.0
    %354 = vmatpush1.xpose.msra.mxu0 %v321
    %355 = vmatprep.subr.mxu0 0.0
    %356 = vmatpush1.xpose.msra.mxu0 0.0
    %357 = vmatprep.subr.mxu0 0.0
    %358 = vmatpush1.xpose.msra.mxu0 0.0
    %359 = vmatprep.subr.mxu0 0.0
    %360 = vmatpush1.xpose.msra.mxu0 0.0
    %361 = vmatprep.subr.mxu0 0.0
    %362 = vmatpush1.xpose.msra.mxu0 0.0
    %363 = vmatprep.subr.mxu0 0.0
    %364 = vmatpush1.xpose.msra.mxu0 0.0
    %365 = vmatprep.subr.mxu0 0.0
    %366 = vmatpush1.xpose.msra.mxu0 0.0
    %367 = vmatprep.subr.mxu0 0.0
    %368 = vmatpush1.xpose.msra.mxu0 0.0
    %369 = vmatprep.subr.mxu0 0.0
    %370 = vmatpush1.xpose.msra.mxu0 0.0
    %371 = vmatprep.subr.mxu0 0.0
    %372 = vmatpush1.xpose.msra.mxu0 0.0
    %373 = vmatprep.subr.mxu0 0.0
    %374 = vmatpush1.xpose.msra.mxu0 0.0
    %375 = vmatprep.subr.mxu0 0.0
    %376 = vmatpush1.xpose.msra.mxu0 0.0
    %377 = vmatprep.subr.mxu0 0.0
    %378 = vmatpush1.xpose.msra.mxu0 0.0
    %379 = vmatprep.subr.mxu0 0.0
    %380 = vmatpush1.xpose.msra.mxu0 0.0
    %381 = vmatprep.subr.mxu0 0.0
    %382 = vmatpush1.xpose.msra.mxu0 0.0
    %383 = vmatprep.subr.mxu0 0.0
    %384 = vmatpush1.xpose.msra.mxu0 0.0
    %385 = vmatprep.subr.mxu0 0.0
    %386 = vmatpush1.xpose.msra.mxu0 0.0
    %387 = vmatprep.mubr.f32.mxu0 0.0
    %388 = vmatmul.mubr.f32.gmra.mrb[0].mxu0 %v286
    %v389 = vpop.f32.mrb[0].mxu0
    %v390 = vadd.f32 %v41, %v389
    %v391 = vpop.f32.mrb[0].mxu0
    %392 = vmatprep.mubr.f32.mxu0 0.0
    %393 = vmatmul.mubr.f32.gmra.mrb[0].mxu0 %v289
    %v394 = vpop.f32.mrb[0].mxu0
    %v395 = vadd.f32 %v42, %v394
    %v396 = vpop.f32.mrb[0].mxu0
    %397 = vdwg.mxu0
    %v398 = vmul.f32 %v390, 1.442695
    %v399 = vpow.pop %v398
    %v400 = vmul.f32 %v395, 1.442695
    %v401 = vpow.pop %v400
    %402 = vmatprep.subr.mxu0 0.0
    %403 = vmatpush1.msra.mxu0 %v55
    %404 = vmatprep.subr.mxu0 0.0
    %405 = vmatpush1.msra.mxu0 %v56
    %406 = vmatprep.subr.mxu0 0.0
    %407 = vmatpush1.msra.mxu0 %v57
    %408 = vmatprep.subr.mxu0 0.0
    %409 = vmatpush1.msra.mxu0 %v58
    %410 = vmatprep.subr.mxu0 0.0
    %411 = vmatpush1.msra.mxu0 %v59
    %412 = vmatprep.subr.mxu0 0.0
    %413 = vmatpush1.msra.mxu0 %v60
    %414 = vmatprep.subr.mxu0 0.0
    %415 = vmatpush1.msra.mxu0 %v61
    %416 = vmatprep.subr.mxu0 0.0
    %417 = vmatpush1.msra.mxu0 %v62
    %418 = vmatprep.subr.mxu0 0.0
    %419 = vmatpush1.msra.mxu0 %v63
    %420 = vmatprep.subr.mxu0 0.0
    %421 = vmatpush1.msra.mxu0 %v64
    %422 = vmatprep.subr.mxu0 0.0
    %423 = vmatpush1.msra.mxu0 %v65
    %424 = vmatprep.subr.mxu0 0.0
    %425 = vmatpush1.msra.mxu0 %v66
    %426 = vmatprep.subr.mxu0 0.0
    %427 = vmatpush1.msra.mxu0 %v67
    %428 = vmatprep.subr.mxu0 0.0
    %429 = vmatpush1.msra.mxu0 %v68
    %430 = vmatprep.subr.mxu0 0.0
    %431 = vmatpush1.msra.mxu0 %v69
    %432 = vmatprep.subr.mxu0 0.0
    %433 = vmatpush1.msra.mxu0 %v70
    %434 = vmatprep.subr.mxu0 0.0
    %435 = vmatpush1.msra.mxu0 0.0
    %436 = vmatprep.subr.mxu0 0.0
    %437 = vmatpush1.msra.mxu0 0.0
    %438 = vmatprep.subr.mxu0 0.0
    %439 = vmatpush1.msra.mxu0 0.0
    %440 = vmatprep.subr.mxu0 0.0
    %441 = vmatpush1.msra.mxu0 0.0
    %442 = vmatprep.subr.mxu0 0.0
    %443 = vmatpush1.msra.mxu0 0.0
    %444 = vmatprep.subr.mxu0 0.0
    %445 = vmatpush1.msra.mxu0 0.0
    %446 = vmatprep.subr.mxu0 0.0
    %447 = vmatpush1.msra.mxu0 0.0
    %448 = vmatprep.subr.mxu0 0.0
    %449 = vmatpush1.msra.mxu0 0.0
    %450 = vmatprep.subr.mxu0 0.0
    %451 = vmatpush1.msra.mxu0 0.0
    %452 = vmatprep.subr.mxu0 0.0
    %453 = vmatpush1.msra.mxu0 0.0
    %454 = vmatprep.subr.mxu0 0.0
    %455 = vmatpush1.msra.mxu0 0.0
    %456 = vmatprep.subr.mxu0 0.0
    %457 = vmatpush1.msra.mxu0 0.0
    %458 = vmatprep.subr.mxu0 0.0
    %459 = vmatpush1.msra.mxu0 0.0
    %460 = vmatprep.subr.mxu0 0.0
    %461 = vmatpush1.msra.mxu0 0.0
    %462 = vmatprep.subr.mxu0 0.0
    %463 = vmatpush1.msra.mxu0 0.0
    %464 = vmatprep.subr.mxu0 0.0
    %465 = vmatpush1.msra.mxu0 0.0
    %466 = vmatprep.mubr.f32.mxu0 0.0
    %467 = vmatmul.mubr.f32.gmra.mrb[0].mxu0 %v399
    %v468 = vpop.f32.mrb[0].mxu0
    %v469 = vadd.f32 0.0, %v468
    %v470 = vpop.f32.mrb[0].mxu0
    %471 = vmatprep.mubr.f32.mxu0 0.0
    %472 = vmatmul.mubr.f32.gmra.mrb[0].mxu0 %v401
    %v473 = vpop.f32.mrb[0].mxu0
    %v474 = vadd.f32 0.0, %v473
    %v475 = vpop.f32.mrb[0].mxu0
    %476 = vdwg.mxu0
    %477 = vrot.lane.b32.xlu0 %v55, 64
    %v478 = vpop.permute.xlu0 %477
    %479 = vrot.lane.b32.xlu0 %v56, 64
    %v480 = vpop.permute.xlu0 %479
    %481 = vrot.lane.b32.xlu0 %v57, 64
    %v482 = vpop.permute.xlu0 %481
    %483 = vrot.lane.b32.xlu0 %v58, 64
    %v484 = vpop.permute.xlu0 %483
    %485 = vrot.lane.b32.xlu0 %v59, 64
    %v486 = vpop.permute.xlu0 %485
    %487 = vrot.lane.b32.xlu0 %v60, 64
    %v488 = vpop.permute.xlu0 %487
    %489 = vrot.lane.b32.xlu0 %v61, 64
    %v490 = vpop.permute.xlu0 %489
    %491 = vrot.lane.b32.xlu0 %v62, 64
    %v492 = vpop.permute.xlu0 %491
    %493 = vrot.lane.b32.xlu0 %v63, 64
    %v494 = vpop.permute.xlu0 %493
    %495 = vrot.lane.b32.xlu0 %v64, 64
    %v496 = vpop.permute.xlu0 %495
    %497 = vrot.lane.b32.xlu0 %v65, 64
    %v498 = vpop.permute.xlu0 %497
    %499 = vrot.lane.b32.xlu0 %v66, 64
    %v500 = vpop.permute.xlu0 %499
    %501 = vrot.lane.b32.xlu0 %v67, 64
    %v502 = vpop.permute.xlu0 %501
    %503 = vrot.lane.b32.xlu0 %v68, 64
    %v504 = vpop.permute.xlu0 %503
    %505 = vrot.lane.b32.xlu0 %v69, 64
    %v506 = vpop.permute.xlu0 %505
    %507 = vrot.lane.b32.xlu0 %v70, 64
    %v508 = vpop.permute.xlu0 %507
    %v525 = vmul.f32 %v149, %v478
    %v526 = vmul.f32 %v154, %v480
    %v527 = vmul.f32 %v149, %v482
    %v528 = vmul.f32 %v154, %v484
    %v529 = vmul.f32 %v149, %v486
    %v530 = vmul.f32 %v154, %v488
    %v531 = vmul.f32 %v149, %v490
    %v532 = vmul.f32 %v154, %v492
    %v533 = vmul.f32 %v149, %v494
    %v534 = vmul.f32 %v154, %v496
    %v535 = vmul.f32 %v149, %v498
    %v536 = vmul.f32 %v154, %v500
    %v537 = vmul.f32 %v149, %v502
    %v538 = vmul.f32 %v154, %v504
    %v539 = vmul.f32 %v149, %v506
    %v540 = vmul.f32 %v154, %v508
    %557 = vrot.lane.b32.xlu0 %v525, 64
    %v558 = vpop.permute.xlu0 %557
    %559 = vrot.lane.b32.xlu0 %v526, 64
    %v560 = vpop.permute.xlu0 %559
    %561 = vrot.lane.b32.xlu0 %v527, 64
    %v562 = vpop.permute.xlu0 %561
    %563 = vrot.lane.b32.xlu0 %v528, 64
    %v564 = vpop.permute.xlu0 %563
    %565 = vrot.lane.b32.xlu0 %v529, 64
    %v566 = vpop.permute.xlu0 %565
    %567 = vrot.lane.b32.xlu0 %v530, 64
    %v568 = vpop.permute.xlu0 %567
    %569 = vrot.lane.b32.xlu0 %v531, 64
    %v570 = vpop.permute.xlu0 %569
    %571 = vrot.lane.b32.xlu0 %v532, 64
    %v572 = vpop.permute.xlu0 %571
    %573 = vrot.lane.b32.xlu0 %v533, 64
    %v574 = vpop.permute.xlu0 %573
    %575 = vrot.lane.b32.xlu0 %v534, 64
    %v576 = vpop.permute.xlu0 %575
    %577 = vrot.lane.b32.xlu0 %v535, 64
    %v578 = vpop.permute.xlu0 %577
    %579 = vrot.lane.b32.xlu0 %v536, 64
    %v580 = vpop.permute.xlu0 %579
    %581 = vrot.lane.b32.xlu0 %v537, 64
    %v582 = vpop.permute.xlu0 %581
    %583 = vrot.lane.b32.xlu0 %v538, 64
    %v584 = vpop.permute.xlu0 %583
    %585 = vrot.lane.b32.xlu0 %v539, 64
    %v586 = vpop.permute.xlu0 %585
    %587 = vrot.lane.b32.xlu0 %v540, 64
    %v588 = vpop.permute.xlu0 %587
    %605 = vmatprep.subr.mxu0 0.0
    %606 = vmatpush1.msra.mxu0 %v558
    %607 = vmatprep.subr.mxu0 0.0
    %608 = vmatpush1.msra.mxu0 %v560
    %609 = vmatprep.subr.mxu0 0.0
    %610 = vmatpush1.msra.mxu0 %v562
    %611 = vmatprep.subr.mxu0 0.0
    %612 = vmatpush1.msra.mxu0 %v564
    %613 = vmatprep.subr.mxu0 0.0
    %614 = vmatpush1.msra.mxu0 %v566
    %615 = vmatprep.subr.mxu0 0.0
    %616 = vmatpush1.msra.mxu0 %v568
    %617 = vmatprep.subr.mxu0 0.0
    %618 = vmatpush1.msra.mxu0 %v570
    %619 = vmatprep.subr.mxu0 0.0
    %620 = vmatpush1.msra.mxu0 %v572
    %621 = vmatprep.subr.mxu0 0.0
    %622 = vmatpush1.msra.mxu0 %v574
    %623 = vmatprep.subr.mxu0 0.0
    %624 = vmatpush1.msra.mxu0 %v576
    %625 = vmatprep.subr.mxu0 0.0
    %626 = vmatpush1.msra.mxu0 %v578
    %627 = vmatprep.subr.mxu0 0.0
    %628 = vmatpush1.msra.mxu0 %v580
    %629 = vmatprep.subr.mxu0 0.0
    %630 = vmatpush1.msra.mxu0 %v582
    %631 = vmatprep.subr.mxu0 0.0
    %632 = vmatpush1.msra.mxu0 %v584
    %633 = vmatprep.subr.mxu0 0.0
    %634 = vmatpush1.msra.mxu0 %v586
    %635 = vmatprep.subr.mxu0 0.0
    %636 = vmatpush1.msra.mxu0 %v588
    %637 = vmatprep.subr.mxu0 0.0
    %638 = vmatpush1.msra.mxu0 0.0
    %639 = vmatprep.subr.mxu0 0.0
    %640 = vmatpush1.msra.mxu0 0.0
    %641 = vmatprep.subr.mxu0 0.0
    %642 = vmatpush1.msra.mxu0 0.0
    %643 = vmatprep.subr.mxu0 0.0
    %644 = vmatpush1.msra.mxu0 0.0
    %645 = vmatprep.subr.mxu0 0.0
    %646 = vmatpush1.msra.mxu0 0.0
    %647 = vmatprep.subr.mxu0 0.0
    %648 = vmatpush1.msra.mxu0 0.0
    %649 = vmatprep.subr.mxu0 0.0
    %650 = vmatpush1.msra.mxu0 0.0
    %651 = vmatprep.subr.mxu0 0.0
    %652 = vmatpush1.msra.mxu0 0.0
    %653 = vmatprep.subr.mxu0 0.0
    %654 = vmatpush1.msra.mxu0 0.0
    %655 = vmatprep.subr.mxu0 0.0
    %656 = vmatpush1.msra.mxu0 0.0
    %657 = vmatprep.subr.mxu0 0.0
    %658 = vmatpush1.msra.mxu0 0.0
    %659 = vmatprep.subr.mxu0 0.0
    %660 = vmatpush1.msra.mxu0 0.0
    %661 = vmatprep.subr.mxu0 0.0
    %662 = vmatpush1.msra.mxu0 0.0
    %663 = vmatprep.subr.mxu0 0.0
    %664 = vmatpush1.msra.mxu0 0.0
    %665 = vmatprep.subr.mxu0 0.0
    %666 = vmatpush1.msra.mxu0 0.0
    %667 = vmatprep.subr.mxu0 0.0
    %668 = vmatpush1.msra.mxu0 0.0
    %669 = vmatprep.mubr.f32.mxu0 0.0
    %670 = vmatmul.mubr.f32.gmra.mrb[0].mxu0 %v399
    %v671 = vpop.f32.mrb[0].mxu0
    %v672 = vadd.f32 0.0, %v671
    %v673 = vpop.f32.mrb[0].mxu0
    %674 = vmatprep.mubr.f32.mxu0 0.0
    %675 = vmatmul.mubr.f32.gmra.mrb[0].mxu0 %v401
    %v676 = vpop.f32.mrb[0].mxu0
    %v677 = vadd.f32 0.0, %v676
    %v678 = vpop.f32.mrb[0].mxu0
    %679 = vdwg.mxu0
    %v680 = vrcp.pop %v469
    %v681 = vmul.f32 %v672, %v680
    %v682 = vrcp.pop %v474
    %v683 = vmul.f32 %v677, %v682
    %v684 = vlaneseq
    %v685 = vshrl.u32 %v684, 7
    %v686 = vsub.s32 1, %v685
    %v687 = vrot.slane %v54, %v686
    %692 = vrot.lane.b32.xlu0 %v46, 32
    %v693 = vpop.permute.xlu0 %692
    %694 = vrot.lane.b32.xlu0 %v47, 32
    %v695 = vpop.permute.xlu0 %694
    %696 = vrot.lane.b32.xlu0 %v48, 32
    %v697 = vpop.permute.xlu0 %696
    %698 = vrot.lane.b32.xlu0 %v49, 32
    %v699 = vpop.permute.xlu0 %698
    %v705 = vsel %vm75, %v681, 0
    %v708 = vsel %vm75, %v683, 0
    %710 = vmatprep.subr.mxu0 0.0
    %711 = vmatpush1.msra.mxu0 %v693
    %712 = vmatprep.subr.mxu0 0.0
    %713 = vmatpush1.msra.mxu0 %v695
    %714 = vmatprep.subr.mxu0 0.0
    %715 = vmatpush1.msra.mxu0 %v697
    %716 = vmatprep.subr.mxu0 0.0
    %717 = vmatpush1.msra.mxu0 %v699
    %718 = vmatprep.subr.mxu0 0.0
    %719 = vmatpush1.msra.mxu0 0.0
    %720 = vmatprep.subr.mxu0 0.0
    %721 = vmatpush1.msra.mxu0 0.0
    %722 = vmatprep.subr.mxu0 0.0
    %723 = vmatpush1.msra.mxu0 0.0
    %724 = vmatprep.subr.mxu0 0.0
    %725 = vmatpush1.msra.mxu0 0.0
    %726 = vmatprep.subr.mxu0 0.0
    %727 = vmatpush1.msra.mxu0 0.0
    %728 = vmatprep.subr.mxu0 0.0
    %729 = vmatpush1.msra.mxu0 0.0
    %730 = vmatprep.subr.mxu0 0.0
    %731 = vmatpush1.msra.mxu0 0.0
    %732 = vmatprep.subr.mxu0 0.0
    %733 = vmatpush1.msra.mxu0 0.0
    %734 = vmatprep.subr.mxu0 0.0
    %735 = vmatpush1.msra.mxu0 0.0
    %736 = vmatprep.subr.mxu0 0.0
    %737 = vmatpush1.msra.mxu0 0.0
    %738 = vmatprep.subr.mxu0 0.0
    %739 = vmatpush1.msra.mxu0 0.0
    %740 = vmatprep.subr.mxu0 0.0
    %741 = vmatpush1.msra.mxu0 0.0
    %742 = vmatprep.subr.mxu0 0.0
    %743 = vmatpush1.msra.mxu0 0.0
    %744 = vmatprep.subr.mxu0 0.0
    %745 = vmatpush1.msra.mxu0 0.0
    %746 = vmatprep.subr.mxu0 0.0
    %747 = vmatpush1.msra.mxu0 0.0
    %748 = vmatprep.subr.mxu0 0.0
    %749 = vmatpush1.msra.mxu0 0.0
    %750 = vmatprep.subr.mxu0 0.0
    %751 = vmatpush1.msra.mxu0 0.0
    %752 = vmatprep.subr.mxu0 0.0
    %753 = vmatpush1.msra.mxu0 0.0
    %754 = vmatprep.subr.mxu0 0.0
    %755 = vmatpush1.msra.mxu0 0.0
    %756 = vmatprep.subr.mxu0 0.0
    %757 = vmatpush1.msra.mxu0 0.0
    %758 = vmatprep.subr.mxu0 0.0
    %759 = vmatpush1.msra.mxu0 0.0
    %760 = vmatprep.subr.mxu0 0.0
    %761 = vmatpush1.msra.mxu0 0.0
    %762 = vmatprep.subr.mxu0 0.0
    %763 = vmatpush1.msra.mxu0 0.0
    %764 = vmatprep.subr.mxu0 0.0
    %765 = vmatpush1.msra.mxu0 0.0
    %766 = vmatprep.subr.mxu0 0.0
    %767 = vmatpush1.msra.mxu0 0.0
    %768 = vmatprep.subr.mxu0 0.0
    %769 = vmatpush1.msra.mxu0 0.0
    %770 = vmatprep.subr.mxu0 0.0
    %771 = vmatpush1.msra.mxu0 0.0
    %772 = vmatprep.subr.mxu0 0.0
    %773 = vmatpush1.msra.mxu0 0.0
    %774 = vmatprep.mubr.f32.mxu0 0.0
    %775 = vmatmul.mubr.f32.gmra.mrb[0].mxu0 %v705
    %v776 = vpop.f32.mrb[0].mxu0
    %v777 = vadd.f32 %v687, %v776
    %v778 = vpop.f32.mrb[0].mxu0
    %779 = vmatprep.mubr.f32.mxu0 0.0
    %780 = vmatmul.mubr.f32.gmra.mrb[0].mxu0 %v708
    %v781 = vpop.f32.mrb[0].mxu0
    %v782 = vadd.f32 %v687, %v781
    %v783 = vpop.f32.mrb[0].mxu0
    %784 = vdwg.mxu0
    %v785 = vadd.f32 %v44, %v777
    %v786 = vadd.f32 %v45, %v782
    %v787 = vsel %vm75, %v785, 0.0
    %788 = vadd.xlane.f32.xlu0 %v787
    %v789 = vpop.xlane.xlu0 %788
    %v790 = vsel %vm75, %v786, 0.0
    %791 = vadd.xlane.f32.xlu0 %v790
    %v792 = vpop.xlane.xlu0 %791
    %v793 = vrcp.pop 32.0
    %v794 = vmul.f32 %v789, %v793
    %v795 = vmul.f32 %v792, %v793
    %v796 = vmul.f32 %v785, %v785
    %v797 = vmul.f32 %v786, %v786
    %v798 = vsel %vm75, %v796, 0.0
    %799 = vadd.xlane.f32.xlu0 %v798
    %v800 = vpop.xlane.xlu0 %799
    %v801 = vsel %vm75, %v797, 0.0
    %802 = vadd.xlane.f32.xlu0 %v801
    %v803 = vpop.xlane.xlu0 %802
    %v804 = vmul.f32 %v800, %v793
    %v805 = vmul.f32 %v803, %v793
    %v806 = vmul.f32 %v794, %v794
    %v807 = vmul.f32 %v795, %v795
    %v808 = vsub.f32 %v804, %v806
    %v809 = vsub.f32 %v805, %v807
    %v810 = vmax.f32 %v808, 0.0
    %v811 = vmax.f32 %v809, 0.0
    %v812 = vsub.f32 %v785, %v794
    %v813 = vsub.f32 %v786, %v795
    %v814 = vadd.f32 %v810, 1e-05
    %v815 = vadd.f32 %v811, 1e-05
    %v816 = vrsqrt.pop %v814
    %v817 = vrsqrt.pop %v815
    %v818 = vmul.f32 %v812, %v816
    %v819 = vmul.f32 %v813, %v817
    %v820 = vlaneseq
    %v821 = vshrl.u32 %v820, 7
    %v822 = vsub.s32 4, %v821
    %v823 = vrot.slane %v54, %v822
    %v824 = vmul.f32 %v818, %v823
    %v825 = vmul.f32 %v819, %v823
    %v826 = vlaneseq
    %v827 = vshrl.u32 %v826, 7
    %v828 = vsub.s32 5, %v827
    %v829 = vrot.slane %v54, %v828
    %v830 = vadd.f32 %v824, %v829
    %v831 = vadd.f32 %v825, %v829
    %v832 = vlaneseq
    %v833 = vshrl.u32 %v832, 7
    %v834 = vsub.s32 2, %v833
    %v835 = vrot.slane %v54, %v834
    %v837 = vsel %vm75, %v830, 0
    %v840 = vsel %vm75, %v831, 0
    %842 = vmatprep.subr.mxu0 0.0
    %843 = vmatpush1.msra.mxu0 %v50
    %844 = vmatprep.subr.mxu0 0.0
    %845 = vmatpush1.msra.mxu0 %v51
    %846 = vmatprep.subr.mxu0 0.0
    %847 = vmatpush1.msra.mxu0 %v52
    %848 = vmatprep.subr.mxu0 0.0
    %849 = vmatpush1.msra.mxu0 %v53
    %850 = vmatprep.subr.mxu0 0.0
    %851 = vmatpush1.msra.mxu0 0.0
    %852 = vmatprep.subr.mxu0 0.0
    %853 = vmatpush1.msra.mxu0 0.0
    %854 = vmatprep.subr.mxu0 0.0
    %855 = vmatpush1.msra.mxu0 0.0
    %856 = vmatprep.subr.mxu0 0.0
    %857 = vmatpush1.msra.mxu0 0.0
    %858 = vmatprep.subr.mxu0 0.0
    %859 = vmatpush1.msra.mxu0 0.0
    %860 = vmatprep.subr.mxu0 0.0
    %861 = vmatpush1.msra.mxu0 0.0
    %862 = vmatprep.subr.mxu0 0.0
    %863 = vmatpush1.msra.mxu0 0.0
    %864 = vmatprep.subr.mxu0 0.0
    %865 = vmatpush1.msra.mxu0 0.0
    %866 = vmatprep.subr.mxu0 0.0
    %867 = vmatpush1.msra.mxu0 0.0
    %868 = vmatprep.subr.mxu0 0.0
    %869 = vmatpush1.msra.mxu0 0.0
    %870 = vmatprep.subr.mxu0 0.0
    %871 = vmatpush1.msra.mxu0 0.0
    %872 = vmatprep.subr.mxu0 0.0
    %873 = vmatpush1.msra.mxu0 0.0
    %874 = vmatprep.subr.mxu0 0.0
    %875 = vmatpush1.msra.mxu0 0.0
    %876 = vmatprep.subr.mxu0 0.0
    %877 = vmatpush1.msra.mxu0 0.0
    %878 = vmatprep.subr.mxu0 0.0
    %879 = vmatpush1.msra.mxu0 0.0
    %880 = vmatprep.subr.mxu0 0.0
    %881 = vmatpush1.msra.mxu0 0.0
    %882 = vmatprep.subr.mxu0 0.0
    %883 = vmatpush1.msra.mxu0 0.0
    %884 = vmatprep.subr.mxu0 0.0
    %885 = vmatpush1.msra.mxu0 0.0
    %886 = vmatprep.subr.mxu0 0.0
    %887 = vmatpush1.msra.mxu0 0.0
    %888 = vmatprep.subr.mxu0 0.0
    %889 = vmatpush1.msra.mxu0 0.0
    %890 = vmatprep.subr.mxu0 0.0
    %891 = vmatpush1.msra.mxu0 0.0
    %892 = vmatprep.subr.mxu0 0.0
    %893 = vmatpush1.msra.mxu0 0.0
    %894 = vmatprep.subr.mxu0 0.0
    %895 = vmatpush1.msra.mxu0 0.0
    %896 = vmatprep.subr.mxu0 0.0
    %897 = vmatpush1.msra.mxu0 0.0
    %898 = vmatprep.subr.mxu0 0.0
    %899 = vmatpush1.msra.mxu0 0.0
    %900 = vmatprep.subr.mxu0 0.0
    %901 = vmatpush1.msra.mxu0 0.0
    %902 = vmatprep.subr.mxu0 0.0
    %903 = vmatpush1.msra.mxu0 0.0
    %904 = vmatprep.subr.mxu0 0.0
    %905 = vmatpush1.msra.mxu0 0.0
    %906 = vmatprep.mubr.f32.mxu0 0.0
    %907 = vmatmul.mubr.f32.gmra.mrb[0].mxu0 %v837
    %v908 = vpop.f32.mrb[0].mxu0
    %v909 = vadd.f32 %v835, %v908
    %v910 = vpop.f32.mrb[0].mxu0
    %911 = vmatprep.mubr.f32.mxu0 0.0
    %912 = vmatmul.mubr.f32.gmra.mrb[0].mxu0 %v840
    %v913 = vpop.f32.mrb[0].mxu0
    %v914 = vadd.f32 %v835, %v913
    %v915 = vpop.f32.mrb[0].mxu0
    %916 = vdwg.mxu0
    %v917 = vmax.f32 %v909, 0.0
    %v918 = vmax.f32 %v914, 0.0
    %v919 = vlaneseq
    %v920 = vshrl.u32 %v919, 7
    %v921 = vsub.s32 3, %v920
    %v922 = vrot.slane %v54, %v921
    %927 = vrot.lane.b32.xlu0 %v50, 64
    %v928 = vpop.permute.xlu0 %927
    %929 = vrot.lane.b32.xlu0 %v51, 64
    %v930 = vpop.permute.xlu0 %929
    %931 = vrot.lane.b32.xlu0 %v52, 64
    %v932 = vpop.permute.xlu0 %931
    %933 = vrot.lane.b32.xlu0 %v53, 64
    %v934 = vpop.permute.xlu0 %933
    %vm935 = vcmask 523264
    %v937 = vsel %vm935, %v917, 0
    %v940 = vsel %vm935, %v918, 0
    %v942 = vsel %vm935, %v928, 0
    %v944 = vsel %vm935, %v930, 0
    %v946 = vsel %vm935, %v932, 0
    %v948 = vsel %vm935, %v934, 0
    %950 = vmatprep.subr.mxu0 0.0
    %951 = vmatpush1.xpose.msra.mxu0 %v942
    %952 = vmatprep.subr.mxu0 0.0
    %953 = vmatpush1.xpose.msra.mxu0 %v944
    %954 = vmatprep.subr.mxu0 0.0
    %955 = vmatpush1.xpose.msra.mxu0 %v946
    %956 = vmatprep.subr.mxu0 0.0
    %957 = vmatpush1.xpose.msra.mxu0 %v948
    %958 = vmatprep.subr.mxu0 0.0
    %959 = vmatpush1.xpose.msra.mxu0 0.0
    %960 = vmatprep.subr.mxu0 0.0
    %961 = vmatpush1.xpose.msra.mxu0 0.0
    %962 = vmatprep.subr.mxu0 0.0
    %963 = vmatpush1.xpose.msra.mxu0 0.0
    %964 = vmatprep.subr.mxu0 0.0
    %965 = vmatpush1.xpose.msra.mxu0 0.0
    %966 = vmatprep.subr.mxu0 0.0
    %967 = vmatpush1.xpose.msra.mxu0 0.0
    %968 = vmatprep.subr.mxu0 0.0
    %969 = vmatpush1.xpose.msra.mxu0 0.0
    %970 = vmatprep.subr.mxu0 0.0
    %971 = vmatpush1.xpose.msra.mxu0 0.0
    %972 = vmatprep.subr.mxu0 0.0
    %973 = vmatpush1.xpose.msra.mxu0 0.0
    %974 = vmatprep.subr.mxu0 0.0
    %975 = vmatpush1.xpose.msra.mxu0 0.0
    %976 = vmatprep.subr.mxu0 0.0
    %977 = vmatpush1.xpose.msra.mxu0 0.0
    %978 = vmatprep.subr.mxu0 0.0
    %979 = vmatpush1.xpose.msra.mxu0 0.0
    %980 = vmatprep.subr.mxu0 0.0
    %981 = vmatpush1.xpose.msra.mxu0 0.0
    %982 = vmatprep.subr.mxu0 0.0
    %983 = vmatpush1.xpose.msra.mxu0 0.0
    %984 = vmatprep.subr.mxu0 0.0
    %985 = vmatpush1.xpose.msra.mxu0 0.0
    %986 = vmatprep.subr.mxu0 0.0
    %987 = vmatpush1.xpose.msra.mxu0 0.0
    %988 = vmatprep.subr.mxu0 0.0
    %989 = vmatpush1.xpose.msra.mxu0 0.0
    %990 = vmatprep.subr.mxu0 0.0
    %991 = vmatpush1.xpose.msra.mxu0 0.0
    %992 = vmatprep.subr.mxu0 0.0
    %993 = vmatpush1.xpose.msra.mxu0 0.0
    %994 = vmatprep.subr.mxu0 0.0
    %995 = vmatpush1.xpose.msra.mxu0 0.0
    %996 = vmatprep.subr.mxu0 0.0
    %997 = vmatpush1.xpose.msra.mxu0 0.0
    %998 = vmatprep.subr.mxu0 0.0
    %999 = vmatpush1.xpose.msra.mxu0 0.0
    %1000 = vmatprep.subr.mxu0 0.0
    %1001 = vmatpush1.xpose.msra.mxu0 0.0
    %1002 = vmatprep.subr.mxu0 0.0
    %1003 = vmatpush1.xpose.msra.mxu0 0.0
    %1004 = vmatprep.subr.mxu0 0.0
    %1005 = vmatpush1.xpose.msra.mxu0 0.0
    %1006 = vmatprep.subr.mxu0 0.0
    %1007 = vmatpush1.xpose.msra.mxu0 0.0
    %1008 = vmatprep.subr.mxu0 0.0
    %1009 = vmatpush1.xpose.msra.mxu0 0.0
    %1010 = vmatprep.subr.mxu0 0.0
    %1011 = vmatpush1.xpose.msra.mxu0 0.0
    %1012 = vmatprep.subr.mxu0 0.0
    %1013 = vmatpush1.xpose.msra.mxu0 0.0
    %1014 = vmatprep.mubr.f32.mxu0 0.0
    %1015 = vmatmul.mubr.f32.gmra.mrb[0].mxu0 %v937
    %v1016 = vpop.f32.mrb[0].mxu0
    %v1017 = vadd.f32 %v922, %v1016
    %v1018 = vpop.f32.mrb[0].mxu0
    %1019 = vmatprep.mubr.f32.mxu0 0.0
    %1020 = vmatmul.mubr.f32.gmra.mrb[0].mxu0 %v940
    %v1021 = vpop.f32.mrb[0].mxu0
    %v1022 = vadd.f32 %v922, %v1021
    %v1023 = vpop.f32.mrb[0].mxu0
    %1024 = vdwg.mxu0
    %v1025 = vadd.f32 %v830, %v1017
    %v1026 = vadd.f32 %v831, %v1022
    %v1027 = vsel %vm75, %v1025, 0.0
    %1028 = vadd.xlane.f32.xlu0 %v1027
    %v1029 = vpop.xlane.xlu0 %1028
    %v1030 = vsel %vm75, %v1026, 0.0
    %1031 = vadd.xlane.f32.xlu0 %v1030
    %v1032 = vpop.xlane.xlu0 %1031
    %v1033 = vmul.f32 %v1029, %v793
    %v1034 = vmul.f32 %v1032, %v793
    %v1035 = vmul.f32 %v1025, %v1025
    %v1036 = vmul.f32 %v1026, %v1026
    %v1037 = vsel %vm75, %v1035, 0.0
    %1038 = vadd.xlane.f32.xlu0 %v1037
    %v1039 = vpop.xlane.xlu0 %1038
    %v1040 = vsel %vm75, %v1036, 0.0
    %1041 = vadd.xlane.f32.xlu0 %v1040
    %v1042 = vpop.xlane.xlu0 %1041
    %v1043 = vmul.f32 %v1039, %v793
    %v1044 = vmul.f32 %v1042, %v793
    %v1045 = vmul.f32 %v1033, %v1033
    %v1046 = vmul.f32 %v1034, %v1034
    %v1047 = vsub.f32 %v1043, %v1045
    %v1048 = vsub.f32 %v1044, %v1046
    %v1049 = vmax.f32 %v1047, 0.0
    %v1050 = vmax.f32 %v1048, 0.0
    %v1051 = vsub.f32 %v1025, %v1033
    %v1052 = vsub.f32 %v1026, %v1034
    %v1053 = vadd.f32 %v1049, 1e-05
    %v1054 = vadd.f32 %v1050, 1e-05
    %v1055 = vrsqrt.pop %v1053
    %v1056 = vrsqrt.pop %v1054
    %v1057 = vmul.f32 %v1051, %v1055
    %v1058 = vmul.f32 %v1052, %v1056
    %v1059 = vlaneseq
    %v1060 = vshrl.u32 %v1059, 7
    %v1061 = vsub.s32 6, %v1060
    %v1062 = vrot.slane %v54, %v1061
    %v1063 = vmul.f32 %v1057, %v1062
    %v1064 = vmul.f32 %v1058, %v1062
    %v1065 = vlaneseq
    %v1066 = vshrl.u32 %v1065, 7
    %v1067 = vsub.s32 7, %v1066
    %v1068 = vrot.slane %v54, %v1067
    %v1069 = vadd.f32 %v1063, %v1068
    %v1070 = vadd.f32 %v1064, %v1068
    %s1071 = scalar_lea.vmem %s1, 32
    %v1072 = vld [vmem:[%s1071] sm:$0xff]
    %v1073 = vld [vmem:[%s1071 + $0x8] sm:$0xff]
    %v1074 = vld [vmem:[%s1071 + $0x10] sm:$0xff]
    %v1075 = vld [vmem:[%s1071 + $0x18] sm:$0xff]
    %s1076 = scalar_lea.vmem [#allocation2], 32
    %v1077 = vld [vmem:[%s1076] sm:$0xff]
    %v1078 = vld [vmem:[%s1076 + $0x8] sm:$0xff]
    %v1079 = vld [vmem:[%s1076 + $0x10] sm:$0xff]
    %v1080 = vld [vmem:[%s1076 + $0x18] sm:$0xff]
    %s1081 = scalar_lea.vmem %s3, 8
    %v1082 = vld [vmem:[%s1081] sm:$0xff]
    %v1083 = vlaneseq
    %v1084 = vshrl.u32 %v1083, 7
    %v1085 = vsub.s32 0, %v1084
    %v1086 = vrot.slane %v1082, %v1085
    %v1088 = vsel %vm75, %v1069, 0
    %v1091 = vsel %vm75, %v1070, 0
    %1093 = vmatprep.subr.mxu0 0.0
    %1094 = vmatpush1.msra.mxu0 %v1072
    %1095 = vmatprep.subr.mxu0 0.0
    %1096 = vmatpush1.msra.mxu0 %v1073
    %1097 = vmatprep.subr.mxu0 0.0
    %1098 = vmatpush1.msra.mxu0 %v1074
    %1099 = vmatprep.subr.mxu0 0.0
    %1100 = vmatpush1.msra.mxu0 %v1075
    %1101 = vmatprep.subr.mxu0 0.0
    %1102 = vmatpush1.msra.mxu0 0.0
    %1103 = vmatprep.subr.mxu0 0.0
    %1104 = vmatpush1.msra.mxu0 0.0
    %1105 = vmatprep.subr.mxu0 0.0
    %1106 = vmatpush1.msra.mxu0 0.0
    %1107 = vmatprep.subr.mxu0 0.0
    %1108 = vmatpush1.msra.mxu0 0.0
    %1109 = vmatprep.subr.mxu0 0.0
    %1110 = vmatpush1.msra.mxu0 0.0
    %1111 = vmatprep.subr.mxu0 0.0
    %1112 = vmatpush1.msra.mxu0 0.0
    %1113 = vmatprep.subr.mxu0 0.0
    %1114 = vmatpush1.msra.mxu0 0.0
    %1115 = vmatprep.subr.mxu0 0.0
    %1116 = vmatpush1.msra.mxu0 0.0
    %1117 = vmatprep.subr.mxu0 0.0
    %1118 = vmatpush1.msra.mxu0 0.0
    %1119 = vmatprep.subr.mxu0 0.0
    %1120 = vmatpush1.msra.mxu0 0.0
    %1121 = vmatprep.subr.mxu0 0.0
    %1122 = vmatpush1.msra.mxu0 0.0
    %1123 = vmatprep.subr.mxu0 0.0
    %1124 = vmatpush1.msra.mxu0 0.0
    %1125 = vmatprep.subr.mxu0 0.0
    %1126 = vmatpush1.msra.mxu0 0.0
    %1127 = vmatprep.subr.mxu0 0.0
    %1128 = vmatpush1.msra.mxu0 0.0
    %1129 = vmatprep.subr.mxu0 0.0
    %1130 = vmatpush1.msra.mxu0 0.0
    %1131 = vmatprep.subr.mxu0 0.0
    %1132 = vmatpush1.msra.mxu0 0.0
    %1133 = vmatprep.subr.mxu0 0.0
    %1134 = vmatpush1.msra.mxu0 0.0
    %1135 = vmatprep.subr.mxu0 0.0
    %1136 = vmatpush1.msra.mxu0 0.0
    %1137 = vmatprep.subr.mxu0 0.0
    %1138 = vmatpush1.msra.mxu0 0.0
    %1139 = vmatprep.subr.mxu0 0.0
    %1140 = vmatpush1.msra.mxu0 0.0
    %1141 = vmatprep.subr.mxu0 0.0
    %1142 = vmatpush1.msra.mxu0 0.0
    %1143 = vmatprep.subr.mxu0 0.0
    %1144 = vmatpush1.msra.mxu0 0.0
    %1145 = vmatprep.subr.mxu0 0.0
    %1146 = vmatpush1.msra.mxu0 0.0
    %1147 = vmatprep.subr.mxu0 0.0
    %1148 = vmatpush1.msra.mxu0 0.0
    %1149 = vmatprep.subr.mxu0 0.0
    %1150 = vmatpush1.msra.mxu0 0.0
    %1151 = vmatprep.subr.mxu0 0.0
    %1152 = vmatpush1.msra.mxu0 0.0
    %1153 = vmatprep.subr.mxu0 0.0
    %1154 = vmatpush1.msra.mxu0 0.0
    %1155 = vmatprep.subr.mxu0 0.0
    %1156 = vmatpush1.msra.mxu0 0.0
    %1157 = vmatprep.mubr.f32.mxu0 0.0
    %1158 = vmatmul.mubr.f32.gmra.mrb[0].mxu0 %v1088
    %v1159 = vpop.f32.mrb[0].mxu0
    %v1160 = vadd.f32 %v1086, %v1159
    %v1161 = vpop.f32.mrb[0].mxu0
    %1162 = vmatprep.mubr.f32.mxu0 0.0
    %1163 = vmatmul.mubr.f32.gmra.mrb[0].mxu0 %v1091
    %v1164 = vpop.f32.mrb[0].mxu0
    %v1165 = vadd.f32 %v1086, %v1164
    %v1166 = vpop.f32.mrb[0].mxu0
    %1167 = vdwg.mxu0
    %v1168 = vmul.f32 %v1160, %v174
    %v1169 = vmul.f32 %v1165, %v176
    %v1170 = vmul.f32 %v1160, %v178
    %v1171 = vmul.f32 %v1165, %v180
    %v1172 = vmul.f32 %v1160, %v182
    %v1173 = vmul.f32 %v1165, %v184
    %v1174 = vmul.f32 %v1160, %v186
    %v1175 = vmul.f32 %v1165, %v188
    %v1176 = vmul.f32 %v1160, %v190
    %v1177 = vmul.f32 %v1165, %v192
    %v1178 = vmul.f32 %v1160, %v194
    %v1179 = vmul.f32 %v1165, %v196
    %v1180 = vmul.f32 %v1160, %v198
    %v1181 = vmul.f32 %v1165, %v200
    %v1182 = vmul.f32 %v1160, %v202
    %v1183 = vmul.f32 %v1165, %v204
    %1200 = vrot.lane.b32.xlu0 %v1168, 96
    %v1201 = vpop.permute.xlu0 %1200
    %1202 = vrot.lane.b32.xlu0 %v1169, 96
    %v1203 = vpop.permute.xlu0 %1202
    %1204 = vrot.lane.b32.xlu0 %v1170, 96
    %v1205 = vpop.permute.xlu0 %1204
    %1206 = vrot.lane.b32.xlu0 %v1171, 96
    %v1207 = vpop.permute.xlu0 %1206
    %1208 = vrot.lane.b32.xlu0 %v1172, 96
    %v1209 = vpop.permute.xlu0 %1208
    %1210 = vrot.lane.b32.xlu0 %v1173, 96
    %v1211 = vpop.permute.xlu0 %1210
    %1212 = vrot.lane.b32.xlu0 %v1174, 96
    %v1213 = vpop.permute.xlu0 %1212
    %1214 = vrot.lane.b32.xlu0 %v1175, 96
    %v1215 = vpop.permute.xlu0 %1214
    %1216 = vrot.lane.b32.xlu0 %v1176, 96
    %v1217 = vpop.permute.xlu0 %1216
    %1218 = vrot.lane.b32.xlu0 %v1177, 96
    %v1219 = vpop.permute.xlu0 %1218
    %1220 = vrot.lane.b32.xlu0 %v1178, 96
    %v1221 = vpop.permute.xlu0 %1220
    %1222 = vrot.lane.b32.xlu0 %v1179, 96
    %v1223 = vpop.permute.xlu0 %1222
    %1224 = vrot.lane.b32.xlu0 %v1180, 96
    %v1225 = vpop.permute.xlu0 %1224
    %1226 = vrot.lane.b32.xlu0 %v1181, 96
    %v1227 = vpop.permute.xlu0 %1226
    %1228 = vrot.lane.b32.xlu0 %v1182, 96
    %v1229 = vpop.permute.xlu0 %1228
    %1230 = vrot.lane.b32.xlu0 %v1183, 96
    %v1231 = vpop.permute.xlu0 %1230
    %v1233 = vsel %vm75, %v1160, 0
    %v1236 = vsel %vm75, %v1165, 0
    %v1238 = vsel %vm75, %v1201, 0
    %v1240 = vsel %vm75, %v1203, 0
    %v1242 = vsel %vm75, %v1205, 0
    %v1244 = vsel %vm75, %v1207, 0
    %v1246 = vsel %vm75, %v1209, 0
    %v1248 = vsel %vm75, %v1211, 0
    %v1250 = vsel %vm75, %v1213, 0
    %v1252 = vsel %vm75, %v1215, 0
    %v1254 = vsel %vm75, %v1217, 0
    %v1256 = vsel %vm75, %v1219, 0
    %v1258 = vsel %vm75, %v1221, 0
    %v1260 = vsel %vm75, %v1223, 0
    %v1262 = vsel %vm75, %v1225, 0
    %v1264 = vsel %vm75, %v1227, 0
    %v1266 = vsel %vm75, %v1229, 0
    %v1268 = vsel %vm75, %v1231, 0
    %1270 = vmatprep.subr.mxu0 0.0
    %1271 = vmatpush1.xpose.msra.mxu0 %v1238
    %1272 = vmatprep.subr.mxu0 0.0
    %1273 = vmatpush1.xpose.msra.mxu0 %v1240
    %1274 = vmatprep.subr.mxu0 0.0
    %1275 = vmatpush1.xpose.msra.mxu0 %v1242
    %1276 = vmatprep.subr.mxu0 0.0
    %1277 = vmatpush1.xpose.msra.mxu0 %v1244
    %1278 = vmatprep.subr.mxu0 0.0
    %1279 = vmatpush1.xpose.msra.mxu0 %v1246
    %1280 = vmatprep.subr.mxu0 0.0
    %1281 = vmatpush1.xpose.msra.mxu0 %v1248
    %1282 = vmatprep.subr.mxu0 0.0
    %1283 = vmatpush1.xpose.msra.mxu0 %v1250
    %1284 = vmatprep.subr.mxu0 0.0
    %1285 = vmatpush1.xpose.msra.mxu0 %v1252
    %1286 = vmatprep.subr.mxu0 0.0
    %1287 = vmatpush1.xpose.msra.mxu0 %v1254
    %1288 = vmatprep.subr.mxu0 0.0
    %1289 = vmatpush1.xpose.msra.mxu0 %v1256
    %1290 = vmatprep.subr.mxu0 0.0
    %1291 = vmatpush1.xpose.msra.mxu0 %v1258
    %1292 = vmatprep.subr.mxu0 0.0
    %1293 = vmatpush1.xpose.msra.mxu0 %v1260
    %1294 = vmatprep.subr.mxu0 0.0
    %1295 = vmatpush1.xpose.msra.mxu0 %v1262
    %1296 = vmatprep.subr.mxu0 0.0
    %1297 = vmatpush1.xpose.msra.mxu0 %v1264
    %1298 = vmatprep.subr.mxu0 0.0
    %1299 = vmatpush1.xpose.msra.mxu0 %v1266
    %1300 = vmatprep.subr.mxu0 0.0
    %1301 = vmatpush1.xpose.msra.mxu0 %v1268
    %1302 = vmatprep.subr.mxu0 0.0
    %1303 = vmatpush1.xpose.msra.mxu0 0.0
    %1304 = vmatprep.subr.mxu0 0.0
    %1305 = vmatpush1.xpose.msra.mxu0 0.0
    %1306 = vmatprep.subr.mxu0 0.0
    %1307 = vmatpush1.xpose.msra.mxu0 0.0
    %1308 = vmatprep.subr.mxu0 0.0
    %1309 = vmatpush1.xpose.msra.mxu0 0.0
    %1310 = vmatprep.subr.mxu0 0.0
    %1311 = vmatpush1.xpose.msra.mxu0 0.0
    %1312 = vmatprep.subr.mxu0 0.0
    %1313 = vmatpush1.xpose.msra.mxu0 0.0
    %1314 = vmatprep.subr.mxu0 0.0
    %1315 = vmatpush1.xpose.msra.mxu0 0.0
    %1316 = vmatprep.subr.mxu0 0.0
    %1317 = vmatpush1.xpose.msra.mxu0 0.0
    %1318 = vmatprep.subr.mxu0 0.0
    %1319 = vmatpush1.xpose.msra.mxu0 0.0
    %1320 = vmatprep.subr.mxu0 0.0
    %1321 = vmatpush1.xpose.msra.mxu0 0.0
    %1322 = vmatprep.subr.mxu0 0.0
    %1323 = vmatpush1.xpose.msra.mxu0 0.0
    %1324 = vmatprep.subr.mxu0 0.0
    %1325 = vmatpush1.xpose.msra.mxu0 0.0
    %1326 = vmatprep.subr.mxu0 0.0
    %1327 = vmatpush1.xpose.msra.mxu0 0.0
    %1328 = vmatprep.subr.mxu0 0.0
    %1329 = vmatpush1.xpose.msra.mxu0 0.0
    %1330 = vmatprep.subr.mxu0 0.0
    %1331 = vmatpush1.xpose.msra.mxu0 0.0
    %1332 = vmatprep.subr.mxu0 0.0
    %1333 = vmatpush1.xpose.msra.mxu0 0.0
    %1334 = vmatprep.mubr.f32.mxu0 0.0
    %1335 = vmatmul.mubr.f32.gmra.mrb[0].mxu0 %v1233
    %v1336 = vpop.f32.mrb[0].mxu0
    %v1337 = vadd.f32 %v41, %v1336
    %v1338 = vpop.f32.mrb[0].mxu0
    %1339 = vmatprep.mubr.f32.mxu0 0.0
    %1340 = vmatmul.mubr.f32.gmra.mrb[0].mxu0 %v1236
    %v1341 = vpop.f32.mrb[0].mxu0
    %v1342 = vadd.f32 %v42, %v1341
    %v1343 = vpop.f32.mrb[0].mxu0
    %1344 = vdwg.mxu0
    %v1345 = vmul.f32 %v1337, 1.442695
    %v1346 = vpow.pop %v1345
    %v1347 = vmul.f32 %v1342, 1.442695
    %v1348 = vpow.pop %v1347
    %1349 = vmatprep.subr.mxu0 0.0
    %1350 = vmatpush1.msra.mxu0 %v55
    %1351 = vmatprep.subr.mxu0 0.0
    %1352 = vmatpush1.msra.mxu0 %v56
    %1353 = vmatprep.subr.mxu0 0.0
    %1354 = vmatpush1.msra.mxu0 %v57
    %1355 = vmatprep.subr.mxu0 0.0
    %1356 = vmatpush1.msra.mxu0 %v58
    %1357 = vmatprep.subr.mxu0 0.0
    %1358 = vmatpush1.msra.mxu0 %v59
    %1359 = vmatprep.subr.mxu0 0.0
    %1360 = vmatpush1.msra.mxu0 %v60
    %1361 = vmatprep.subr.mxu0 0.0
    %1362 = vmatpush1.msra.mxu0 %v61
    %1363 = vmatprep.subr.mxu0 0.0
    %1364 = vmatpush1.msra.mxu0 %v62
    %1365 = vmatprep.subr.mxu0 0.0
    %1366 = vmatpush1.msra.mxu0 %v63
    %1367 = vmatprep.subr.mxu0 0.0
    %1368 = vmatpush1.msra.mxu0 %v64
    %1369 = vmatprep.subr.mxu0 0.0
    %1370 = vmatpush1.msra.mxu0 %v65
    %1371 = vmatprep.subr.mxu0 0.0
    %1372 = vmatpush1.msra.mxu0 %v66
    %1373 = vmatprep.subr.mxu0 0.0
    %1374 = vmatpush1.msra.mxu0 %v67
    %1375 = vmatprep.subr.mxu0 0.0
    %1376 = vmatpush1.msra.mxu0 %v68
    %1377 = vmatprep.subr.mxu0 0.0
    %1378 = vmatpush1.msra.mxu0 %v69
    %1379 = vmatprep.subr.mxu0 0.0
    %1380 = vmatpush1.msra.mxu0 %v70
    %1381 = vmatprep.subr.mxu0 0.0
    %1382 = vmatpush1.msra.mxu0 0.0
    %1383 = vmatprep.subr.mxu0 0.0
    %1384 = vmatpush1.msra.mxu0 0.0
    %1385 = vmatprep.subr.mxu0 0.0
    %1386 = vmatpush1.msra.mxu0 0.0
    %1387 = vmatprep.subr.mxu0 0.0
    %1388 = vmatpush1.msra.mxu0 0.0
    %1389 = vmatprep.subr.mxu0 0.0
    %1390 = vmatpush1.msra.mxu0 0.0
    %1391 = vmatprep.subr.mxu0 0.0
    %1392 = vmatpush1.msra.mxu0 0.0
    %1393 = vmatprep.subr.mxu0 0.0
    %1394 = vmatpush1.msra.mxu0 0.0
    %1395 = vmatprep.subr.mxu0 0.0
    %1396 = vmatpush1.msra.mxu0 0.0
    %1397 = vmatprep.subr.mxu0 0.0
    %1398 = vmatpush1.msra.mxu0 0.0
    %1399 = vmatprep.subr.mxu0 0.0
    %1400 = vmatpush1.msra.mxu0 0.0
    %1401 = vmatprep.subr.mxu0 0.0
    %1402 = vmatpush1.msra.mxu0 0.0
    %1403 = vmatprep.subr.mxu0 0.0
    %1404 = vmatpush1.msra.mxu0 0.0
    %1405 = vmatprep.subr.mxu0 0.0
    %1406 = vmatpush1.msra.mxu0 0.0
    %1407 = vmatprep.subr.mxu0 0.0
    %1408 = vmatpush1.msra.mxu0 0.0
    %1409 = vmatprep.subr.mxu0 0.0
    %1410 = vmatpush1.msra.mxu0 0.0
    %1411 = vmatprep.subr.mxu0 0.0
    %1412 = vmatpush1.msra.mxu0 0.0
    %1413 = vmatprep.mubr.f32.mxu0 0.0
    %1414 = vmatmul.mubr.f32.gmra.mrb[0].mxu0 %v1346
    %v1415 = vpop.f32.mrb[0].mxu0
    %v1416 = vadd.f32 0.0, %v1415
    %v1417 = vpop.f32.mrb[0].mxu0
    %1418 = vmatprep.mubr.f32.mxu0 0.0
    %1419 = vmatmul.mubr.f32.gmra.mrb[0].mxu0 %v1348
    %v1420 = vpop.f32.mrb[0].mxu0
    %v1421 = vadd.f32 0.0, %v1420
    %v1422 = vpop.f32.mrb[0].mxu0
    %1423 = vdwg.mxu0
    %v1424 = vmul.f32 %v1160, %v478
    %v1425 = vmul.f32 %v1165, %v480
    %v1426 = vmul.f32 %v1160, %v482
    %v1427 = vmul.f32 %v1165, %v484
    %v1428 = vmul.f32 %v1160, %v486
    %v1429 = vmul.f32 %v1165, %v488
    %v1430 = vmul.f32 %v1160, %v490
    %v1431 = vmul.f32 %v1165, %v492
    %v1432 = vmul.f32 %v1160, %v494
    %v1433 = vmul.f32 %v1165, %v496
    %v1434 = vmul.f32 %v1160, %v498
    %v1435 = vmul.f32 %v1165, %v500
    %v1436 = vmul.f32 %v1160, %v502
    %v1437 = vmul.f32 %v1165, %v504
    %v1438 = vmul.f32 %v1160, %v506
    %v1439 = vmul.f32 %v1165, %v508
    %1456 = vrot.lane.b32.xlu0 %v1424, 64
    %v1457 = vpop.permute.xlu0 %1456
    %1458 = vrot.lane.b32.xlu0 %v1425, 64
    %v1459 = vpop.permute.xlu0 %1458
    %1460 = vrot.lane.b32.xlu0 %v1426, 64
    %v1461 = vpop.permute.xlu0 %1460
    %1462 = vrot.lane.b32.xlu0 %v1427, 64
    %v1463 = vpop.permute.xlu0 %1462
    %1464 = vrot.lane.b32.xlu0 %v1428, 64
    %v1465 = vpop.permute.xlu0 %1464
    %1466 = vrot.lane.b32.xlu0 %v1429, 64
    %v1467 = vpop.permute.xlu0 %1466
    %1468 = vrot.lane.b32.xlu0 %v1430, 64
    %v1469 = vpop.permute.xlu0 %1468
    %1470 = vrot.lane.b32.xlu0 %v1431, 64
    %v1471 = vpop.permute.xlu0 %1470
    %1472 = vrot.lane.b32.xlu0 %v1432, 64
    %v1473 = vpop.permute.xlu0 %1472
    %1474 = vrot.lane.b32.xlu0 %v1433, 64
    %v1475 = vpop.permute.xlu0 %1474
    %1476 = vrot.lane.b32.xlu0 %v1434, 64
    %v1477 = vpop.permute.xlu0 %1476
    %1478 = vrot.lane.b32.xlu0 %v1435, 64
    %v1479 = vpop.permute.xlu0 %1478
    %1480 = vrot.lane.b32.xlu0 %v1436, 64
    %v1481 = vpop.permute.xlu0 %1480
    %1482 = vrot.lane.b32.xlu0 %v1437, 64
    %v1483 = vpop.permute.xlu0 %1482
    %1484 = vrot.lane.b32.xlu0 %v1438, 64
    %v1485 = vpop.permute.xlu0 %1484
    %1486 = vrot.lane.b32.xlu0 %v1439, 64
    %v1487 = vpop.permute.xlu0 %1486
    %1504 = vmatprep.subr.mxu0 0.0
    %1505 = vmatpush1.msra.mxu0 %v1457
    %1506 = vmatprep.subr.mxu0 0.0
    %1507 = vmatpush1.msra.mxu0 %v1459
    %1508 = vmatprep.subr.mxu0 0.0
    %1509 = vmatpush1.msra.mxu0 %v1461
    %1510 = vmatprep.subr.mxu0 0.0
    %1511 = vmatpush1.msra.mxu0 %v1463
    %1512 = vmatprep.subr.mxu0 0.0
    %1513 = vmatpush1.msra.mxu0 %v1465
    %1514 = vmatprep.subr.mxu0 0.0
    %1515 = vmatpush1.msra.mxu0 %v1467
    %1516 = vmatprep.subr.mxu0 0.0
    %1517 = vmatpush1.msra.mxu0 %v1469
    %1518 = vmatprep.subr.mxu0 0.0
    %1519 = vmatpush1.msra.mxu0 %v1471
    %1520 = vmatprep.subr.mxu0 0.0
    %1521 = vmatpush1.msra.mxu0 %v1473
    %1522 = vmatprep.subr.mxu0 0.0
    %1523 = vmatpush1.msra.mxu0 %v1475
    %1524 = vmatprep.subr.mxu0 0.0
    %1525 = vmatpush1.msra.mxu0 %v1477
    %1526 = vmatprep.subr.mxu0 0.0
    %1527 = vmatpush1.msra.mxu0 %v1479
    %1528 = vmatprep.subr.mxu0 0.0
    %1529 = vmatpush1.msra.mxu0 %v1481
    %1530 = vmatprep.subr.mxu0 0.0
    %1531 = vmatpush1.msra.mxu0 %v1483
    %1532 = vmatprep.subr.mxu0 0.0
    %1533 = vmatpush1.msra.mxu0 %v1485
    %1534 = vmatprep.subr.mxu0 0.0
    %1535 = vmatpush1.msra.mxu0 %v1487
    %1536 = vmatprep.subr.mxu0 0.0
    %1537 = vmatpush1.msra.mxu0 0.0
    %1538 = vmatprep.subr.mxu0 0.0
    %1539 = vmatpush1.msra.mxu0 0.0
    %1540 = vmatprep.subr.mxu0 0.0
    %1541 = vmatpush1.msra.mxu0 0.0
    %1542 = vmatprep.subr.mxu0 0.0
    %1543 = vmatpush1.msra.mxu0 0.0
    %1544 = vmatprep.subr.mxu0 0.0
    %1545 = vmatpush1.msra.mxu0 0.0
    %1546 = vmatprep.subr.mxu0 0.0
    %1547 = vmatpush1.msra.mxu0 0.0
    %1548 = vmatprep.subr.mxu0 0.0
    %1549 = vmatpush1.msra.mxu0 0.0
    %1550 = vmatprep.subr.mxu0 0.0
    %1551 = vmatpush1.msra.mxu0 0.0
    %1552 = vmatprep.subr.mxu0 0.0
    %1553 = vmatpush1.msra.mxu0 0.0
    %1554 = vmatprep.subr.mxu0 0.0
    %1555 = vmatpush1.msra.mxu0 0.0
    %1556 = vmatprep.subr.mxu0 0.0
    %1557 = vmatpush1.msra.mxu0 0.0
    %1558 = vmatprep.subr.mxu0 0.0
    %1559 = vmatpush1.msra.mxu0 0.0
    %1560 = vmatprep.subr.mxu0 0.0
    %1561 = vmatpush1.msra.mxu0 0.0
    %1562 = vmatprep.subr.mxu0 0.0
    %1563 = vmatpush1.msra.mxu0 0.0
    %1564 = vmatprep.subr.mxu0 0.0
    %1565 = vmatpush1.msra.mxu0 0.0
    %1566 = vmatprep.subr.mxu0 0.0
    %1567 = vmatpush1.msra.mxu0 0.0
    %1568 = vmatprep.mubr.f32.mxu0 0.0
    %1569 = vmatmul.mubr.f32.gmra.mrb[0].mxu0 %v1346
    %v1570 = vpop.f32.mrb[0].mxu0
    %v1571 = vadd.f32 0.0, %v1570
    %v1572 = vpop.f32.mrb[0].mxu0
    %1573 = vmatprep.mubr.f32.mxu0 0.0
    %1574 = vmatmul.mubr.f32.gmra.mrb[0].mxu0 %v1348
    %v1575 = vpop.f32.mrb[0].mxu0
    %v1576 = vadd.f32 0.0, %v1575
    %v1577 = vpop.f32.mrb[0].mxu0
    %1578 = vdwg.mxu0
    %v1579 = vrcp.pop %v1416
    %v1580 = vmul.f32 %v1571, %v1579
    %v1581 = vrcp.pop %v1421
    %v1582 = vmul.f32 %v1576, %v1581
    %v1583 = vlaneseq
    %v1584 = vshrl.u32 %v1583, 7
    %v1585 = vsub.s32 1, %v1584
    %v1586 = vrot.slane %v1082, %v1585
    %1591 = vrot.lane.b32.xlu0 %v1072, 32
    %v1592 = vpop.permute.xlu0 %1591
    %1593 = vrot.lane.b32.xlu0 %v1073, 32
    %v1594 = vpop.permute.xlu0 %1593
    %1595 = vrot.lane.b32.xlu0 %v1074, 32
    %v1596 = vpop.permute.xlu0 %1595
    %1597 = vrot.lane.b32.xlu0 %v1075, 32
    %v1598 = vpop.permute.xlu0 %1597
    %v1604 = vsel %vm75, %v1580, 0
    %v1607 = vsel %vm75, %v1582, 0
    %1609 = vmatprep.subr.mxu0 0.0
    %1610 = vmatpush1.msra.mxu0 %v1592
    %1611 = vmatprep.subr.mxu0 0.0
    %1612 = vmatpush1.msra.mxu0 %v1594
    %1613 = vmatprep.subr.mxu0 0.0
    %1614 = vmatpush1.msra.mxu0 %v1596
    %1615 = vmatprep.subr.mxu0 0.0
    %1616 = vmatpush1.msra.mxu0 %v1598
    %1617 = vmatprep.subr.mxu0 0.0
    %1618 = vmatpush1.msra.mxu0 0.0
    %1619 = vmatprep.subr.mxu0 0.0
    %1620 = vmatpush1.msra.mxu0 0.0
    %1621 = vmatprep.subr.mxu0 0.0
    %1622 = vmatpush1.msra.mxu0 0.0
    %1623 = vmatprep.subr.mxu0 0.0
    %1624 = vmatpush1.msra.mxu0 0.0
    %1625 = vmatprep.subr.mxu0 0.0
    %1626 = vmatpush1.msra.mxu0 0.0
    %1627 = vmatprep.subr.mxu0 0.0
    %1628 = vmatpush1.msra.mxu0 0.0
    %1629 = vmatprep.subr.mxu0 0.0
    %1630 = vmatpush1.msra.mxu0 0.0
    %1631 = vmatprep.subr.mxu0 0.0
    %1632 = vmatpush1.msra.mxu0 0.0
    %1633 = vmatprep.subr.mxu0 0.0
    %1634 = vmatpush1.msra.mxu0 0.0
    %1635 = vmatprep.subr.mxu0 0.0
    %1636 = vmatpush1.msra.mxu0 0.0
    %1637 = vmatprep.subr.mxu0 0.0
    %1638 = vmatpush1.msra.mxu0 0.0
    %1639 = vmatprep.subr.mxu0 0.0
    %1640 = vmatpush1.msra.mxu0 0.0
    %1641 = vmatprep.subr.mxu0 0.0
    %1642 = vmatpush1.msra.mxu0 0.0
    %1643 = vmatprep.subr.mxu0 0.0
    %1644 = vmatpush1.msra.mxu0 0.0
    %1645 = vmatprep.subr.mxu0 0.0
    %1646 = vmatpush1.msra.mxu0 0.0
    %1647 = vmatprep.subr.mxu0 0.0
    %1648 = vmatpush1.msra.mxu0 0.0
    %1649 = vmatprep.subr.mxu0 0.0
    %1650 = vmatpush1.msra.mxu0 0.0
    %1651 = vmatprep.subr.mxu0 0.0
    %1652 = vmatpush1.msra.mxu0 0.0
    %1653 = vmatprep.subr.mxu0 0.0
    %1654 = vmatpush1.msra.mxu0 0.0
    %1655 = vmatprep.subr.mxu0 0.0
    %1656 = vmatpush1.msra.mxu0 0.0
    %1657 = vmatprep.subr.mxu0 0.0
    %1658 = vmatpush1.msra.mxu0 0.0
    %1659 = vmatprep.subr.mxu0 0.0
    %1660 = vmatpush1.msra.mxu0 0.0
    %1661 = vmatprep.subr.mxu0 0.0
    %1662 = vmatpush1.msra.mxu0 0.0
    %1663 = vmatprep.subr.mxu0 0.0
    %1664 = vmatpush1.msra.mxu0 0.0
    %1665 = vmatprep.subr.mxu0 0.0
    %1666 = vmatpush1.msra.mxu0 0.0
    %1667 = vmatprep.subr.mxu0 0.0
    %1668 = vmatpush1.msra.mxu0 0.0
    %1669 = vmatprep.subr.mxu0 0.0
    %1670 = vmatpush1.msra.mxu0 0.0
    %1671 = vmatprep.subr.mxu0 0.0
    %1672 = vmatpush1.msra.mxu0 0.0
    %1673 = vmatprep.mubr.f32.mxu0 0.0
    %1674 = vmatmul.mubr.f32.gmra.mrb[0].mxu0 %v1604
    %v1675 = vpop.f32.mrb[0].mxu0
    %v1676 = vadd.f32 %v1586, %v1675
    %v1677 = vpop.f32.mrb[0].mxu0
    %1678 = vmatprep.mubr.f32.mxu0 0.0
    %1679 = vmatmul.mubr.f32.gmra.mrb[0].mxu0 %v1607
    %v1680 = vpop.f32.mrb[0].mxu0
    %v1681 = vadd.f32 %v1586, %v1680
    %v1682 = vpop.f32.mrb[0].mxu0
    %1683 = vdwg.mxu0
    %v1684 = vadd.f32 %v1069, %v1676
    %v1685 = vadd.f32 %v1070, %v1681
    %v1686 = vsel %vm75, %v1684, 0.0
    %1687 = vadd.xlane.f32.xlu0 %v1686
    %v1688 = vpop.xlane.xlu0 %1687
    %v1689 = vsel %vm75, %v1685, 0.0
    %1690 = vadd.xlane.f32.xlu0 %v1689
    %v1691 = vpop.xlane.xlu0 %1690
    %v1692 = vmul.f32 %v1688, %v793
    %v1693 = vmul.f32 %v1691, %v793
    %v1694 = vmul.f32 %v1684, %v1684
    %v1695 = vmul.f32 %v1685, %v1685
    %v1696 = vsel %vm75, %v1694, 0.0
    %1697 = vadd.xlane.f32.xlu0 %v1696
    %v1698 = vpop.xlane.xlu0 %1697
    %v1699 = vsel %vm75, %v1695, 0.0
    %1700 = vadd.xlane.f32.xlu0 %v1699
    %v1701 = vpop.xlane.xlu0 %1700
    %v1702 = vmul.f32 %v1698, %v793
    %v1703 = vmul.f32 %v1701, %v793
    %v1704 = vmul.f32 %v1692, %v1692
    %v1705 = vmul.f32 %v1693, %v1693
    %v1706 = vsub.f32 %v1702, %v1704
    %v1707 = vsub.f32 %v1703, %v1705
    %v1708 = vmax.f32 %v1706, 0.0
    %v1709 = vmax.f32 %v1707, 0.0
    %v1710 = vsub.f32 %v1684, %v1692
    %v1711 = vsub.f32 %v1685, %v1693
    %v1712 = vadd.f32 %v1708, 1e-05
    %v1713 = vadd.f32 %v1709, 1e-05
    %v1714 = vrsqrt.pop %v1712
    %v1715 = vrsqrt.pop %v1713
    %v1716 = vmul.f32 %v1710, %v1714
    %v1717 = vmul.f32 %v1711, %v1715
    %v1718 = vlaneseq
    %v1719 = vshrl.u32 %v1718, 7
    %v1720 = vsub.s32 4, %v1719
    %v1721 = vrot.slane %v1082, %v1720
    %v1722 = vmul.f32 %v1716, %v1721
    %v1723 = vmul.f32 %v1717, %v1721
    %v1724 = vlaneseq
    %v1725 = vshrl.u32 %v1724, 7
    %v1726 = vsub.s32 5, %v1725
    %v1727 = vrot.slane %v1082, %v1726
    %v1728 = vadd.f32 %v1722, %v1727
    %v1729 = vadd.f32 %v1723, %v1727
    %v1730 = vlaneseq
    %v1731 = vshrl.u32 %v1730, 7
    %v1732 = vsub.s32 2, %v1731
    %v1733 = vrot.slane %v1082, %v1732
    %v1735 = vsel %vm75, %v1728, 0
    %v1738 = vsel %vm75, %v1729, 0
    %1740 = vmatprep.subr.mxu0 0.0
    %1741 = vmatpush1.msra.mxu0 %v1077
    %1742 = vmatprep.subr.mxu0 0.0
    %1743 = vmatpush1.msra.mxu0 %v1078
    %1744 = vmatprep.subr.mxu0 0.0
    %1745 = vmatpush1.msra.mxu0 %v1079
    %1746 = vmatprep.subr.mxu0 0.0
    %1747 = vmatpush1.msra.mxu0 %v1080
    %1748 = vmatprep.subr.mxu0 0.0
    %1749 = vmatpush1.msra.mxu0 0.0
    %1750 = vmatprep.subr.mxu0 0.0
    %1751 = vmatpush1.msra.mxu0 0.0
    %1752 = vmatprep.subr.mxu0 0.0
    %1753 = vmatpush1.msra.mxu0 0.0
    %1754 = vmatprep.subr.mxu0 0.0
    %1755 = vmatpush1.msra.mxu0 0.0
    %1756 = vmatprep.subr.mxu0 0.0
    %1757 = vmatpush1.msra.mxu0 0.0
    %1758 = vmatprep.subr.mxu0 0.0
    %1759 = vmatpush1.msra.mxu0 0.0
    %1760 = vmatprep.subr.mxu0 0.0
    %1761 = vmatpush1.msra.mxu0 0.0
    %1762 = vmatprep.subr.mxu0 0.0
    %1763 = vmatpush1.msra.mxu0 0.0
    %1764 = vmatprep.subr.mxu0 0.0
    %1765 = vmatpush1.msra.mxu0 0.0
    %1766 = vmatprep.subr.mxu0 0.0
    %1767 = vmatpush1.msra.mxu0 0.0
    %1768 = vmatprep.subr.mxu0 0.0
    %1769 = vmatpush1.msra.mxu0 0.0
    %1770 = vmatprep.subr.mxu0 0.0
    %1771 = vmatpush1.msra.mxu0 0.0
    %1772 = vmatprep.subr.mxu0 0.0
    %1773 = vmatpush1.msra.mxu0 0.0
    %1774 = vmatprep.subr.mxu0 0.0
    %1775 = vmatpush1.msra.mxu0 0.0
    %1776 = vmatprep.subr.mxu0 0.0
    %1777 = vmatpush1.msra.mxu0 0.0
    %1778 = vmatprep.subr.mxu0 0.0
    %1779 = vmatpush1.msra.mxu0 0.0
    %1780 = vmatprep.subr.mxu0 0.0
    %1781 = vmatpush1.msra.mxu0 0.0
    %1782 = vmatprep.subr.mxu0 0.0
    %1783 = vmatpush1.msra.mxu0 0.0
    %1784 = vmatprep.subr.mxu0 0.0
    %1785 = vmatpush1.msra.mxu0 0.0
    %1786 = vmatprep.subr.mxu0 0.0
    %1787 = vmatpush1.msra.mxu0 0.0
    %1788 = vmatprep.subr.mxu0 0.0
    %1789 = vmatpush1.msra.mxu0 0.0
    %1790 = vmatprep.subr.mxu0 0.0
    %1791 = vmatpush1.msra.mxu0 0.0
    %1792 = vmatprep.subr.mxu0 0.0
    %1793 = vmatpush1.msra.mxu0 0.0
    %1794 = vmatprep.subr.mxu0 0.0
    %1795 = vmatpush1.msra.mxu0 0.0
    %1796 = vmatprep.subr.mxu0 0.0
    %1797 = vmatpush1.msra.mxu0 0.0
    %1798 = vmatprep.subr.mxu0 0.0
    %1799 = vmatpush1.msra.mxu0 0.0
    %1800 = vmatprep.subr.mxu0 0.0
    %1801 = vmatpush1.msra.mxu0 0.0
    %1802 = vmatprep.subr.mxu0 0.0
    %1803 = vmatpush1.msra.mxu0 0.0
    %1804 = vmatprep.mubr.f32.mxu0 0.0
    %1805 = vmatmul.mubr.f32.gmra.mrb[0].mxu0 %v1735
    %v1806 = vpop.f32.mrb[0].mxu0
    %v1807 = vadd.f32 %v1733, %v1806
    %v1808 = vpop.f32.mrb[0].mxu0
    %1809 = vmatprep.mubr.f32.mxu0 0.0
    %1810 = vmatmul.mubr.f32.gmra.mrb[0].mxu0 %v1738
    %v1811 = vpop.f32.mrb[0].mxu0
    %v1812 = vadd.f32 %v1733, %v1811
    %v1813 = vpop.f32.mrb[0].mxu0
    %1814 = vdwg.mxu0
    %v1815 = vmax.f32 %v1807, 0.0
    %v1816 = vmax.f32 %v1812, 0.0
    %v1817 = vlaneseq
    %v1818 = vshrl.u32 %v1817, 7
    %v1819 = vsub.s32 3, %v1818
    %v1820 = vrot.slane %v1082, %v1819
    %1825 = vrot.lane.b32.xlu0 %v1077, 64
    %v1826 = vpop.permute.xlu0 %1825
    %1827 = vrot.lane.b32.xlu0 %v1078, 64
    %v1828 = vpop.permute.xlu0 %1827
    %1829 = vrot.lane.b32.xlu0 %v1079, 64
    %v1830 = vpop.permute.xlu0 %1829
    %1831 = vrot.lane.b32.xlu0 %v1080, 64
    %v1832 = vpop.permute.xlu0 %1831
    %v1834 = vsel %vm935, %v1815, 0
    %v1837 = vsel %vm935, %v1816, 0
    %v1839 = vsel %vm935, %v1826, 0
    %v1841 = vsel %vm935, %v1828, 0
    %v1843 = vsel %vm935, %v1830, 0
    %v1845 = vsel %vm935, %v1832, 0
    %1847 = vmatprep.subr.mxu0 0.0
    %1848 = vmatpush1.xpose.msra.mxu0 %v1839
    %1849 = vmatprep.subr.mxu0 0.0
    %1850 = vmatpush1.xpose.msra.mxu0 %v1841
    %1851 = vmatprep.subr.mxu0 0.0
    %1852 = vmatpush1.xpose.msra.mxu0 %v1843
    %1853 = vmatprep.subr.mxu0 0.0
    %1854 = vmatpush1.xpose.msra.mxu0 %v1845
    %1855 = vmatprep.subr.mxu0 0.0
    %1856 = vmatpush1.xpose.msra.mxu0 0.0
    %1857 = vmatprep.subr.mxu0 0.0
    %1858 = vmatpush1.xpose.msra.mxu0 0.0
    %1859 = vmatprep.subr.mxu0 0.0
    %1860 = vmatpush1.xpose.msra.mxu0 0.0
    %1861 = vmatprep.subr.mxu0 0.0
    %1862 = vmatpush1.xpose.msra.mxu0 0.0
    %1863 = vmatprep.subr.mxu0 0.0
    %1864 = vmatpush1.xpose.msra.mxu0 0.0
    %1865 = vmatprep.subr.mxu0 0.0
    %1866 = vmatpush1.xpose.msra.mxu0 0.0
    %1867 = vmatprep.subr.mxu0 0.0
    %1868 = vmatpush1.xpose.msra.mxu0 0.0
    %1869 = vmatprep.subr.mxu0 0.0
    %1870 = vmatpush1.xpose.msra.mxu0 0.0
    %1871 = vmatprep.subr.mxu0 0.0
    %1872 = vmatpush1.xpose.msra.mxu0 0.0
    %1873 = vmatprep.subr.mxu0 0.0
    %1874 = vmatpush1.xpose.msra.mxu0 0.0
    %1875 = vmatprep.subr.mxu0 0.0
    %1876 = vmatpush1.xpose.msra.mxu0 0.0
    %1877 = vmatprep.subr.mxu0 0.0
    %1878 = vmatpush1.xpose.msra.mxu0 0.0
    %1879 = vmatprep.subr.mxu0 0.0
    %1880 = vmatpush1.xpose.msra.mxu0 0.0
    %1881 = vmatprep.subr.mxu0 0.0
    %1882 = vmatpush1.xpose.msra.mxu0 0.0
    %1883 = vmatprep.subr.mxu0 0.0
    %1884 = vmatpush1.xpose.msra.mxu0 0.0
    %1885 = vmatprep.subr.mxu0 0.0
    %1886 = vmatpush1.xpose.msra.mxu0 0.0
    %1887 = vmatprep.subr.mxu0 0.0
    %1888 = vmatpush1.xpose.msra.mxu0 0.0
    %1889 = vmatprep.subr.mxu0 0.0
    %1890 = vmatpush1.xpose.msra.mxu0 0.0
    %1891 = vmatprep.subr.mxu0 0.0
    %1892 = vmatpush1.xpose.msra.mxu0 0.0
    %1893 = vmatprep.subr.mxu0 0.0
    %1894 = vmatpush1.xpose.msra.mxu0 0.0
    %1895 = vmatprep.subr.mxu0 0.0
    %1896 = vmatpush1.xpose.msra.mxu0 0.0
    %1897 = vmatprep.subr.mxu0 0.0
    %1898 = vmatpush1.xpose.msra.mxu0 0.0
    %1899 = vmatprep.subr.mxu0 0.0
    %1900 = vmatpush1.xpose.msra.mxu0 0.0
    %1901 = vmatprep.subr.mxu0 0.0
    %1902 = vmatpush1.xpose.msra.mxu0 0.0
    %1903 = vmatprep.subr.mxu0 0.0
    %1904 = vmatpush1.xpose.msra.mxu0 0.0
    %1905 = vmatprep.subr.mxu0 0.0
    %1906 = vmatpush1.xpose.msra.mxu0 0.0
    %1907 = vmatprep.subr.mxu0 0.0
    %1908 = vmatpush1.xpose.msra.mxu0 0.0
    %1909 = vmatprep.subr.mxu0 0.0
    %1910 = vmatpush1.xpose.msra.mxu0 0.0
    %1911 = vmatprep.mubr.f32.mxu0 0.0
    %1912 = vmatmul.mubr.f32.gmra.mrb[0].mxu0 %v1834
    %v1913 = vpop.f32.mrb[0].mxu0
    %v1914 = vadd.f32 %v1820, %v1913
    %v1915 = vpop.f32.mrb[0].mxu0
    %1916 = vmatprep.mubr.f32.mxu0 0.0
    %1917 = vmatmul.mubr.f32.gmra.mrb[0].mxu0 %v1837
    %v1918 = vpop.f32.mrb[0].mxu0
    %v1919 = vadd.f32 %v1820, %v1918
    %v1920 = vpop.f32.mrb[0].mxu0
    %1921 = vdwg.mxu0
    %v1922 = vadd.f32 %v1728, %v1914
    %v1923 = vadd.f32 %v1729, %v1919
    %v1924 = vsel %vm75, %v1922, 0.0
    %1925 = vadd.xlane.f32.xlu0 %v1924
    %v1926 = vpop.xlane.xlu0 %1925
    %v1927 = vsel %vm75, %v1923, 0.0
    %1928 = vadd.xlane.f32.xlu0 %v1927
    %v1929 = vpop.xlane.xlu0 %1928
    %v1930 = vmul.f32 %v1926, %v793
    %v1931 = vmul.f32 %v1929, %v793
    %v1932 = vmul.f32 %v1922, %v1922
    %v1933 = vmul.f32 %v1923, %v1923
    %v1934 = vsel %vm75, %v1932, 0.0
    %1935 = vadd.xlane.f32.xlu0 %v1934
    %v1936 = vpop.xlane.xlu0 %1935
    %v1937 = vsel %vm75, %v1933, 0.0
    %1938 = vadd.xlane.f32.xlu0 %v1937
    %v1939 = vpop.xlane.xlu0 %1938
    %v1940 = vmul.f32 %v1936, %v793
    %v1941 = vmul.f32 %v1939, %v793
    %v1942 = vmul.f32 %v1930, %v1930
    %v1943 = vmul.f32 %v1931, %v1931
    %v1944 = vsub.f32 %v1940, %v1942
    %v1945 = vsub.f32 %v1941, %v1943
    %v1946 = vmax.f32 %v1944, 0.0
    %v1947 = vmax.f32 %v1945, 0.0
    %v1948 = vsub.f32 %v1922, %v1930
    %v1949 = vsub.f32 %v1923, %v1931
    %v1950 = vadd.f32 %v1946, 1e-05
    %v1951 = vadd.f32 %v1947, 1e-05
    %v1952 = vrsqrt.pop %v1950
    %v1953 = vrsqrt.pop %v1951
    %v1954 = vmul.f32 %v1948, %v1952
    %v1955 = vmul.f32 %v1949, %v1953
    %v1956 = vlaneseq
    %v1957 = vshrl.u32 %v1956, 7
    %v1958 = vsub.s32 6, %v1957
    %v1959 = vrot.slane %v1082, %v1958
    %v1960 = vmul.f32 %v1954, %v1959
    %v1961 = vmul.f32 %v1955, %v1959
    %v1962 = vlaneseq
    %v1963 = vshrl.u32 %v1962, 7
    %v1964 = vsub.s32 7, %v1963
    %v1965 = vrot.slane %v1082, %v1964
    %v1966 = vadd.f32 %v1960, %v1965
    %v1967 = vadd.f32 %v1961, %v1965
    %s1968 = scalar_lea.vmem %s1, 64
    %v1969 = vld [vmem:[%s1968] sm:$0xff]
    %v1970 = vld [vmem:[%s1968 + $0x8] sm:$0xff]
    %v1971 = vld [vmem:[%s1968 + $0x10] sm:$0xff]
    %v1972 = vld [vmem:[%s1968 + $0x18] sm:$0xff]
    %s1973 = scalar_lea.vmem [#allocation2], 64
    %v1974 = vld [vmem:[%s1973] sm:$0xff]
    %v1975 = vld [vmem:[%s1973 + $0x8] sm:$0xff]
    %v1976 = vld [vmem:[%s1973 + $0x10] sm:$0xff]
    %v1977 = vld [vmem:[%s1973 + $0x18] sm:$0xff]
    %s1978 = scalar_lea.vmem %s3, 16
    %v1979 = vld [vmem:[%s1978] sm:$0xff]
    %v1980 = vlaneseq
    %v1981 = vshrl.u32 %v1980, 7
    %v1982 = vsub.s32 0, %v1981
    %v1983 = vrot.slane %v1979, %v1982
    %v1985 = vsel %vm75, %v1966, 0
    %v1988 = vsel %vm75, %v1967, 0
    %1990 = vmatprep.subr.mxu0 0.0
    %1991 = vmatpush1.msra.mxu0 %v1969
    %1992 = vmatprep.subr.mxu0 0.0
    %1993 = vmatpush1.msra.mxu0 %v1970
    %1994 = vmatprep.subr.mxu0 0.0
    %1995 = vmatpush1.msra.mxu0 %v1971
    %1996 = vmatprep.subr.mxu0 0.0
    %1997 = vmatpush1.msra.mxu0 %v1972
    %1998 = vmatprep.subr.mxu0 0.0
    %1999 = vmatpush1.msra.mxu0 0.0
    %2000 = vmatprep.subr.mxu0 0.0
    %2001 = vmatpush1.msra.mxu0 0.0
    %2002 = vmatprep.subr.mxu0 0.0
    %2003 = vmatpush1.msra.mxu0 0.0
    %2004 = vmatprep.subr.mxu0 0.0
    %2005 = vmatpush1.msra.mxu0 0.0
    %2006 = vmatprep.subr.mxu0 0.0
    %2007 = vmatpush1.msra.mxu0 0.0
    %2008 = vmatprep.subr.mxu0 0.0
    %2009 = vmatpush1.msra.mxu0 0.0
    %2010 = vmatprep.subr.mxu0 0.0
    %2011 = vmatpush1.msra.mxu0 0.0
    %2012 = vmatprep.subr.mxu0 0.0
    %2013 = vmatpush1.msra.mxu0 0.0
    %2014 = vmatprep.subr.mxu0 0.0
    %2015 = vmatpush1.msra.mxu0 0.0
    %2016 = vmatprep.subr.mxu0 0.0
    %2017 = vmatpush1.msra.mxu0 0.0
    %2018 = vmatprep.subr.mxu0 0.0
    %2019 = vmatpush1.msra.mxu0 0.0
    %2020 = vmatprep.subr.mxu0 0.0
    %2021 = vmatpush1.msra.mxu0 0.0
    %2022 = vmatprep.subr.mxu0 0.0
    %2023 = vmatpush1.msra.mxu0 0.0
    %2024 = vmatprep.subr.mxu0 0.0
    %2025 = vmatpush1.msra.mxu0 0.0
    %2026 = vmatprep.subr.mxu0 0.0
    %2027 = vmatpush1.msra.mxu0 0.0
    %2028 = vmatprep.subr.mxu0 0.0
    %2029 = vmatpush1.msra.mxu0 0.0
    %2030 = vmatprep.subr.mxu0 0.0
    %2031 = vmatpush1.msra.mxu0 0.0
    %2032 = vmatprep.subr.mxu0 0.0
    %2033 = vmatpush1.msra.mxu0 0.0
    %2034 = vmatprep.subr.mxu0 0.0
    %2035 = vmatpush1.msra.mxu0 0.0
    %2036 = vmatprep.subr.mxu0 0.0
    %2037 = vmatpush1.msra.mxu0 0.0
    %2038 = vmatprep.subr.mxu0 0.0
    %2039 = vmatpush1.msra.mxu0 0.0
    %2040 = vmatprep.subr.mxu0 0.0
    %2041 = vmatpush1.msra.mxu0 0.0
    %2042 = vmatprep.subr.mxu0 0.0
    %2043 = vmatpush1.msra.mxu0 0.0
    %2044 = vmatprep.subr.mxu0 0.0
    %2045 = vmatpush1.msra.mxu0 0.0
    %2046 = vmatprep.subr.mxu0 0.0
    %2047 = vmatpush1.msra.mxu0 0.0
    %2048 = vmatprep.subr.mxu0 0.0
    %2049 = vmatpush1.msra.mxu0 0.0
    %2050 = vmatprep.subr.mxu0 0.0
    %2051 = vmatpush1.msra.mxu0 0.0
    %2052 = vmatprep.subr.mxu0 0.0
    %2053 = vmatpush1.msra.mxu0 0.0
    %2054 = vmatprep.mubr.f32.mxu0 0.0
    %2055 = vmatmul.mubr.f32.gmra.mrb[0].mxu0 %v1985
    %v2056 = vpop.f32.mrb[0].mxu0
    %v2057 = vadd.f32 %v1983, %v2056
    %v2058 = vpop.f32.mrb[0].mxu0
    %2059 = vmatprep.mubr.f32.mxu0 0.0
    %2060 = vmatmul.mubr.f32.gmra.mrb[0].mxu0 %v1988
    %v2061 = vpop.f32.mrb[0].mxu0
    %v2062 = vadd.f32 %v1983, %v2061
    %v2063 = vpop.f32.mrb[0].mxu0
    %2064 = vdwg.mxu0
    %v2065 = vmul.f32 %v2057, %v174
    %v2066 = vmul.f32 %v2062, %v176
    %v2067 = vmul.f32 %v2057, %v178
    %v2068 = vmul.f32 %v2062, %v180
    %v2069 = vmul.f32 %v2057, %v182
    %v2070 = vmul.f32 %v2062, %v184
    %v2071 = vmul.f32 %v2057, %v186
    %v2072 = vmul.f32 %v2062, %v188
    %v2073 = vmul.f32 %v2057, %v190
    %v2074 = vmul.f32 %v2062, %v192
    %v2075 = vmul.f32 %v2057, %v194
    %v2076 = vmul.f32 %v2062, %v196
    %v2077 = vmul.f32 %v2057, %v198
    %v2078 = vmul.f32 %v2062, %v200
    %v2079 = vmul.f32 %v2057, %v202
    %v2080 = vmul.f32 %v2062, %v204
    %2097 = vrot.lane.b32.xlu0 %v2065, 96
    %v2098 = vpop.permute.xlu0 %2097
    %2099 = vrot.lane.b32.xlu0 %v2066, 96
    %v2100 = vpop.permute.xlu0 %2099
    %2101 = vrot.lane.b32.xlu0 %v2067, 96
    %v2102 = vpop.permute.xlu0 %2101
    %2103 = vrot.lane.b32.xlu0 %v2068, 96
    %v2104 = vpop.permute.xlu0 %2103
    %2105 = vrot.lane.b32.xlu0 %v2069, 96
    %v2106 = vpop.permute.xlu0 %2105
    %2107 = vrot.lane.b32.xlu0 %v2070, 96
    %v2108 = vpop.permute.xlu0 %2107
    %2109 = vrot.lane.b32.xlu0 %v2071, 96
    %v2110 = vpop.permute.xlu0 %2109
    %2111 = vrot.lane.b32.xlu0 %v2072, 96
    %v2112 = vpop.permute.xlu0 %2111
    %2113 = vrot.lane.b32.xlu0 %v2073, 96
    %v2114 = vpop.permute.xlu0 %2113
    %2115 = vrot.lane.b32.xlu0 %v2074, 96
    %v2116 = vpop.permute.xlu0 %2115
    %2117 = vrot.lane.b32.xlu0 %v2075, 96
    %v2118 = vpop.permute.xlu0 %2117
    %2119 = vrot.lane.b32.xlu0 %v2076, 96
    %v2120 = vpop.permute.xlu0 %2119
    %2121 = vrot.lane.b32.xlu0 %v2077, 96
    %v2122 = vpop.permute.xlu0 %2121
    %2123 = vrot.lane.b32.xlu0 %v2078, 96
    %v2124 = vpop.permute.xlu0 %2123
    %2125 = vrot.lane.b32.xlu0 %v2079, 96
    %v2126 = vpop.permute.xlu0 %2125
    %2127 = vrot.lane.b32.xlu0 %v2080, 96
    %v2128 = vpop.permute.xlu0 %2127
    %v2130 = vsel %vm75, %v2057, 0
    %v2133 = vsel %vm75, %v2062, 0
    %v2135 = vsel %vm75, %v2098, 0
    %v2137 = vsel %vm75, %v2100, 0
    %v2139 = vsel %vm75, %v2102, 0
    %v2141 = vsel %vm75, %v2104, 0
    %v2143 = vsel %vm75, %v2106, 0
    %v2145 = vsel %vm75, %v2108, 0
    %v2147 = vsel %vm75, %v2110, 0
    %v2149 = vsel %vm75, %v2112, 0
    %v2151 = vsel %vm75, %v2114, 0
    %v2153 = vsel %vm75, %v2116, 0
    %v2155 = vsel %vm75, %v2118, 0
    %v2157 = vsel %vm75, %v2120, 0
    %v2159 = vsel %vm75, %v2122, 0
    %v2161 = vsel %vm75, %v2124, 0
    %v2163 = vsel %vm75, %v2126, 0
    %v2165 = vsel %vm75, %v2128, 0
    %2167 = vmatprep.subr.mxu0 0.0
    %2168 = vmatpush1.xpose.msra.mxu0 %v2135
    %2169 = vmatprep.subr.mxu0 0.0
    %2170 = vmatpush1.xpose.msra.mxu0 %v2137
    %2171 = vmatprep.subr.mxu0 0.0
    %2172 = vmatpush1.xpose.msra.mxu0 %v2139
    %2173 = vmatprep.subr.mxu0 0.0
    %2174 = vmatpush1.xpose.msra.mxu0 %v2141
    %2175 = vmatprep.subr.mxu0 0.0
    %2176 = vmatpush1.xpose.msra.mxu0 %v2143
    %2177 = vmatprep.subr.mxu0 0.0
    %2178 = vmatpush1.xpose.msra.mxu0 %v2145
    %2179 = vmatprep.subr.mxu0 0.0
    %2180 = vmatpush1.xpose.msra.mxu0 %v2147
    %2181 = vmatprep.subr.mxu0 0.0
    %2182 = vmatpush1.xpose.msra.mxu0 %v2149
    %2183 = vmatprep.subr.mxu0 0.0
    %2184 = vmatpush1.xpose.msra.mxu0 %v2151
    %2185 = vmatprep.subr.mxu0 0.0
    %2186 = vmatpush1.xpose.msra.mxu0 %v2153
    %2187 = vmatprep.subr.mxu0 0.0
    %2188 = vmatpush1.xpose.msra.mxu0 %v2155
    %2189 = vmatprep.subr.mxu0 0.0
    %2190 = vmatpush1.xpose.msra.mxu0 %v2157
    %2191 = vmatprep.subr.mxu0 0.0
    %2192 = vmatpush1.xpose.msra.mxu0 %v2159
    %2193 = vmatprep.subr.mxu0 0.0
    %2194 = vmatpush1.xpose.msra.mxu0 %v2161
    %2195 = vmatprep.subr.mxu0 0.0
    %2196 = vmatpush1.xpose.msra.mxu0 %v2163
    %2197 = vmatprep.subr.mxu0 0.0
    %2198 = vmatpush1.xpose.msra.mxu0 %v2165
    %2199 = vmatprep.subr.mxu0 0.0
    %2200 = vmatpush1.xpose.msra.mxu0 0.0
    %2201 = vmatprep.subr.mxu0 0.0
    %2202 = vmatpush1.xpose.msra.mxu0 0.0
    %2203 = vmatprep.subr.mxu0 0.0
    %2204 = vmatpush1.xpose.msra.mxu0 0.0
    %2205 = vmatprep.subr.mxu0 0.0
    %2206 = vmatpush1.xpose.msra.mxu0 0.0
    %2207 = vmatprep.subr.mxu0 0.0
    %2208 = vmatpush1.xpose.msra.mxu0 0.0
    %2209 = vmatprep.subr.mxu0 0.0
    %2210 = vmatpush1.xpose.msra.mxu0 0.0
    %2211 = vmatprep.subr.mxu0 0.0
    %2212 = vmatpush1.xpose.msra.mxu0 0.0
    %2213 = vmatprep.subr.mxu0 0.0
    %2214 = vmatpush1.xpose.msra.mxu0 0.0
    %2215 = vmatprep.subr.mxu0 0.0
    %2216 = vmatpush1.xpose.msra.mxu0 0.0
    %2217 = vmatprep.subr.mxu0 0.0
    %2218 = vmatpush1.xpose.msra.mxu0 0.0
    %2219 = vmatprep.subr.mxu0 0.0
    %2220 = vmatpush1.xpose.msra.mxu0 0.0
    %2221 = vmatprep.subr.mxu0 0.0
    %2222 = vmatpush1.xpose.msra.mxu0 0.0
    %2223 = vmatprep.subr.mxu0 0.0
    %2224 = vmatpush1.xpose.msra.mxu0 0.0
    %2225 = vmatprep.subr.mxu0 0.0
    %2226 = vmatpush1.xpose.msra.mxu0 0.0
    %2227 = vmatprep.subr.mxu0 0.0
    %2228 = vmatpush1.xpose.msra.mxu0 0.0
    %2229 = vmatprep.subr.mxu0 0.0
    %2230 = vmatpush1.xpose.msra.mxu0 0.0
    %2231 = vmatprep.mubr.f32.mxu0 0.0
    %2232 = vmatmul.mubr.f32.gmra.mrb[0].mxu0 %v2130
    %v2233 = vpop.f32.mrb[0].mxu0
    %v2234 = vadd.f32 %v41, %v2233
    %v2235 = vpop.f32.mrb[0].mxu0
    %2236 = vmatprep.mubr.f32.mxu0 0.0
    %2237 = vmatmul.mubr.f32.gmra.mrb[0].mxu0 %v2133
    %v2238 = vpop.f32.mrb[0].mxu0
    %v2239 = vadd.f32 %v42, %v2238
    %v2240 = vpop.f32.mrb[0].mxu0
    %2241 = vdwg.mxu0
    %v2242 = vmul.f32 %v2234, 1.442695
    %v2243 = vpow.pop %v2242
    %v2244 = vmul.f32 %v2239, 1.442695
    %v2245 = vpow.pop %v2244
    %2246 = vmatprep.subr.mxu0 0.0
    %2247 = vmatpush1.msra.mxu0 %v55
    %2248 = vmatprep.subr.mxu0 0.0
    %2249 = vmatpush1.msra.mxu0 %v56
    %2250 = vmatprep.subr.mxu0 0.0
    %2251 = vmatpush1.msra.mxu0 %v57
    %2252 = vmatprep.subr.mxu0 0.0
    %2253 = vmatpush1.msra.mxu0 %v58
    %2254 = vmatprep.subr.mxu0 0.0
    %2255 = vmatpush1.msra.mxu0 %v59
    %2256 = vmatprep.subr.mxu0 0.0
    %2257 = vmatpush1.msra.mxu0 %v60
    %2258 = vmatprep.subr.mxu0 0.0
    %2259 = vmatpush1.msra.mxu0 %v61
    %2260 = vmatprep.subr.mxu0 0.0
    %2261 = vmatpush1.msra.mxu0 %v62
    %2262 = vmatprep.subr.mxu0 0.0
    %2263 = vmatpush1.msra.mxu0 %v63
    %2264 = vmatprep.subr.mxu0 0.0
    %2265 = vmatpush1.msra.mxu0 %v64
    %2266 = vmatprep.subr.mxu0 0.0
    %2267 = vmatpush1.msra.mxu0 %v65
    %2268 = vmatprep.subr.mxu0 0.0
    %2269 = vmatpush1.msra.mxu0 %v66
    %2270 = vmatprep.subr.mxu0 0.0
    %2271 = vmatpush1.msra.mxu0 %v67
    %2272 = vmatprep.subr.mxu0 0.0
    %2273 = vmatpush1.msra.mxu0 %v68
    %2274 = vmatprep.subr.mxu0 0.0
    %2275 = vmatpush1.msra.mxu0 %v69
    %2276 = vmatprep.subr.mxu0 0.0
    %2277 = vmatpush1.msra.mxu0 %v70
    %2278 = vmatprep.subr.mxu0 0.0
    %2279 = vmatpush1.msra.mxu0 0.0
    %2280 = vmatprep.subr.mxu0 0.0
    %2281 = vmatpush1.msra.mxu0 0.0
    %2282 = vmatprep.subr.mxu0 0.0
    %2283 = vmatpush1.msra.mxu0 0.0
    %2284 = vmatprep.subr.mxu0 0.0
    %2285 = vmatpush1.msra.mxu0 0.0
    %2286 = vmatprep.subr.mxu0 0.0
    %2287 = vmatpush1.msra.mxu0 0.0
    %2288 = vmatprep.subr.mxu0 0.0
    %2289 = vmatpush1.msra.mxu0 0.0
    %2290 = vmatprep.subr.mxu0 0.0
    %2291 = vmatpush1.msra.mxu0 0.0
    %2292 = vmatprep.subr.mxu0 0.0
    %2293 = vmatpush1.msra.mxu0 0.0
    %2294 = vmatprep.subr.mxu0 0.0
    %2295 = vmatpush1.msra.mxu0 0.0
    %2296 = vmatprep.subr.mxu0 0.0
    %2297 = vmatpush1.msra.mxu0 0.0
    %2298 = vmatprep.subr.mxu0 0.0
    %2299 = vmatpush1.msra.mxu0 0.0
    %2300 = vmatprep.subr.mxu0 0.0
    %2301 = vmatpush1.msra.mxu0 0.0
    %2302 = vmatprep.subr.mxu0 0.0
    %2303 = vmatpush1.msra.mxu0 0.0
    %2304 = vmatprep.subr.mxu0 0.0
    %2305 = vmatpush1.msra.mxu0 0.0
    %2306 = vmatprep.subr.mxu0 0.0
    %2307 = vmatpush1.msra.mxu0 0.0
    %2308 = vmatprep.subr.mxu0 0.0
    %2309 = vmatpush1.msra.mxu0 0.0
    %2310 = vmatprep.mubr.f32.mxu0 0.0
    %2311 = vmatmul.mubr.f32.gmra.mrb[0].mxu0 %v2243
    %v2312 = vpop.f32.mrb[0].mxu0
    %v2313 = vadd.f32 0.0, %v2312
    %v2314 = vpop.f32.mrb[0].mxu0
    %2315 = vmatprep.mubr.f32.mxu0 0.0
    %2316 = vmatmul.mubr.f32.gmra.mrb[0].mxu0 %v2245
    %v2317 = vpop.f32.mrb[0].mxu0
    %v2318 = vadd.f32 0.0, %v2317
    %v2319 = vpop.f32.mrb[0].mxu0
    %2320 = vdwg.mxu0
    %v2321 = vmul.f32 %v2057, %v478
    %v2322 = vmul.f32 %v2062, %v480
    %v2323 = vmul.f32 %v2057, %v482
    %v2324 = vmul.f32 %v2062, %v484
    %v2325 = vmul.f32 %v2057, %v486
    %v2326 = vmul.f32 %v2062, %v488
    %v2327 = vmul.f32 %v2057, %v490
    %v2328 = vmul.f32 %v2062, %v492
    %v2329 = vmul.f32 %v2057, %v494
    %v2330 = vmul.f32 %v2062, %v496
    %v2331 = vmul.f32 %v2057, %v498
    %v2332 = vmul.f32 %v2062, %v500
    %v2333 = vmul.f32 %v2057, %v502
    %v2334 = vmul.f32 %v2062, %v504
    %v2335 = vmul.f32 %v2057, %v506
    %v2336 = vmul.f32 %v2062, %v508
    %2353 = vrot.lane.b32.xlu0 %v2321, 64
    %v2354 = vpop.permute.xlu0 %2353
    %2355 = vrot.lane.b32.xlu0 %v2322, 64
    %v2356 = vpop.permute.xlu0 %2355
    %2357 = vrot.lane.b32.xlu0 %v2323, 64
    %v2358 = vpop.permute.xlu0 %2357
    %2359 = vrot.lane.b32.xlu0 %v2324, 64
    %v2360 = vpop.permute.xlu0 %2359
    %2361 = vrot.lane.b32.xlu0 %v2325, 64
    %v2362 = vpop.permute.xlu0 %2361
    %2363 = vrot.lane.b32.xlu0 %v2326, 64
    %v2364 = vpop.permute.xlu0 %2363
    %2365 = vrot.lane.b32.xlu0 %v2327, 64
    %v2366 = vpop.permute.xlu0 %2365
    %2367 = vrot.lane.b32.xlu0 %v2328, 64
    %v2368 = vpop.permute.xlu0 %2367
    %2369 = vrot.lane.b32.xlu0 %v2329, 64
    %v2370 = vpop.permute.xlu0 %2369
    %2371 = vrot.lane.b32.xlu0 %v2330, 64
    %v2372 = vpop.permute.xlu0 %2371
    %2373 = vrot.lane.b32.xlu0 %v2331, 64
    %v2374 = vpop.permute.xlu0 %2373
    %2375 = vrot.lane.b32.xlu0 %v2332, 64
    %v2376 = vpop.permute.xlu0 %2375
    %2377 = vrot.lane.b32.xlu0 %v2333, 64
    %v2378 = vpop.permute.xlu0 %2377
    %2379 = vrot.lane.b32.xlu0 %v2334, 64
    %v2380 = vpop.permute.xlu0 %2379
    %2381 = vrot.lane.b32.xlu0 %v2335, 64
    %v2382 = vpop.permute.xlu0 %2381
    %2383 = vrot.lane.b32.xlu0 %v2336, 64
    %v2384 = vpop.permute.xlu0 %2383
    %2401 = vmatprep.subr.mxu0 0.0
    %2402 = vmatpush1.msra.mxu0 %v2354
    %2403 = vmatprep.subr.mxu0 0.0
    %2404 = vmatpush1.msra.mxu0 %v2356
    %2405 = vmatprep.subr.mxu0 0.0
    %2406 = vmatpush1.msra.mxu0 %v2358
    %2407 = vmatprep.subr.mxu0 0.0
    %2408 = vmatpush1.msra.mxu0 %v2360
    %2409 = vmatprep.subr.mxu0 0.0
    %2410 = vmatpush1.msra.mxu0 %v2362
    %2411 = vmatprep.subr.mxu0 0.0
    %2412 = vmatpush1.msra.mxu0 %v2364
    %2413 = vmatprep.subr.mxu0 0.0
    %2414 = vmatpush1.msra.mxu0 %v2366
    %2415 = vmatprep.subr.mxu0 0.0
    %2416 = vmatpush1.msra.mxu0 %v2368
    %2417 = vmatprep.subr.mxu0 0.0
    %2418 = vmatpush1.msra.mxu0 %v2370
    %2419 = vmatprep.subr.mxu0 0.0
    %2420 = vmatpush1.msra.mxu0 %v2372
    %2421 = vmatprep.subr.mxu0 0.0
    %2422 = vmatpush1.msra.mxu0 %v2374
    %2423 = vmatprep.subr.mxu0 0.0
    %2424 = vmatpush1.msra.mxu0 %v2376
    %2425 = vmatprep.subr.mxu0 0.0
    %2426 = vmatpush1.msra.mxu0 %v2378
    %2427 = vmatprep.subr.mxu0 0.0
    %2428 = vmatpush1.msra.mxu0 %v2380
    %2429 = vmatprep.subr.mxu0 0.0
    %2430 = vmatpush1.msra.mxu0 %v2382
    %2431 = vmatprep.subr.mxu0 0.0
    %2432 = vmatpush1.msra.mxu0 %v2384
    %2433 = vmatprep.subr.mxu0 0.0
    %2434 = vmatpush1.msra.mxu0 0.0
    %2435 = vmatprep.subr.mxu0 0.0
    %2436 = vmatpush1.msra.mxu0 0.0
    %2437 = vmatprep.subr.mxu0 0.0
    %2438 = vmatpush1.msra.mxu0 0.0
    %2439 = vmatprep.subr.mxu0 0.0
    %2440 = vmatpush1.msra.mxu0 0.0
    %2441 = vmatprep.subr.mxu0 0.0
    %2442 = vmatpush1.msra.mxu0 0.0
    %2443 = vmatprep.subr.mxu0 0.0
    %2444 = vmatpush1.msra.mxu0 0.0
    %2445 = vmatprep.subr.mxu0 0.0
    %2446 = vmatpush1.msra.mxu0 0.0
    %2447 = vmatprep.subr.mxu0 0.0
    %2448 = vmatpush1.msra.mxu0 0.0
    %2449 = vmatprep.subr.mxu0 0.0
    %2450 = vmatpush1.msra.mxu0 0.0
    %2451 = vmatprep.subr.mxu0 0.0
    %2452 = vmatpush1.msra.mxu0 0.0
    %2453 = vmatprep.subr.mxu0 0.0
    %2454 = vmatpush1.msra.mxu0 0.0
    %2455 = vmatprep.subr.mxu0 0.0
    %2456 = vmatpush1.msra.mxu0 0.0
    %2457 = vmatprep.subr.mxu0 0.0
    %2458 = vmatpush1.msra.mxu0 0.0
    %2459 = vmatprep.subr.mxu0 0.0
    %2460 = vmatpush1.msra.mxu0 0.0
    %2461 = vmatprep.subr.mxu0 0.0
    %2462 = vmatpush1.msra.mxu0 0.0
    %2463 = vmatprep.subr.mxu0 0.0
    %2464 = vmatpush1.msra.mxu0 0.0
    %2465 = vmatprep.mubr.f32.mxu0 0.0
    %2466 = vmatmul.mubr.f32.gmra.mrb[0].mxu0 %v2243
    %v2467 = vpop.f32.mrb[0].mxu0
    %v2468 = vadd.f32 0.0, %v2467
    %v2469 = vpop.f32.mrb[0].mxu0
    %2470 = vmatprep.mubr.f32.mxu0 0.0
    %2471 = vmatmul.mubr.f32.gmra.mrb[0].mxu0 %v2245
    %v2472 = vpop.f32.mrb[0].mxu0
    %v2473 = vadd.f32 0.0, %v2472
    %v2474 = vpop.f32.mrb[0].mxu0
    %2475 = vdwg.mxu0
    %v2476 = vrcp.pop %v2313
    %v2477 = vmul.f32 %v2468, %v2476
    %v2478 = vrcp.pop %v2318
    %v2479 = vmul.f32 %v2473, %v2478
    %v2480 = vlaneseq
    %v2481 = vshrl.u32 %v2480, 7
    %v2482 = vsub.s32 1, %v2481
    %v2483 = vrot.slane %v1979, %v2482
    %2488 = vrot.lane.b32.xlu0 %v1969, 32
    %v2489 = vpop.permute.xlu0 %2488
    %2490 = vrot.lane.b32.xlu0 %v1970, 32
    %v2491 = vpop.permute.xlu0 %2490
    %2492 = vrot.lane.b32.xlu0 %v1971, 32
    %v2493 = vpop.permute.xlu0 %2492
    %2494 = vrot.lane.b32.xlu0 %v1972, 32
    %v2495 = vpop.permute.xlu0 %2494
    %v2501 = vsel %vm75, %v2477, 0
    %v2504 = vsel %vm75, %v2479, 0
    %2506 = vmatprep.subr.mxu0 0.0
    %2507 = vmatpush1.msra.mxu0 %v2489
    %2508 = vmatprep.subr.mxu0 0.0
    %2509 = vmatpush1.msra.mxu0 %v2491
    %2510 = vmatprep.subr.mxu0 0.0
    %2511 = vmatpush1.msra.mxu0 %v2493
    %2512 = vmatprep.subr.mxu0 0.0
    %2513 = vmatpush1.msra.mxu0 %v2495
    %2514 = vmatprep.subr.mxu0 0.0
    %2515 = vmatpush1.msra.mxu0 0.0
    %2516 = vmatprep.subr.mxu0 0.0
    %2517 = vmatpush1.msra.mxu0 0.0
    %2518 = vmatprep.subr.mxu0 0.0
    %2519 = vmatpush1.msra.mxu0 0.0
    %2520 = vmatprep.subr.mxu0 0.0
    %2521 = vmatpush1.msra.mxu0 0.0
    %2522 = vmatprep.subr.mxu0 0.0
    %2523 = vmatpush1.msra.mxu0 0.0
    %2524 = vmatprep.subr.mxu0 0.0
    %2525 = vmatpush1.msra.mxu0 0.0
    %2526 = vmatprep.subr.mxu0 0.0
    %2527 = vmatpush1.msra.mxu0 0.0
    %2528 = vmatprep.subr.mxu0 0.0
    %2529 = vmatpush1.msra.mxu0 0.0
    %2530 = vmatprep.subr.mxu0 0.0
    %2531 = vmatpush1.msra.mxu0 0.0
    %2532 = vmatprep.subr.mxu0 0.0
    %2533 = vmatpush1.msra.mxu0 0.0
    %2534 = vmatprep.subr.mxu0 0.0
    %2535 = vmatpush1.msra.mxu0 0.0
    %2536 = vmatprep.subr.mxu0 0.0
    %2537 = vmatpush1.msra.mxu0 0.0
    %2538 = vmatprep.subr.mxu0 0.0
    %2539 = vmatpush1.msra.mxu0 0.0
    %2540 = vmatprep.subr.mxu0 0.0
    %2541 = vmatpush1.msra.mxu0 0.0
    %2542 = vmatprep.subr.mxu0 0.0
    %2543 = vmatpush1.msra.mxu0 0.0
    %2544 = vmatprep.subr.mxu0 0.0
    %2545 = vmatpush1.msra.mxu0 0.0
    %2546 = vmatprep.subr.mxu0 0.0
    %2547 = vmatpush1.msra.mxu0 0.0
    %2548 = vmatprep.subr.mxu0 0.0
    %2549 = vmatpush1.msra.mxu0 0.0
    %2550 = vmatprep.subr.mxu0 0.0
    %2551 = vmatpush1.msra.mxu0 0.0
    %2552 = vmatprep.subr.mxu0 0.0
    %2553 = vmatpush1.msra.mxu0 0.0
    %2554 = vmatprep.subr.mxu0 0.0
    %2555 = vmatpush1.msra.mxu0 0.0
    %2556 = vmatprep.subr.mxu0 0.0
    %2557 = vmatpush1.msra.mxu0 0.0
    %2558 = vmatprep.subr.mxu0 0.0
    %2559 = vmatpush1.msra.mxu0 0.0
    %2560 = vmatprep.subr.mxu0 0.0
    %2561 = vmatpush1.msra.mxu0 0.0
    %2562 = vmatprep.subr.mxu0 0.0
    %2563 = vmatpush1.msra.mxu0 0.0
    %2564 = vmatprep.subr.mxu0 0.0
    %2565 = vmatpush1.msra.mxu0 0.0
    %2566 = vmatprep.subr.mxu0 0.0
    %2567 = vmatpush1.msra.mxu0 0.0
    %2568 = vmatprep.subr.mxu0 0.0
    %2569 = vmatpush1.msra.mxu0 0.0
    %2570 = vmatprep.mubr.f32.mxu0 0.0
    %2571 = vmatmul.mubr.f32.gmra.mrb[0].mxu0 %v2501
    %v2572 = vpop.f32.mrb[0].mxu0
    %v2573 = vadd.f32 %v2483, %v2572
    %v2574 = vpop.f32.mrb[0].mxu0
    %2575 = vmatprep.mubr.f32.mxu0 0.0
    %2576 = vmatmul.mubr.f32.gmra.mrb[0].mxu0 %v2504
    %v2577 = vpop.f32.mrb[0].mxu0
    %v2578 = vadd.f32 %v2483, %v2577
    %v2579 = vpop.f32.mrb[0].mxu0
    %2580 = vdwg.mxu0
    %v2581 = vadd.f32 %v1966, %v2573
    %v2582 = vadd.f32 %v1967, %v2578
    %v2583 = vsel %vm75, %v2581, 0.0
    %2584 = vadd.xlane.f32.xlu0 %v2583
    %v2585 = vpop.xlane.xlu0 %2584
    %v2586 = vsel %vm75, %v2582, 0.0
    %2587 = vadd.xlane.f32.xlu0 %v2586
    %v2588 = vpop.xlane.xlu0 %2587
    %v2589 = vmul.f32 %v2585, %v793
    %v2590 = vmul.f32 %v2588, %v793
    %v2591 = vmul.f32 %v2581, %v2581
    %v2592 = vmul.f32 %v2582, %v2582
    %v2593 = vsel %vm75, %v2591, 0.0
    %2594 = vadd.xlane.f32.xlu0 %v2593
    %v2595 = vpop.xlane.xlu0 %2594
    %v2596 = vsel %vm75, %v2592, 0.0
    %2597 = vadd.xlane.f32.xlu0 %v2596
    %v2598 = vpop.xlane.xlu0 %2597
    %v2599 = vmul.f32 %v2595, %v793
    %v2600 = vmul.f32 %v2598, %v793
    %v2601 = vmul.f32 %v2589, %v2589
    %v2602 = vmul.f32 %v2590, %v2590
    %v2603 = vsub.f32 %v2599, %v2601
    %v2604 = vsub.f32 %v2600, %v2602
    %v2605 = vmax.f32 %v2603, 0.0
    %v2606 = vmax.f32 %v2604, 0.0
    %v2607 = vsub.f32 %v2581, %v2589
    %v2608 = vsub.f32 %v2582, %v2590
    %v2609 = vadd.f32 %v2605, 1e-05
    %v2610 = vadd.f32 %v2606, 1e-05
    %v2611 = vrsqrt.pop %v2609
    %v2612 = vrsqrt.pop %v2610
    %v2613 = vmul.f32 %v2607, %v2611
    %v2614 = vmul.f32 %v2608, %v2612
    %v2615 = vlaneseq
    %v2616 = vshrl.u32 %v2615, 7
    %v2617 = vsub.s32 4, %v2616
    %v2618 = vrot.slane %v1979, %v2617
    %v2619 = vmul.f32 %v2613, %v2618
    %v2620 = vmul.f32 %v2614, %v2618
    %v2621 = vlaneseq
    %v2622 = vshrl.u32 %v2621, 7
    %v2623 = vsub.s32 5, %v2622
    %v2624 = vrot.slane %v1979, %v2623
    %v2625 = vadd.f32 %v2619, %v2624
    %v2626 = vadd.f32 %v2620, %v2624
    %v2627 = vlaneseq
    %v2628 = vshrl.u32 %v2627, 7
    %v2629 = vsub.s32 2, %v2628
    %v2630 = vrot.slane %v1979, %v2629
    %v2632 = vsel %vm75, %v2625, 0
    %v2635 = vsel %vm75, %v2626, 0
    %2637 = vmatprep.subr.mxu0 0.0
    %2638 = vmatpush1.msra.mxu0 %v1974
    %2639 = vmatprep.subr.mxu0 0.0
    %2640 = vmatpush1.msra.mxu0 %v1975
    %2641 = vmatprep.subr.mxu0 0.0
    %2642 = vmatpush1.msra.mxu0 %v1976
    %2643 = vmatprep.subr.mxu0 0.0
    %2644 = vmatpush1.msra.mxu0 %v1977
    %2645 = vmatprep.subr.mxu0 0.0
    %2646 = vmatpush1.msra.mxu0 0.0
    %2647 = vmatprep.subr.mxu0 0.0
    %2648 = vmatpush1.msra.mxu0 0.0
    %2649 = vmatprep.subr.mxu0 0.0
    %2650 = vmatpush1.msra.mxu0 0.0
    %2651 = vmatprep.subr.mxu0 0.0
    %2652 = vmatpush1.msra.mxu0 0.0
    %2653 = vmatprep.subr.mxu0 0.0
    %2654 = vmatpush1.msra.mxu0 0.0
    %2655 = vmatprep.subr.mxu0 0.0
    %2656 = vmatpush1.msra.mxu0 0.0
    %2657 = vmatprep.subr.mxu0 0.0
    %2658 = vmatpush1.msra.mxu0 0.0
    %2659 = vmatprep.subr.mxu0 0.0
    %2660 = vmatpush1.msra.mxu0 0.0
    %2661 = vmatprep.subr.mxu0 0.0
    %2662 = vmatpush1.msra.mxu0 0.0
    %2663 = vmatprep.subr.mxu0 0.0
    %2664 = vmatpush1.msra.mxu0 0.0
    %2665 = vmatprep.subr.mxu0 0.0
    %2666 = vmatpush1.msra.mxu0 0.0
    %2667 = vmatprep.subr.mxu0 0.0
    %2668 = vmatpush1.msra.mxu0 0.0
    %2669 = vmatprep.subr.mxu0 0.0
    %2670 = vmatpush1.msra.mxu0 0.0
    %2671 = vmatprep.subr.mxu0 0.0
    %2672 = vmatpush1.msra.mxu0 0.0
    %2673 = vmatprep.subr.mxu0 0.0
    %2674 = vmatpush1.msra.mxu0 0.0
    %2675 = vmatprep.subr.mxu0 0.0
    %2676 = vmatpush1.msra.mxu0 0.0
    %2677 = vmatprep.subr.mxu0 0.0
    %2678 = vmatpush1.msra.mxu0 0.0
    %2679 = vmatprep.subr.mxu0 0.0
    %2680 = vmatpush1.msra.mxu0 0.0
    %2681 = vmatprep.subr.mxu0 0.0
    %2682 = vmatpush1.msra.mxu0 0.0
    %2683 = vmatprep.subr.mxu0 0.0
    %2684 = vmatpush1.msra.mxu0 0.0
    %2685 = vmatprep.subr.mxu0 0.0
    %2686 = vmatpush1.msra.mxu0 0.0
    %2687 = vmatprep.subr.mxu0 0.0
    %2688 = vmatpush1.msra.mxu0 0.0
    %2689 = vmatprep.subr.mxu0 0.0
    %2690 = vmatpush1.msra.mxu0 0.0
    %2691 = vmatprep.subr.mxu0 0.0
    %2692 = vmatpush1.msra.mxu0 0.0
    %2693 = vmatprep.subr.mxu0 0.0
    %2694 = vmatpush1.msra.mxu0 0.0
    %2695 = vmatprep.subr.mxu0 0.0
    %2696 = vmatpush1.msra.mxu0 0.0
    %2697 = vmatprep.subr.mxu0 0.0
    %2698 = vmatpush1.msra.mxu0 0.0
    %2699 = vmatprep.subr.mxu0 0.0
    %2700 = vmatpush1.msra.mxu0 0.0
    %2701 = vmatprep.mubr.f32.mxu0 0.0
    %2702 = vmatmul.mubr.f32.gmra.mrb[0].mxu0 %v2632
    %v2703 = vpop.f32.mrb[0].mxu0
    %v2704 = vadd.f32 %v2630, %v2703
    %v2705 = vpop.f32.mrb[0].mxu0
    %2706 = vmatprep.mubr.f32.mxu0 0.0
    %2707 = vmatmul.mubr.f32.gmra.mrb[0].mxu0 %v2635
    %v2708 = vpop.f32.mrb[0].mxu0
    %v2709 = vadd.f32 %v2630, %v2708
    %v2710 = vpop.f32.mrb[0].mxu0
    %2711 = vdwg.mxu0
    %v2712 = vmax.f32 %v2704, 0.0
    %v2713 = vmax.f32 %v2709, 0.0
    %v2714 = vlaneseq
    %v2715 = vshrl.u32 %v2714, 7
    %v2716 = vsub.s32 3, %v2715
    %v2717 = vrot.slane %v1979, %v2716
    %2722 = vrot.lane.b32.xlu0 %v1974, 64
    %v2723 = vpop.permute.xlu0 %2722
    %2724 = vrot.lane.b32.xlu0 %v1975, 64
    %v2725 = vpop.permute.xlu0 %2724
    %2726 = vrot.lane.b32.xlu0 %v1976, 64
    %v2727 = vpop.permute.xlu0 %2726
    %2728 = vrot.lane.b32.xlu0 %v1977, 64
    %v2729 = vpop.permute.xlu0 %2728
    %v2731 = vsel %vm935, %v2712, 0
    %v2734 = vsel %vm935, %v2713, 0
    %v2736 = vsel %vm935, %v2723, 0
    %v2738 = vsel %vm935, %v2725, 0
    %v2740 = vsel %vm935, %v2727, 0
    %v2742 = vsel %vm935, %v2729, 0
    %2744 = vmatprep.subr.mxu0 0.0
    %2745 = vmatpush1.xpose.msra.mxu0 %v2736
    %2746 = vmatprep.subr.mxu0 0.0
    %2747 = vmatpush1.xpose.msra.mxu0 %v2738
    %2748 = vmatprep.subr.mxu0 0.0
    %2749 = vmatpush1.xpose.msra.mxu0 %v2740
    %2750 = vmatprep.subr.mxu0 0.0
    %2751 = vmatpush1.xpose.msra.mxu0 %v2742
    %2752 = vmatprep.subr.mxu0 0.0
    %2753 = vmatpush1.xpose.msra.mxu0 0.0
    %2754 = vmatprep.subr.mxu0 0.0
    %2755 = vmatpush1.xpose.msra.mxu0 0.0
    %2756 = vmatprep.subr.mxu0 0.0
    %2757 = vmatpush1.xpose.msra.mxu0 0.0
    %2758 = vmatprep.subr.mxu0 0.0
    %2759 = vmatpush1.xpose.msra.mxu0 0.0
    %2760 = vmatprep.subr.mxu0 0.0
    %2761 = vmatpush1.xpose.msra.mxu0 0.0
    %2762 = vmatprep.subr.mxu0 0.0
    %2763 = vmatpush1.xpose.msra.mxu0 0.0
    %2764 = vmatprep.subr.mxu0 0.0
    %2765 = vmatpush1.xpose.msra.mxu0 0.0
    %2766 = vmatprep.subr.mxu0 0.0
    %2767 = vmatpush1.xpose.msra.mxu0 0.0
    %2768 = vmatprep.subr.mxu0 0.0
    %2769 = vmatpush1.xpose.msra.mxu0 0.0
    %2770 = vmatprep.subr.mxu0 0.0
    %2771 = vmatpush1.xpose.msra.mxu0 0.0
    %2772 = vmatprep.subr.mxu0 0.0
    %2773 = vmatpush1.xpose.msra.mxu0 0.0
    %2774 = vmatprep.subr.mxu0 0.0
    %2775 = vmatpush1.xpose.msra.mxu0 0.0
    %2776 = vmatprep.subr.mxu0 0.0
    %2777 = vmatpush1.xpose.msra.mxu0 0.0
    %2778 = vmatprep.subr.mxu0 0.0
    %2779 = vmatpush1.xpose.msra.mxu0 0.0
    %2780 = vmatprep.subr.mxu0 0.0
    %2781 = vmatpush1.xpose.msra.mxu0 0.0
    %2782 = vmatprep.subr.mxu0 0.0
    %2783 = vmatpush1.xpose.msra.mxu0 0.0
    %2784 = vmatprep.subr.mxu0 0.0
    %2785 = vmatpush1.xpose.msra.mxu0 0.0
    %2786 = vmatprep.subr.mxu0 0.0
    %2787 = vmatpush1.xpose.msra.mxu0 0.0
    %2788 = vmatprep.subr.mxu0 0.0
    %2789 = vmatpush1.xpose.msra.mxu0 0.0
    %2790 = vmatprep.subr.mxu0 0.0
    %2791 = vmatpush1.xpose.msra.mxu0 0.0
    %2792 = vmatprep.subr.mxu0 0.0
    %2793 = vmatpush1.xpose.msra.mxu0 0.0
    %2794 = vmatprep.subr.mxu0 0.0
    %2795 = vmatpush1.xpose.msra.mxu0 0.0
    %2796 = vmatprep.subr.mxu0 0.0
    %2797 = vmatpush1.xpose.msra.mxu0 0.0
    %2798 = vmatprep.subr.mxu0 0.0
    %2799 = vmatpush1.xpose.msra.mxu0 0.0
    %2800 = vmatprep.subr.mxu0 0.0
    %2801 = vmatpush1.xpose.msra.mxu0 0.0
    %2802 = vmatprep.subr.mxu0 0.0
    %2803 = vmatpush1.xpose.msra.mxu0 0.0
    %2804 = vmatprep.subr.mxu0 0.0
    %2805 = vmatpush1.xpose.msra.mxu0 0.0
    %2806 = vmatprep.subr.mxu0 0.0
    %2807 = vmatpush1.xpose.msra.mxu0 0.0
    %2808 = vmatprep.mubr.f32.mxu0 0.0
    %2809 = vmatmul.mubr.f32.gmra.mrb[0].mxu0 %v2731
    %v2810 = vpop.f32.mrb[0].mxu0
    %v2811 = vadd.f32 %v2717, %v2810
    %v2812 = vpop.f32.mrb[0].mxu0
    %2813 = vmatprep.mubr.f32.mxu0 0.0
    %2814 = vmatmul.mubr.f32.gmra.mrb[0].mxu0 %v2734
    %v2815 = vpop.f32.mrb[0].mxu0
    %v2816 = vadd.f32 %v2717, %v2815
    %v2817 = vpop.f32.mrb[0].mxu0
    %2818 = vdwg.mxu0
    %v2819 = vadd.f32 %v2625, %v2811
    %v2820 = vadd.f32 %v2626, %v2816
    %v2821 = vsel %vm75, %v2819, 0.0
    %2822 = vadd.xlane.f32.xlu0 %v2821
    %v2823 = vpop.xlane.xlu0 %2822
    %v2824 = vsel %vm75, %v2820, 0.0
    %2825 = vadd.xlane.f32.xlu0 %v2824
    %v2826 = vpop.xlane.xlu0 %2825
    %v2827 = vmul.f32 %v2823, %v793
    %v2828 = vmul.f32 %v2826, %v793
    %v2829 = vmul.f32 %v2819, %v2819
    %v2830 = vmul.f32 %v2820, %v2820
    %v2831 = vsel %vm75, %v2829, 0.0
    %2832 = vadd.xlane.f32.xlu0 %v2831
    %v2833 = vpop.xlane.xlu0 %2832
    %v2834 = vsel %vm75, %v2830, 0.0
    %2835 = vadd.xlane.f32.xlu0 %v2834
    %v2836 = vpop.xlane.xlu0 %2835
    %v2837 = vmul.f32 %v2833, %v793
    %v2838 = vmul.f32 %v2836, %v793
    %v2839 = vmul.f32 %v2827, %v2827
    %v2840 = vmul.f32 %v2828, %v2828
    %v2841 = vsub.f32 %v2837, %v2839
    %v2842 = vsub.f32 %v2838, %v2840
    %v2843 = vmax.f32 %v2841, 0.0
    %v2844 = vmax.f32 %v2842, 0.0
    %v2845 = vsub.f32 %v2819, %v2827
    %v2846 = vsub.f32 %v2820, %v2828
    %v2847 = vadd.f32 %v2843, 1e-05
    %v2848 = vadd.f32 %v2844, 1e-05
    %v2849 = vrsqrt.pop %v2847
    %v2850 = vrsqrt.pop %v2848
    %v2851 = vmul.f32 %v2845, %v2849
    %v2852 = vmul.f32 %v2846, %v2850
    %v2853 = vlaneseq
    %v2854 = vshrl.u32 %v2853, 7
    %v2855 = vsub.s32 6, %v2854
    %v2856 = vrot.slane %v1979, %v2855
    %v2857 = vmul.f32 %v2851, %v2856
    %v2858 = vmul.f32 %v2852, %v2856
    %v2859 = vlaneseq
    %v2860 = vshrl.u32 %v2859, 7
    %v2861 = vsub.s32 7, %v2860
    %v2862 = vrot.slane %v1979, %v2861
    %v2863 = vadd.f32 %v2857, %v2862
    %v2864 = vadd.f32 %v2858, %v2862
    %s2865 = scalar_lea.vmem %s1, 96
    %v2866 = vld [vmem:[%s2865] sm:$0xff]
    %v2867 = vld [vmem:[%s2865 + $0x8] sm:$0xff]
    %v2868 = vld [vmem:[%s2865 + $0x10] sm:$0xff]
    %v2869 = vld [vmem:[%s2865 + $0x18] sm:$0xff]
    %s2870 = scalar_lea.vmem [#allocation2], 96
    %v2871 = vld [vmem:[%s2870] sm:$0xff]
    %v2872 = vld [vmem:[%s2870 + $0x8] sm:$0xff]
    %v2873 = vld [vmem:[%s2870 + $0x10] sm:$0xff]
    %v2874 = vld [vmem:[%s2870 + $0x18] sm:$0xff]
    %s2875 = scalar_lea.vmem %s3, 24
    %v2876 = vld [vmem:[%s2875] sm:$0xff]
    %v2877 = vlaneseq
    %v2878 = vshrl.u32 %v2877, 7
    %v2879 = vsub.s32 0, %v2878
    %v2880 = vrot.slane %v2876, %v2879
    %v2882 = vsel %vm75, %v2863, 0
    %v2885 = vsel %vm75, %v2864, 0
    %2887 = vmatprep.subr.mxu0 0.0
    %2888 = vmatpush1.msra.mxu0 %v2866
    %2889 = vmatprep.subr.mxu0 0.0
    %2890 = vmatpush1.msra.mxu0 %v2867
    %2891 = vmatprep.subr.mxu0 0.0
    %2892 = vmatpush1.msra.mxu0 %v2868
    %2893 = vmatprep.subr.mxu0 0.0
    %2894 = vmatpush1.msra.mxu0 %v2869
    %2895 = vmatprep.subr.mxu0 0.0
    %2896 = vmatpush1.msra.mxu0 0.0
    %2897 = vmatprep.subr.mxu0 0.0
    %2898 = vmatpush1.msra.mxu0 0.0
    %2899 = vmatprep.subr.mxu0 0.0
    %2900 = vmatpush1.msra.mxu0 0.0
    %2901 = vmatprep.subr.mxu0 0.0
    %2902 = vmatpush1.msra.mxu0 0.0
    %2903 = vmatprep.subr.mxu0 0.0
    %2904 = vmatpush1.msra.mxu0 0.0
    %2905 = vmatprep.subr.mxu0 0.0
    %2906 = vmatpush1.msra.mxu0 0.0
    %2907 = vmatprep.subr.mxu0 0.0
    %2908 = vmatpush1.msra.mxu0 0.0
    %2909 = vmatprep.subr.mxu0 0.0
    %2910 = vmatpush1.msra.mxu0 0.0
    %2911 = vmatprep.subr.mxu0 0.0
    %2912 = vmatpush1.msra.mxu0 0.0
    %2913 = vmatprep.subr.mxu0 0.0
    %2914 = vmatpush1.msra.mxu0 0.0
    %2915 = vmatprep.subr.mxu0 0.0
    %2916 = vmatpush1.msra.mxu0 0.0
    %2917 = vmatprep.subr.mxu0 0.0
    %2918 = vmatpush1.msra.mxu0 0.0
    %2919 = vmatprep.subr.mxu0 0.0
    %2920 = vmatpush1.msra.mxu0 0.0
    %2921 = vmatprep.subr.mxu0 0.0
    %2922 = vmatpush1.msra.mxu0 0.0
    %2923 = vmatprep.subr.mxu0 0.0
    %2924 = vmatpush1.msra.mxu0 0.0
    %2925 = vmatprep.subr.mxu0 0.0
    %2926 = vmatpush1.msra.mxu0 0.0
    %2927 = vmatprep.subr.mxu0 0.0
    %2928 = vmatpush1.msra.mxu0 0.0
    %2929 = vmatprep.subr.mxu0 0.0
    %2930 = vmatpush1.msra.mxu0 0.0
    %2931 = vmatprep.subr.mxu0 0.0
    %2932 = vmatpush1.msra.mxu0 0.0
    %2933 = vmatprep.subr.mxu0 0.0
    %2934 = vmatpush1.msra.mxu0 0.0
    %2935 = vmatprep.subr.mxu0 0.0
    %2936 = vmatpush1.msra.mxu0 0.0
    %2937 = vmatprep.subr.mxu0 0.0
    %2938 = vmatpush1.msra.mxu0 0.0
    %2939 = vmatprep.subr.mxu0 0.0
    %2940 = vmatpush1.msra.mxu0 0.0
    %2941 = vmatprep.subr.mxu0 0.0
    %2942 = vmatpush1.msra.mxu0 0.0
    %2943 = vmatprep.subr.mxu0 0.0
    %2944 = vmatpush1.msra.mxu0 0.0
    %2945 = vmatprep.subr.mxu0 0.0
    %2946 = vmatpush1.msra.mxu0 0.0
    %2947 = vmatprep.subr.mxu0 0.0
    %2948 = vmatpush1.msra.mxu0 0.0
    %2949 = vmatprep.subr.mxu0 0.0
    %2950 = vmatpush1.msra.mxu0 0.0
    %2951 = vmatprep.mubr.f32.mxu0 0.0
    %2952 = vmatmul.mubr.f32.gmra.mrb[0].mxu0 %v2882
    %v2953 = vpop.f32.mrb[0].mxu0
    %v2954 = vadd.f32 %v2880, %v2953
    %v2955 = vpop.f32.mrb[0].mxu0
    %2956 = vmatprep.mubr.f32.mxu0 0.0
    %2957 = vmatmul.mubr.f32.gmra.mrb[0].mxu0 %v2885
    %v2958 = vpop.f32.mrb[0].mxu0
    %v2959 = vadd.f32 %v2880, %v2958
    %v2960 = vpop.f32.mrb[0].mxu0
    %2961 = vdwg.mxu0
    %v2962 = vmul.f32 %v2954, %v174
    %v2963 = vmul.f32 %v2959, %v176
    %v2964 = vmul.f32 %v2954, %v178
    %v2965 = vmul.f32 %v2959, %v180
    %v2966 = vmul.f32 %v2954, %v182
    %v2967 = vmul.f32 %v2959, %v184
    %v2968 = vmul.f32 %v2954, %v186
    %v2969 = vmul.f32 %v2959, %v188
    %v2970 = vmul.f32 %v2954, %v190
    %v2971 = vmul.f32 %v2959, %v192
    %v2972 = vmul.f32 %v2954, %v194
    %v2973 = vmul.f32 %v2959, %v196
    %v2974 = vmul.f32 %v2954, %v198
    %v2975 = vmul.f32 %v2959, %v200
    %v2976 = vmul.f32 %v2954, %v202
    %v2977 = vmul.f32 %v2959, %v204
    %2994 = vrot.lane.b32.xlu0 %v2962, 96
    %v2995 = vpop.permute.xlu0 %2994
    %2996 = vrot.lane.b32.xlu0 %v2963, 96
    %v2997 = vpop.permute.xlu0 %2996
    %2998 = vrot.lane.b32.xlu0 %v2964, 96
    %v2999 = vpop.permute.xlu0 %2998
    %3000 = vrot.lane.b32.xlu0 %v2965, 96
    %v3001 = vpop.permute.xlu0 %3000
    %3002 = vrot.lane.b32.xlu0 %v2966, 96
    %v3003 = vpop.permute.xlu0 %3002
    %3004 = vrot.lane.b32.xlu0 %v2967, 96
    %v3005 = vpop.permute.xlu0 %3004
    %3006 = vrot.lane.b32.xlu0 %v2968, 96
    %v3007 = vpop.permute.xlu0 %3006
    %3008 = vrot.lane.b32.xlu0 %v2969, 96
    %v3009 = vpop.permute.xlu0 %3008
    %3010 = vrot.lane.b32.xlu0 %v2970, 96
    %v3011 = vpop.permute.xlu0 %3010
    %3012 = vrot.lane.b32.xlu0 %v2971, 96
    %v3013 = vpop.permute.xlu0 %3012
    %3014 = vrot.lane.b32.xlu0 %v2972, 96
    %v3015 = vpop.permute.xlu0 %3014
    %3016 = vrot.lane.b32.xlu0 %v2973, 96
    %v3017 = vpop.permute.xlu0 %3016
    %3018 = vrot.lane.b32.xlu0 %v2974, 96
    %v3019 = vpop.permute.xlu0 %3018
    %3020 = vrot.lane.b32.xlu0 %v2975, 96
    %v3021 = vpop.permute.xlu0 %3020
    %3022 = vrot.lane.b32.xlu0 %v2976, 96
    %v3023 = vpop.permute.xlu0 %3022
    %3024 = vrot.lane.b32.xlu0 %v2977, 96
    %v3025 = vpop.permute.xlu0 %3024
    %v3027 = vsel %vm75, %v2954, 0
    %v3030 = vsel %vm75, %v2959, 0
    %v3032 = vsel %vm75, %v2995, 0
    %v3034 = vsel %vm75, %v2997, 0
    %v3036 = vsel %vm75, %v2999, 0
    %v3038 = vsel %vm75, %v3001, 0
    %v3040 = vsel %vm75, %v3003, 0
    %v3042 = vsel %vm75, %v3005, 0
    %v3044 = vsel %vm75, %v3007, 0
    %v3046 = vsel %vm75, %v3009, 0
    %v3048 = vsel %vm75, %v3011, 0
    %v3050 = vsel %vm75, %v3013, 0
    %v3052 = vsel %vm75, %v3015, 0
    %v3054 = vsel %vm75, %v3017, 0
    %v3056 = vsel %vm75, %v3019, 0
    %v3058 = vsel %vm75, %v3021, 0
    %v3060 = vsel %vm75, %v3023, 0
    %v3062 = vsel %vm75, %v3025, 0
    %3064 = vmatprep.subr.mxu0 0.0
    %3065 = vmatpush1.xpose.msra.mxu0 %v3032
    %3066 = vmatprep.subr.mxu0 0.0
    %3067 = vmatpush1.xpose.msra.mxu0 %v3034
    %3068 = vmatprep.subr.mxu0 0.0
    %3069 = vmatpush1.xpose.msra.mxu0 %v3036
    %3070 = vmatprep.subr.mxu0 0.0
    %3071 = vmatpush1.xpose.msra.mxu0 %v3038
    %3072 = vmatprep.subr.mxu0 0.0
    %3073 = vmatpush1.xpose.msra.mxu0 %v3040
    %3074 = vmatprep.subr.mxu0 0.0
    %3075 = vmatpush1.xpose.msra.mxu0 %v3042
    %3076 = vmatprep.subr.mxu0 0.0
    %3077 = vmatpush1.xpose.msra.mxu0 %v3044
    %3078 = vmatprep.subr.mxu0 0.0
    %3079 = vmatpush1.xpose.msra.mxu0 %v3046
    %3080 = vmatprep.subr.mxu0 0.0
    %3081 = vmatpush1.xpose.msra.mxu0 %v3048
    %3082 = vmatprep.subr.mxu0 0.0
    %3083 = vmatpush1.xpose.msra.mxu0 %v3050
    %3084 = vmatprep.subr.mxu0 0.0
    %3085 = vmatpush1.xpose.msra.mxu0 %v3052
    %3086 = vmatprep.subr.mxu0 0.0
    %3087 = vmatpush1.xpose.msra.mxu0 %v3054
    %3088 = vmatprep.subr.mxu0 0.0
    %3089 = vmatpush1.xpose.msra.mxu0 %v3056
    %3090 = vmatprep.subr.mxu0 0.0
    %3091 = vmatpush1.xpose.msra.mxu0 %v3058
    %3092 = vmatprep.subr.mxu0 0.0
    %3093 = vmatpush1.xpose.msra.mxu0 %v3060
    %3094 = vmatprep.subr.mxu0 0.0
    %3095 = vmatpush1.xpose.msra.mxu0 %v3062
    %3096 = vmatprep.subr.mxu0 0.0
    %3097 = vmatpush1.xpose.msra.mxu0 0.0
    %3098 = vmatprep.subr.mxu0 0.0
    %3099 = vmatpush1.xpose.msra.mxu0 0.0
    %3100 = vmatprep.subr.mxu0 0.0
    %3101 = vmatpush1.xpose.msra.mxu0 0.0
    %3102 = vmatprep.subr.mxu0 0.0
    %3103 = vmatpush1.xpose.msra.mxu0 0.0
    %3104 = vmatprep.subr.mxu0 0.0
    %3105 = vmatpush1.xpose.msra.mxu0 0.0
    %3106 = vmatprep.subr.mxu0 0.0
    %3107 = vmatpush1.xpose.msra.mxu0 0.0
    %3108 = vmatprep.subr.mxu0 0.0
    %3109 = vmatpush1.xpose.msra.mxu0 0.0
    %3110 = vmatprep.subr.mxu0 0.0
    %3111 = vmatpush1.xpose.msra.mxu0 0.0
    %3112 = vmatprep.subr.mxu0 0.0
    %3113 = vmatpush1.xpose.msra.mxu0 0.0
    %3114 = vmatprep.subr.mxu0 0.0
    %3115 = vmatpush1.xpose.msra.mxu0 0.0
    %3116 = vmatprep.subr.mxu0 0.0
    %3117 = vmatpush1.xpose.msra.mxu0 0.0
    %3118 = vmatprep.subr.mxu0 0.0
    %3119 = vmatpush1.xpose.msra.mxu0 0.0
    %3120 = vmatprep.subr.mxu0 0.0
    %3121 = vmatpush1.xpose.msra.mxu0 0.0
    %3122 = vmatprep.subr.mxu0 0.0
    %3123 = vmatpush1.xpose.msra.mxu0 0.0
    %3124 = vmatprep.subr.mxu0 0.0
    %3125 = vmatpush1.xpose.msra.mxu0 0.0
    %3126 = vmatprep.subr.mxu0 0.0
    %3127 = vmatpush1.xpose.msra.mxu0 0.0
    %3128 = vmatprep.mubr.f32.mxu0 0.0
    %3129 = vmatmul.mubr.f32.gmra.mrb[0].mxu0 %v3027
    %v3130 = vpop.f32.mrb[0].mxu0
    %v3131 = vadd.f32 %v41, %v3130
    %v3132 = vpop.f32.mrb[0].mxu0
    %3133 = vmatprep.mubr.f32.mxu0 0.0
    %3134 = vmatmul.mubr.f32.gmra.mrb[0].mxu0 %v3030
    %v3135 = vpop.f32.mrb[0].mxu0
    %v3136 = vadd.f32 %v42, %v3135
    %v3137 = vpop.f32.mrb[0].mxu0
    %3138 = vdwg.mxu0
    %v3139 = vmul.f32 %v3131, 1.442695
    %v3140 = vpow.pop %v3139
    %v3141 = vmul.f32 %v3136, 1.442695
    %v3142 = vpow.pop %v3141
    %3143 = vmatprep.subr.mxu0 0.0
    %3144 = vmatpush1.msra.mxu0 %v55
    %3145 = vmatprep.subr.mxu0 0.0
    %3146 = vmatpush1.msra.mxu0 %v56
    %3147 = vmatprep.subr.mxu0 0.0
    %3148 = vmatpush1.msra.mxu0 %v57
    %3149 = vmatprep.subr.mxu0 0.0
    %3150 = vmatpush1.msra.mxu0 %v58
    %3151 = vmatprep.subr.mxu0 0.0
    %3152 = vmatpush1.msra.mxu0 %v59
    %3153 = vmatprep.subr.mxu0 0.0
    %3154 = vmatpush1.msra.mxu0 %v60
    %3155 = vmatprep.subr.mxu0 0.0
    %3156 = vmatpush1.msra.mxu0 %v61
    %3157 = vmatprep.subr.mxu0 0.0
    %3158 = vmatpush1.msra.mxu0 %v62
    %3159 = vmatprep.subr.mxu0 0.0
    %3160 = vmatpush1.msra.mxu0 %v63
    %3161 = vmatprep.subr.mxu0 0.0
    %3162 = vmatpush1.msra.mxu0 %v64
    %3163 = vmatprep.subr.mxu0 0.0
    %3164 = vmatpush1.msra.mxu0 %v65
    %3165 = vmatprep.subr.mxu0 0.0
    %3166 = vmatpush1.msra.mxu0 %v66
    %3167 = vmatprep.subr.mxu0 0.0
    %3168 = vmatpush1.msra.mxu0 %v67
    %3169 = vmatprep.subr.mxu0 0.0
    %3170 = vmatpush1.msra.mxu0 %v68
    %3171 = vmatprep.subr.mxu0 0.0
    %3172 = vmatpush1.msra.mxu0 %v69
    %3173 = vmatprep.subr.mxu0 0.0
    %3174 = vmatpush1.msra.mxu0 %v70
    %3175 = vmatprep.subr.mxu0 0.0
    %3176 = vmatpush1.msra.mxu0 0.0
    %3177 = vmatprep.subr.mxu0 0.0
    %3178 = vmatpush1.msra.mxu0 0.0
    %3179 = vmatprep.subr.mxu0 0.0
    %3180 = vmatpush1.msra.mxu0 0.0
    %3181 = vmatprep.subr.mxu0 0.0
    %3182 = vmatpush1.msra.mxu0 0.0
    %3183 = vmatprep.subr.mxu0 0.0
    %3184 = vmatpush1.msra.mxu0 0.0
    %3185 = vmatprep.subr.mxu0 0.0
    %3186 = vmatpush1.msra.mxu0 0.0
    %3187 = vmatprep.subr.mxu0 0.0
    %3188 = vmatpush1.msra.mxu0 0.0
    %3189 = vmatprep.subr.mxu0 0.0
    %3190 = vmatpush1.msra.mxu0 0.0
    %3191 = vmatprep.subr.mxu0 0.0
    %3192 = vmatpush1.msra.mxu0 0.0
    %3193 = vmatprep.subr.mxu0 0.0
    %3194 = vmatpush1.msra.mxu0 0.0
    %3195 = vmatprep.subr.mxu0 0.0
    %3196 = vmatpush1.msra.mxu0 0.0
    %3197 = vmatprep.subr.mxu0 0.0
    %3198 = vmatpush1.msra.mxu0 0.0
    %3199 = vmatprep.subr.mxu0 0.0
    %3200 = vmatpush1.msra.mxu0 0.0
    %3201 = vmatprep.subr.mxu0 0.0
    %3202 = vmatpush1.msra.mxu0 0.0
    %3203 = vmatprep.subr.mxu0 0.0
    %3204 = vmatpush1.msra.mxu0 0.0
    %3205 = vmatprep.subr.mxu0 0.0
    %3206 = vmatpush1.msra.mxu0 0.0
    %3207 = vmatprep.mubr.f32.mxu0 0.0
    %3208 = vmatmul.mubr.f32.gmra.mrb[0].mxu0 %v3140
    %v3209 = vpop.f32.mrb[0].mxu0
    %v3210 = vadd.f32 0.0, %v3209
    %v3211 = vpop.f32.mrb[0].mxu0
    %3212 = vmatprep.mubr.f32.mxu0 0.0
    %3213 = vmatmul.mubr.f32.gmra.mrb[0].mxu0 %v3142
    %v3214 = vpop.f32.mrb[0].mxu0
    %v3215 = vadd.f32 0.0, %v3214
    %v3216 = vpop.f32.mrb[0].mxu0
    %3217 = vdwg.mxu0
    %v3218 = vmul.f32 %v2954, %v478
    %v3219 = vmul.f32 %v2959, %v480
    %v3220 = vmul.f32 %v2954, %v482
    %v3221 = vmul.f32 %v2959, %v484
    %v3222 = vmul.f32 %v2954, %v486
    %v3223 = vmul.f32 %v2959, %v488
    %v3224 = vmul.f32 %v2954, %v490
    %v3225 = vmul.f32 %v2959, %v492
    %v3226 = vmul.f32 %v2954, %v494
    %v3227 = vmul.f32 %v2959, %v496
    %v3228 = vmul.f32 %v2954, %v498
    %v3229 = vmul.f32 %v2959, %v500
    %v3230 = vmul.f32 %v2954, %v502
    %v3231 = vmul.f32 %v2959, %v504
    %v3232 = vmul.f32 %v2954, %v506
    %v3233 = vmul.f32 %v2959, %v508
    %3250 = vrot.lane.b32.xlu0 %v3218, 64
    %v3251 = vpop.permute.xlu0 %3250
    %3252 = vrot.lane.b32.xlu0 %v3219, 64
    %v3253 = vpop.permute.xlu0 %3252
    %3254 = vrot.lane.b32.xlu0 %v3220, 64
    %v3255 = vpop.permute.xlu0 %3254
    %3256 = vrot.lane.b32.xlu0 %v3221, 64
    %v3257 = vpop.permute.xlu0 %3256
    %3258 = vrot.lane.b32.xlu0 %v3222, 64
    %v3259 = vpop.permute.xlu0 %3258
    %3260 = vrot.lane.b32.xlu0 %v3223, 64
    %v3261 = vpop.permute.xlu0 %3260
    %3262 = vrot.lane.b32.xlu0 %v3224, 64
    %v3263 = vpop.permute.xlu0 %3262
    %3264 = vrot.lane.b32.xlu0 %v3225, 64
    %v3265 = vpop.permute.xlu0 %3264
    %3266 = vrot.lane.b32.xlu0 %v3226, 64
    %v3267 = vpop.permute.xlu0 %3266
    %3268 = vrot.lane.b32.xlu0 %v3227, 64
    %v3269 = vpop.permute.xlu0 %3268
    %3270 = vrot.lane.b32.xlu0 %v3228, 64
    %v3271 = vpop.permute.xlu0 %3270
    %3272 = vrot.lane.b32.xlu0 %v3229, 64
    %v3273 = vpop.permute.xlu0 %3272
    %3274 = vrot.lane.b32.xlu0 %v3230, 64
    %v3275 = vpop.permute.xlu0 %3274
    %3276 = vrot.lane.b32.xlu0 %v3231, 64
    %v3277 = vpop.permute.xlu0 %3276
    %3278 = vrot.lane.b32.xlu0 %v3232, 64
    %v3279 = vpop.permute.xlu0 %3278
    %3280 = vrot.lane.b32.xlu0 %v3233, 64
    %v3281 = vpop.permute.xlu0 %3280
    %3298 = vmatprep.subr.mxu0 0.0
    %3299 = vmatpush1.msra.mxu0 %v3251
    %3300 = vmatprep.subr.mxu0 0.0
    %3301 = vmatpush1.msra.mxu0 %v3253
    %3302 = vmatprep.subr.mxu0 0.0
    %3303 = vmatpush1.msra.mxu0 %v3255
    %3304 = vmatprep.subr.mxu0 0.0
    %3305 = vmatpush1.msra.mxu0 %v3257
    %3306 = vmatprep.subr.mxu0 0.0
    %3307 = vmatpush1.msra.mxu0 %v3259
    %3308 = vmatprep.subr.mxu0 0.0
    %3309 = vmatpush1.msra.mxu0 %v3261
    %3310 = vmatprep.subr.mxu0 0.0
    %3311 = vmatpush1.msra.mxu0 %v3263
    %3312 = vmatprep.subr.mxu0 0.0
    %3313 = vmatpush1.msra.mxu0 %v3265
    %3314 = vmatprep.subr.mxu0 0.0
    %3315 = vmatpush1.msra.mxu0 %v3267
    %3316 = vmatprep.subr.mxu0 0.0
    %3317 = vmatpush1.msra.mxu0 %v3269
    %3318 = vmatprep.subr.mxu0 0.0
    %3319 = vmatpush1.msra.mxu0 %v3271
    %3320 = vmatprep.subr.mxu0 0.0
    %3321 = vmatpush1.msra.mxu0 %v3273
    %3322 = vmatprep.subr.mxu0 0.0
    %3323 = vmatpush1.msra.mxu0 %v3275
    %3324 = vmatprep.subr.mxu0 0.0
    %3325 = vmatpush1.msra.mxu0 %v3277
    %3326 = vmatprep.subr.mxu0 0.0
    %3327 = vmatpush1.msra.mxu0 %v3279
    %3328 = vmatprep.subr.mxu0 0.0
    %3329 = vmatpush1.msra.mxu0 %v3281
    %3330 = vmatprep.subr.mxu0 0.0
    %3331 = vmatpush1.msra.mxu0 0.0
    %3332 = vmatprep.subr.mxu0 0.0
    %3333 = vmatpush1.msra.mxu0 0.0
    %3334 = vmatprep.subr.mxu0 0.0
    %3335 = vmatpush1.msra.mxu0 0.0
    %3336 = vmatprep.subr.mxu0 0.0
    %3337 = vmatpush1.msra.mxu0 0.0
    %3338 = vmatprep.subr.mxu0 0.0
    %3339 = vmatpush1.msra.mxu0 0.0
    %3340 = vmatprep.subr.mxu0 0.0
    %3341 = vmatpush1.msra.mxu0 0.0
    %3342 = vmatprep.subr.mxu0 0.0
    %3343 = vmatpush1.msra.mxu0 0.0
    %3344 = vmatprep.subr.mxu0 0.0
    %3345 = vmatpush1.msra.mxu0 0.0
    %3346 = vmatprep.subr.mxu0 0.0
    %3347 = vmatpush1.msra.mxu0 0.0
    %3348 = vmatprep.subr.mxu0 0.0
    %3349 = vmatpush1.msra.mxu0 0.0
    %3350 = vmatprep.subr.mxu0 0.0
    %3351 = vmatpush1.msra.mxu0 0.0
    %3352 = vmatprep.subr.mxu0 0.0
    %3353 = vmatpush1.msra.mxu0 0.0
    %3354 = vmatprep.subr.mxu0 0.0
    %3355 = vmatpush1.msra.mxu0 0.0
    %3356 = vmatprep.subr.mxu0 0.0
    %3357 = vmatpush1.msra.mxu0 0.0
    %3358 = vmatprep.subr.mxu0 0.0
    %3359 = vmatpush1.msra.mxu0 0.0
    %3360 = vmatprep.subr.mxu0 0.0
    %3361 = vmatpush1.msra.mxu0 0.0
    %3362 = vmatprep.mubr.f32.mxu0 0.0
    %3363 = vmatmul.mubr.f32.gmra.mrb[0].mxu0 %v3140
    %v3364 = vpop.f32.mrb[0].mxu0
    %v3365 = vadd.f32 0.0, %v3364
    %v3366 = vpop.f32.mrb[0].mxu0
    %3367 = vmatprep.mubr.f32.mxu0 0.0
    %3368 = vmatmul.mubr.f32.gmra.mrb[0].mxu0 %v3142
    %v3369 = vpop.f32.mrb[0].mxu0
    %v3370 = vadd.f32 0.0, %v3369
    %v3371 = vpop.f32.mrb[0].mxu0
    %3372 = vdwg.mxu0
    %v3373 = vrcp.pop %v3210
    %v3374 = vmul.f32 %v3365, %v3373
    %v3375 = vrcp.pop %v3215
    %v3376 = vmul.f32 %v3370, %v3375
    %v3377 = vlaneseq
    %v3378 = vshrl.u32 %v3377, 7
    %v3379 = vsub.s32 1, %v3378
    %v3380 = vrot.slane %v2876, %v3379
    %3385 = vrot.lane.b32.xlu0 %v2866, 32
    %v3386 = vpop.permute.xlu0 %3385
    %3387 = vrot.lane.b32.xlu0 %v2867, 32
    %v3388 = vpop.permute.xlu0 %3387
    %3389 = vrot.lane.b32.xlu0 %v2868, 32
    %v3390 = vpop.permute.xlu0 %3389
    %3391 = vrot.lane.b32.xlu0 %v2869, 32
    %v3392 = vpop.permute.xlu0 %3391
    %v3398 = vsel %vm75, %v3374, 0
    %v3401 = vsel %vm75, %v3376, 0
    %3403 = vmatprep.subr.mxu0 0.0
    %3404 = vmatpush1.msra.mxu0 %v3386
    %3405 = vmatprep.subr.mxu0 0.0
    %3406 = vmatpush1.msra.mxu0 %v3388
    %3407 = vmatprep.subr.mxu0 0.0
    %3408 = vmatpush1.msra.mxu0 %v3390
    %3409 = vmatprep.subr.mxu0 0.0
    %3410 = vmatpush1.msra.mxu0 %v3392
    %3411 = vmatprep.subr.mxu0 0.0
    %3412 = vmatpush1.msra.mxu0 0.0
    %3413 = vmatprep.subr.mxu0 0.0
    %3414 = vmatpush1.msra.mxu0 0.0
    %3415 = vmatprep.subr.mxu0 0.0
    %3416 = vmatpush1.msra.mxu0 0.0
    %3417 = vmatprep.subr.mxu0 0.0
    %3418 = vmatpush1.msra.mxu0 0.0
    %3419 = vmatprep.subr.mxu0 0.0
    %3420 = vmatpush1.msra.mxu0 0.0
    %3421 = vmatprep.subr.mxu0 0.0
    %3422 = vmatpush1.msra.mxu0 0.0
    %3423 = vmatprep.subr.mxu0 0.0
    %3424 = vmatpush1.msra.mxu0 0.0
    %3425 = vmatprep.subr.mxu0 0.0
    %3426 = vmatpush1.msra.mxu0 0.0
    %3427 = vmatprep.subr.mxu0 0.0
    %3428 = vmatpush1.msra.mxu0 0.0
    %3429 = vmatprep.subr.mxu0 0.0
    %3430 = vmatpush1.msra.mxu0 0.0
    %3431 = vmatprep.subr.mxu0 0.0
    %3432 = vmatpush1.msra.mxu0 0.0
    %3433 = vmatprep.subr.mxu0 0.0
    %3434 = vmatpush1.msra.mxu0 0.0
    %3435 = vmatprep.subr.mxu0 0.0
    %3436 = vmatpush1.msra.mxu0 0.0
    %3437 = vmatprep.subr.mxu0 0.0
    %3438 = vmatpush1.msra.mxu0 0.0
    %3439 = vmatprep.subr.mxu0 0.0
    %3440 = vmatpush1.msra.mxu0 0.0
    %3441 = vmatprep.subr.mxu0 0.0
    %3442 = vmatpush1.msra.mxu0 0.0
    %3443 = vmatprep.subr.mxu0 0.0
    %3444 = vmatpush1.msra.mxu0 0.0
    %3445 = vmatprep.subr.mxu0 0.0
    %3446 = vmatpush1.msra.mxu0 0.0
    %3447 = vmatprep.subr.mxu0 0.0
    %3448 = vmatpush1.msra.mxu0 0.0
    %3449 = vmatprep.subr.mxu0 0.0
    %3450 = vmatpush1.msra.mxu0 0.0
    %3451 = vmatprep.subr.mxu0 0.0
    %3452 = vmatpush1.msra.mxu0 0.0
    %3453 = vmatprep.subr.mxu0 0.0
    %3454 = vmatpush1.msra.mxu0 0.0
    %3455 = vmatprep.subr.mxu0 0.0
    %3456 = vmatpush1.msra.mxu0 0.0
    %3457 = vmatprep.subr.mxu0 0.0
    %3458 = vmatpush1.msra.mxu0 0.0
    %3459 = vmatprep.subr.mxu0 0.0
    %3460 = vmatpush1.msra.mxu0 0.0
    %3461 = vmatprep.subr.mxu0 0.0
    %3462 = vmatpush1.msra.mxu0 0.0
    %3463 = vmatprep.subr.mxu0 0.0
    %3464 = vmatpush1.msra.mxu0 0.0
    %3465 = vmatprep.subr.mxu0 0.0
    %3466 = vmatpush1.msra.mxu0 0.0
    %3467 = vmatprep.mubr.f32.mxu0 0.0
    %3468 = vmatmul.mubr.f32.gmra.mrb[0].mxu0 %v3398
    %v3469 = vpop.f32.mrb[0].mxu0
    %v3470 = vadd.f32 %v3380, %v3469
    %v3471 = vpop.f32.mrb[0].mxu0
    %3472 = vmatprep.mubr.f32.mxu0 0.0
    %3473 = vmatmul.mubr.f32.gmra.mrb[0].mxu0 %v3401
    %v3474 = vpop.f32.mrb[0].mxu0
    %v3475 = vadd.f32 %v3380, %v3474
    %v3476 = vpop.f32.mrb[0].mxu0
    %3477 = vdwg.mxu0
    %v3478 = vadd.f32 %v2863, %v3470
    %v3479 = vadd.f32 %v2864, %v3475
    %v3480 = vsel %vm75, %v3478, 0.0
    %3481 = vadd.xlane.f32.xlu0 %v3480
    %v3482 = vpop.xlane.xlu0 %3481
    %v3483 = vsel %vm75, %v3479, 0.0
    %3484 = vadd.xlane.f32.xlu0 %v3483
    %v3485 = vpop.xlane.xlu0 %3484
    %v3486 = vmul.f32 %v3482, %v793
    %v3487 = vmul.f32 %v3485, %v793
    %v3488 = vmul.f32 %v3478, %v3478
    %v3489 = vmul.f32 %v3479, %v3479
    %v3490 = vsel %vm75, %v3488, 0.0
    %3491 = vadd.xlane.f32.xlu0 %v3490
    %v3492 = vpop.xlane.xlu0 %3491
    %v3493 = vsel %vm75, %v3489, 0.0
    %3494 = vadd.xlane.f32.xlu0 %v3493
    %v3495 = vpop.xlane.xlu0 %3494
    %v3496 = vmul.f32 %v3492, %v793
    %v3497 = vmul.f32 %v3495, %v793
    %v3498 = vmul.f32 %v3486, %v3486
    %v3499 = vmul.f32 %v3487, %v3487
    %v3500 = vsub.f32 %v3496, %v3498
    %v3501 = vsub.f32 %v3497, %v3499
    %v3502 = vmax.f32 %v3500, 0.0
    %v3503 = vmax.f32 %v3501, 0.0
    %v3504 = vsub.f32 %v3478, %v3486
    %v3505 = vsub.f32 %v3479, %v3487
    %v3506 = vadd.f32 %v3502, 1e-05
    %v3507 = vadd.f32 %v3503, 1e-05
    %v3508 = vrsqrt.pop %v3506
    %v3509 = vrsqrt.pop %v3507
    %v3510 = vmul.f32 %v3504, %v3508
    %v3511 = vmul.f32 %v3505, %v3509
    %v3512 = vlaneseq
    %v3513 = vshrl.u32 %v3512, 7
    %v3514 = vsub.s32 4, %v3513
    %v3515 = vrot.slane %v2876, %v3514
    %v3516 = vmul.f32 %v3510, %v3515
    %v3517 = vmul.f32 %v3511, %v3515
    %v3518 = vlaneseq
    %v3519 = vshrl.u32 %v3518, 7
    %v3520 = vsub.s32 5, %v3519
    %v3521 = vrot.slane %v2876, %v3520
    %v3522 = vadd.f32 %v3516, %v3521
    %v3523 = vadd.f32 %v3517, %v3521
    %v3524 = vlaneseq
    %v3525 = vshrl.u32 %v3524, 7
    %v3526 = vsub.s32 2, %v3525
    %v3527 = vrot.slane %v2876, %v3526
    %v3529 = vsel %vm75, %v3522, 0
    %v3532 = vsel %vm75, %v3523, 0
    %3534 = vmatprep.subr.mxu0 0.0
    %3535 = vmatpush1.msra.mxu0 %v2871
    %3536 = vmatprep.subr.mxu0 0.0
    %3537 = vmatpush1.msra.mxu0 %v2872
    %3538 = vmatprep.subr.mxu0 0.0
    %3539 = vmatpush1.msra.mxu0 %v2873
    %3540 = vmatprep.subr.mxu0 0.0
    %3541 = vmatpush1.msra.mxu0 %v2874
    %3542 = vmatprep.subr.mxu0 0.0
    %3543 = vmatpush1.msra.mxu0 0.0
    %3544 = vmatprep.subr.mxu0 0.0
    %3545 = vmatpush1.msra.mxu0 0.0
    %3546 = vmatprep.subr.mxu0 0.0
    %3547 = vmatpush1.msra.mxu0 0.0
    %3548 = vmatprep.subr.mxu0 0.0
    %3549 = vmatpush1.msra.mxu0 0.0
    %3550 = vmatprep.subr.mxu0 0.0
    %3551 = vmatpush1.msra.mxu0 0.0
    %3552 = vmatprep.subr.mxu0 0.0
    %3553 = vmatpush1.msra.mxu0 0.0
    %3554 = vmatprep.subr.mxu0 0.0
    %3555 = vmatpush1.msra.mxu0 0.0
    %3556 = vmatprep.subr.mxu0 0.0
    %3557 = vmatpush1.msra.mxu0 0.0
    %3558 = vmatprep.subr.mxu0 0.0
    %3559 = vmatpush1.msra.mxu0 0.0
    %3560 = vmatprep.subr.mxu0 0.0
    %3561 = vmatpush1.msra.mxu0 0.0
    %3562 = vmatprep.subr.mxu0 0.0
    %3563 = vmatpush1.msra.mxu0 0.0
    %3564 = vmatprep.subr.mxu0 0.0
    %3565 = vmatpush1.msra.mxu0 0.0
    %3566 = vmatprep.subr.mxu0 0.0
    %3567 = vmatpush1.msra.mxu0 0.0
    %3568 = vmatprep.subr.mxu0 0.0
    %3569 = vmatpush1.msra.mxu0 0.0
    %3570 = vmatprep.subr.mxu0 0.0
    %3571 = vmatpush1.msra.mxu0 0.0
    %3572 = vmatprep.subr.mxu0 0.0
    %3573 = vmatpush1.msra.mxu0 0.0
    %3574 = vmatprep.subr.mxu0 0.0
    %3575 = vmatpush1.msra.mxu0 0.0
    %3576 = vmatprep.subr.mxu0 0.0
    %3577 = vmatpush1.msra.mxu0 0.0
    %3578 = vmatprep.subr.mxu0 0.0
    %3579 = vmatpush1.msra.mxu0 0.0
    %3580 = vmatprep.subr.mxu0 0.0
    %3581 = vmatpush1.msra.mxu0 0.0
    %3582 = vmatprep.subr.mxu0 0.0
    %3583 = vmatpush1.msra.mxu0 0.0
    %3584 = vmatprep.subr.mxu0 0.0
    %3585 = vmatpush1.msra.mxu0 0.0
    %3586 = vmatprep.subr.mxu0 0.0
    %3587 = vmatpush1.msra.mxu0 0.0
    %3588 = vmatprep.subr.mxu0 0.0
    %3589 = vmatpush1.msra.mxu0 0.0
    %3590 = vmatprep.subr.mxu0 0.0
    %3591 = vmatpush1.msra.mxu0 0.0
    %3592 = vmatprep.subr.mxu0 0.0
    %3593 = vmatpush1.msra.mxu0 0.0
    %3594 = vmatprep.subr.mxu0 0.0
    %3595 = vmatpush1.msra.mxu0 0.0
    %3596 = vmatprep.subr.mxu0 0.0
    %3597 = vmatpush1.msra.mxu0 0.0
    %3598 = vmatprep.mubr.f32.mxu0 0.0
    %3599 = vmatmul.mubr.f32.gmra.mrb[0].mxu0 %v3529
    %v3600 = vpop.f32.mrb[0].mxu0
    %v3601 = vadd.f32 %v3527, %v3600
    %v3602 = vpop.f32.mrb[0].mxu0
    %3603 = vmatprep.mubr.f32.mxu0 0.0
    %3604 = vmatmul.mubr.f32.gmra.mrb[0].mxu0 %v3532
    %v3605 = vpop.f32.mrb[0].mxu0
    %v3606 = vadd.f32 %v3527, %v3605
    %v3607 = vpop.f32.mrb[0].mxu0
    %3608 = vdwg.mxu0
    %v3609 = vmax.f32 %v3601, 0.0
    %v3610 = vmax.f32 %v3606, 0.0
    %v3611 = vlaneseq
    %v3612 = vshrl.u32 %v3611, 7
    %v3613 = vsub.s32 3, %v3612
    %v3614 = vrot.slane %v2876, %v3613
    %3619 = vrot.lane.b32.xlu0 %v2871, 64
    %v3620 = vpop.permute.xlu0 %3619
    %3621 = vrot.lane.b32.xlu0 %v2872, 64
    %v3622 = vpop.permute.xlu0 %3621
    %3623 = vrot.lane.b32.xlu0 %v2873, 64
    %v3624 = vpop.permute.xlu0 %3623
    %3625 = vrot.lane.b32.xlu0 %v2874, 64
    %v3626 = vpop.permute.xlu0 %3625
    %v3628 = vsel %vm935, %v3609, 0
    %v3631 = vsel %vm935, %v3610, 0
    %v3633 = vsel %vm935, %v3620, 0
    %v3635 = vsel %vm935, %v3622, 0
    %v3637 = vsel %vm935, %v3624, 0
    %v3639 = vsel %vm935, %v3626, 0
    %3641 = vmatprep.subr.mxu0 0.0
    %3642 = vmatpush1.xpose.msra.mxu0 %v3633
    %3643 = vmatprep.subr.mxu0 0.0
    %3644 = vmatpush1.xpose.msra.mxu0 %v3635
    %3645 = vmatprep.subr.mxu0 0.0
    %3646 = vmatpush1.xpose.msra.mxu0 %v3637
    %3647 = vmatprep.subr.mxu0 0.0
    %3648 = vmatpush1.xpose.msra.mxu0 %v3639
    %3649 = vmatprep.subr.mxu0 0.0
    %3650 = vmatpush1.xpose.msra.mxu0 0.0
    %3651 = vmatprep.subr.mxu0 0.0
    %3652 = vmatpush1.xpose.msra.mxu0 0.0
    %3653 = vmatprep.subr.mxu0 0.0
    %3654 = vmatpush1.xpose.msra.mxu0 0.0
    %3655 = vmatprep.subr.mxu0 0.0
    %3656 = vmatpush1.xpose.msra.mxu0 0.0
    %3657 = vmatprep.subr.mxu0 0.0
    %3658 = vmatpush1.xpose.msra.mxu0 0.0
    %3659 = vmatprep.subr.mxu0 0.0
    %3660 = vmatpush1.xpose.msra.mxu0 0.0
    %3661 = vmatprep.subr.mxu0 0.0
    %3662 = vmatpush1.xpose.msra.mxu0 0.0
    %3663 = vmatprep.subr.mxu0 0.0
    %3664 = vmatpush1.xpose.msra.mxu0 0.0
    %3665 = vmatprep.subr.mxu0 0.0
    %3666 = vmatpush1.xpose.msra.mxu0 0.0
    %3667 = vmatprep.subr.mxu0 0.0
    %3668 = vmatpush1.xpose.msra.mxu0 0.0
    %3669 = vmatprep.subr.mxu0 0.0
    %3670 = vmatpush1.xpose.msra.mxu0 0.0
    %3671 = vmatprep.subr.mxu0 0.0
    %3672 = vmatpush1.xpose.msra.mxu0 0.0
    %3673 = vmatprep.subr.mxu0 0.0
    %3674 = vmatpush1.xpose.msra.mxu0 0.0
    %3675 = vmatprep.subr.mxu0 0.0
    %3676 = vmatpush1.xpose.msra.mxu0 0.0
    %3677 = vmatprep.subr.mxu0 0.0
    %3678 = vmatpush1.xpose.msra.mxu0 0.0
    %3679 = vmatprep.subr.mxu0 0.0
    %3680 = vmatpush1.xpose.msra.mxu0 0.0
    %3681 = vmatprep.subr.mxu0 0.0
    %3682 = vmatpush1.xpose.msra.mxu0 0.0
    %3683 = vmatprep.subr.mxu0 0.0
    %3684 = vmatpush1.xpose.msra.mxu0 0.0
    %3685 = vmatprep.subr.mxu0 0.0
    %3686 = vmatpush1.xpose.msra.mxu0 0.0
    %3687 = vmatprep.subr.mxu0 0.0
    %3688 = vmatpush1.xpose.msra.mxu0 0.0
    %3689 = vmatprep.subr.mxu0 0.0
    %3690 = vmatpush1.xpose.msra.mxu0 0.0
    %3691 = vmatprep.subr.mxu0 0.0
    %3692 = vmatpush1.xpose.msra.mxu0 0.0
    %3693 = vmatprep.subr.mxu0 0.0
    %3694 = vmatpush1.xpose.msra.mxu0 0.0
    %3695 = vmatprep.subr.mxu0 0.0
    %3696 = vmatpush1.xpose.msra.mxu0 0.0
    %3697 = vmatprep.subr.mxu0 0.0
    %3698 = vmatpush1.xpose.msra.mxu0 0.0
    %3699 = vmatprep.subr.mxu0 0.0
    %3700 = vmatpush1.xpose.msra.mxu0 0.0
    %3701 = vmatprep.subr.mxu0 0.0
    %3702 = vmatpush1.xpose.msra.mxu0 0.0
    %3703 = vmatprep.subr.mxu0 0.0
    %3704 = vmatpush1.xpose.msra.mxu0 0.0
    %3705 = vmatprep.mubr.f32.mxu0 0.0
    %3706 = vmatmul.mubr.f32.gmra.mrb[0].mxu0 %v3628
    %v3707 = vpop.f32.mrb[0].mxu0
    %v3708 = vadd.f32 %v3614, %v3707
    %v3709 = vpop.f32.mrb[0].mxu0
    %3710 = vmatprep.mubr.f32.mxu0 0.0
    %3711 = vmatmul.mubr.f32.gmra.mrb[0].mxu0 %v3631
    %v3712 = vpop.f32.mrb[0].mxu0
    %v3713 = vadd.f32 %v3614, %v3712
    %v3714 = vpop.f32.mrb[0].mxu0
    %3715 = vdwg.mxu0
    %v3716 = vadd.f32 %v3522, %v3708
    %v3717 = vadd.f32 %v3523, %v3713
    %v3718 = vsel %vm75, %v3716, 0.0
    %3719 = vadd.xlane.f32.xlu0 %v3718
    %v3720 = vpop.xlane.xlu0 %3719
    %v3721 = vsel %vm75, %v3717, 0.0
    %3722 = vadd.xlane.f32.xlu0 %v3721
    %v3723 = vpop.xlane.xlu0 %3722
    %v3724 = vmul.f32 %v3720, %v793
    %v3725 = vmul.f32 %v3723, %v793
    %v3726 = vmul.f32 %v3716, %v3716
    %v3727 = vmul.f32 %v3717, %v3717
    %v3728 = vsel %vm75, %v3726, 0.0
    %3729 = vadd.xlane.f32.xlu0 %v3728
    %v3730 = vpop.xlane.xlu0 %3729
    %v3731 = vsel %vm75, %v3727, 0.0
    %3732 = vadd.xlane.f32.xlu0 %v3731
    %v3733 = vpop.xlane.xlu0 %3732
    %v3734 = vmul.f32 %v3730, %v793
    %v3735 = vmul.f32 %v3733, %v793
    %v3736 = vmul.f32 %v3724, %v3724
    %v3737 = vmul.f32 %v3725, %v3725
    %v3738 = vsub.f32 %v3734, %v3736
    %v3739 = vsub.f32 %v3735, %v3737
    %v3740 = vmax.f32 %v3738, 0.0
    %v3741 = vmax.f32 %v3739, 0.0
    %v3742 = vsub.f32 %v3716, %v3724
    %v3743 = vsub.f32 %v3717, %v3725
    %v3744 = vadd.f32 %v3740, 1e-05
    %v3745 = vadd.f32 %v3741, 1e-05
    %v3746 = vrsqrt.pop %v3744
    %v3747 = vrsqrt.pop %v3745
    %v3748 = vmul.f32 %v3742, %v3746
    %v3749 = vmul.f32 %v3743, %v3747
    %v3750 = vlaneseq
    %v3751 = vshrl.u32 %v3750, 7
    %v3752 = vsub.s32 6, %v3751
    %v3753 = vrot.slane %v2876, %v3752
    %v3754 = vmul.f32 %v3748, %v3753
    %v3755 = vmul.f32 %v3749, %v3753
    %v3756 = vlaneseq
    %v3757 = vshrl.u32 %v3756, 7
    %v3758 = vsub.s32 7, %v3757
    %v3759 = vrot.slane %v2876, %v3758
    %v3760 = vadd.f32 %v3754, %v3759
    %v3761 = vadd.f32 %v3755, %v3759
    %vm3762 = vcmask 130048
    %v3764 = vsel %vm3762, %v43, 0
    %3766 = vmatprep.subr.mxu0 0.0
    %3767 = vmatpush1.msra.mxu0 %v3760
    %3768 = vmatprep.subr.mxu0 0.0
    %3769 = vmatpush1.msra.mxu0 %v3761
    %3770 = vmatprep.subr.mxu0 0.0
    %3771 = vmatpush1.msra.mxu0 0.0
    %3772 = vmatprep.subr.mxu0 0.0
    %3773 = vmatpush1.msra.mxu0 0.0
    %3774 = vmatprep.subr.mxu0 0.0
    %3775 = vmatpush1.msra.mxu0 0.0
    %3776 = vmatprep.subr.mxu0 0.0
    %3777 = vmatpush1.msra.mxu0 0.0
    %3778 = vmatprep.subr.mxu0 0.0
    %3779 = vmatpush1.msra.mxu0 0.0
    %3780 = vmatprep.subr.mxu0 0.0
    %3781 = vmatpush1.msra.mxu0 0.0
    %3782 = vmatprep.subr.mxu0 0.0
    %3783 = vmatpush1.msra.mxu0 0.0
    %3784 = vmatprep.subr.mxu0 0.0
    %3785 = vmatpush1.msra.mxu0 0.0
    %3786 = vmatprep.subr.mxu0 0.0
    %3787 = vmatpush1.msra.mxu0 0.0
    %3788 = vmatprep.subr.mxu0 0.0
    %3789 = vmatpush1.msra.mxu0 0.0
    %3790 = vmatprep.subr.mxu0 0.0
    %3791 = vmatpush1.msra.mxu0 0.0
    %3792 = vmatprep.subr.mxu0 0.0
    %3793 = vmatpush1.msra.mxu0 0.0
    %3794 = vmatprep.subr.mxu0 0.0
    %3795 = vmatpush1.msra.mxu0 0.0
    %3796 = vmatprep.subr.mxu0 0.0
    %3797 = vmatpush1.msra.mxu0 0.0
    %3798 = vmatprep.subr.mxu0 0.0
    %3799 = vmatpush1.msra.mxu0 0.0
    %3800 = vmatprep.subr.mxu0 0.0
    %3801 = vmatpush1.msra.mxu0 0.0
    %3802 = vmatprep.subr.mxu0 0.0
    %3803 = vmatpush1.msra.mxu0 0.0
    %3804 = vmatprep.subr.mxu0 0.0
    %3805 = vmatpush1.msra.mxu0 0.0
    %3806 = vmatprep.subr.mxu0 0.0
    %3807 = vmatpush1.msra.mxu0 0.0
    %3808 = vmatprep.subr.mxu0 0.0
    %3809 = vmatpush1.msra.mxu0 0.0
    %3810 = vmatprep.subr.mxu0 0.0
    %3811 = vmatpush1.msra.mxu0 0.0
    %3812 = vmatprep.subr.mxu0 0.0
    %3813 = vmatpush1.msra.mxu0 0.0
    %3814 = vmatprep.subr.mxu0 0.0
    %3815 = vmatpush1.msra.mxu0 0.0
    %3816 = vmatprep.subr.mxu0 0.0
    %3817 = vmatpush1.msra.mxu0 0.0
    %3818 = vmatprep.subr.mxu0 0.0
    %3819 = vmatpush1.msra.mxu0 0.0
    %3820 = vmatprep.subr.mxu0 0.0
    %3821 = vmatpush1.msra.mxu0 0.0
    %3822 = vmatprep.subr.mxu0 0.0
    %3823 = vmatpush1.msra.mxu0 0.0
    %3824 = vmatprep.subr.mxu0 0.0
    %3825 = vmatpush1.msra.mxu0 0.0
    %3826 = vmatprep.subr.mxu0 0.0
    %3827 = vmatpush1.msra.mxu0 0.0
    %3828 = vmatprep.subr.mxu0 0.0
    %3829 = vmatpush1.msra.mxu0 0.0
    %3830 = vmatprep.mubr.f32.mxu0 0.0
    %3831 = vmatmul.mubr.f32.gmra.mrb[0].mxu0 %v3764
    %v3832 = vpop.f32.mrb[0].mxu0
    %v3833 = vadd.f32 0.0, %v3832
    %v3834 = vpop.f32.mrb[0].mxu0
    %3835 = vdwg.mxu0
    %v3836 = vld [vmem:[%s6] sm:$0xff]
    %v3837 = vld [vmem:[%s6 + $0x8] sm:$0xff]
    %v3838 = vld [vmem:[%s6 + $0x10] sm:$0xff]
    %v3839 = vld [vmem:[%s6 + $0x18] sm:$0xff]
    %v3840 = vld [vmem:[%s6 + $0x20] sm:$0xff]
    %v3841 = vld [vmem:[%s6 + $0x28] sm:$0xff]
    %v3842 = vld [vmem:[%s6 + $0x30] sm:$0x1]
    %v3843 = vld [vmem:[%s6 + $0x31] sm:$0x1]
    %v3844 = vlaneseq
    %v3845 = vshrl.u32 %v3844, 7
    %v3846 = vsub.s32 0, %v3845
    %v3847 = vrot.slane %v3842, %v3846
    %v3849 = vsel %vm75, %v3833, 0
    %3851 = vmatprep.subr.mxu0 0.0
    %3852 = vmatpush1.msra.mxu0 %v3836
    %3853 = vmatprep.subr.mxu0 0.0
    %3854 = vmatpush1.msra.mxu0 %v3837
    %3855 = vmatprep.subr.mxu0 0.0
    %3856 = vmatpush1.msra.mxu0 %v3838
    %3857 = vmatprep.subr.mxu0 0.0
    %3858 = vmatpush1.msra.mxu0 %v3839
    %3859 = vmatprep.subr.mxu0 0.0
    %3860 = vmatpush1.msra.mxu0 0.0
    %3861 = vmatprep.subr.mxu0 0.0
    %3862 = vmatpush1.msra.mxu0 0.0
    %3863 = vmatprep.subr.mxu0 0.0
    %3864 = vmatpush1.msra.mxu0 0.0
    %3865 = vmatprep.subr.mxu0 0.0
    %3866 = vmatpush1.msra.mxu0 0.0
    %3867 = vmatprep.subr.mxu0 0.0
    %3868 = vmatpush1.msra.mxu0 0.0
    %3869 = vmatprep.subr.mxu0 0.0
    %3870 = vmatpush1.msra.mxu0 0.0
    %3871 = vmatprep.subr.mxu0 0.0
    %3872 = vmatpush1.msra.mxu0 0.0
    %3873 = vmatprep.subr.mxu0 0.0
    %3874 = vmatpush1.msra.mxu0 0.0
    %3875 = vmatprep.subr.mxu0 0.0
    %3876 = vmatpush1.msra.mxu0 0.0
    %3877 = vmatprep.subr.mxu0 0.0
    %3878 = vmatpush1.msra.mxu0 0.0
    %3879 = vmatprep.subr.mxu0 0.0
    %3880 = vmatpush1.msra.mxu0 0.0
    %3881 = vmatprep.subr.mxu0 0.0
    %3882 = vmatpush1.msra.mxu0 0.0
    %3883 = vmatprep.subr.mxu0 0.0
    %3884 = vmatpush1.msra.mxu0 0.0
    %3885 = vmatprep.subr.mxu0 0.0
    %3886 = vmatpush1.msra.mxu0 0.0
    %3887 = vmatprep.subr.mxu0 0.0
    %3888 = vmatpush1.msra.mxu0 0.0
    %3889 = vmatprep.subr.mxu0 0.0
    %3890 = vmatpush1.msra.mxu0 0.0
    %3891 = vmatprep.subr.mxu0 0.0
    %3892 = vmatpush1.msra.mxu0 0.0
    %3893 = vmatprep.subr.mxu0 0.0
    %3894 = vmatpush1.msra.mxu0 0.0
    %3895 = vmatprep.subr.mxu0 0.0
    %3896 = vmatpush1.msra.mxu0 0.0
    %3897 = vmatprep.subr.mxu0 0.0
    %3898 = vmatpush1.msra.mxu0 0.0
    %3899 = vmatprep.subr.mxu0 0.0
    %3900 = vmatpush1.msra.mxu0 0.0
    %3901 = vmatprep.subr.mxu0 0.0
    %3902 = vmatpush1.msra.mxu0 0.0
    %3903 = vmatprep.subr.mxu0 0.0
    %3904 = vmatpush1.msra.mxu0 0.0
    %3905 = vmatprep.subr.mxu0 0.0
    %3906 = vmatpush1.msra.mxu0 0.0
    %3907 = vmatprep.subr.mxu0 0.0
    %3908 = vmatpush1.msra.mxu0 0.0
    %3909 = vmatprep.subr.mxu0 0.0
    %3910 = vmatpush1.msra.mxu0 0.0
    %3911 = vmatprep.subr.mxu0 0.0
    %3912 = vmatpush1.msra.mxu0 0.0
    %3913 = vmatprep.subr.mxu0 0.0
    %3914 = vmatpush1.msra.mxu0 0.0
    %3915 = vmatprep.mubr.f32.mxu0 0.0
    %3916 = vmatmul.mubr.f32.gmra.mrb[0].mxu0 %v3849
    %v3917 = vpop.f32.mrb[0].mxu0
    %v3918 = vadd.f32 %v3847, %v3917
    %v3919 = vpop.f32.mrb[0].mxu0
    %3920 = vdwg.mxu0
    %v3921 = vmax.f32 %v3918, 0.0
    %v3922 = vlaneseq
    %v3923 = vshrl.u32 %v3922, 7
    %v3924 = vsub.s32 0, %v3923
    %v3925 = vrot.slane %v3843, %v3924
    %v3927 = vsel %vm3762, %v3921, 0
    %3929 = vmatprep.subr.mxu0 0.0
    %3930 = vmatpush1.msra.mxu0 %v3840
    %3931 = vmatprep.subr.mxu0 0.0
    %3932 = vmatpush1.msra.mxu0 %v3841
    %3933 = vmatprep.subr.mxu0 0.0
    %3934 = vmatpush1.msra.mxu0 0.0
    %3935 = vmatprep.subr.mxu0 0.0
    %3936 = vmatpush1.msra.mxu0 0.0
    %3937 = vmatprep.subr.mxu0 0.0
    %3938 = vmatpush1.msra.mxu0 0.0
    %3939 = vmatprep.subr.mxu0 0.0
    %3940 = vmatpush1.msra.mxu0 0.0
    %3941 = vmatprep.subr.mxu0 0.0
    %3942 = vmatpush1.msra.mxu0 0.0
    %3943 = vmatprep.subr.mxu0 0.0
    %3944 = vmatpush1.msra.mxu0 0.0
    %3945 = vmatprep.subr.mxu0 0.0
    %3946 = vmatpush1.msra.mxu0 0.0
    %3947 = vmatprep.subr.mxu0 0.0
    %3948 = vmatpush1.msra.mxu0 0.0
    %3949 = vmatprep.subr.mxu0 0.0
    %3950 = vmatpush1.msra.mxu0 0.0
    %3951 = vmatprep.subr.mxu0 0.0
    %3952 = vmatpush1.msra.mxu0 0.0
    %3953 = vmatprep.subr.mxu0 0.0
    %3954 = vmatpush1.msra.mxu0 0.0
    %3955 = vmatprep.subr.mxu0 0.0
    %3956 = vmatpush1.msra.mxu0 0.0
    %3957 = vmatprep.subr.mxu0 0.0
    %3958 = vmatpush1.msra.mxu0 0.0
    %3959 = vmatprep.subr.mxu0 0.0
    %3960 = vmatpush1.msra.mxu0 0.0
    %3961 = vmatprep.subr.mxu0 0.0
    %3962 = vmatpush1.msra.mxu0 0.0
    %3963 = vmatprep.subr.mxu0 0.0
    %3964 = vmatpush1.msra.mxu0 0.0
    %3965 = vmatprep.subr.mxu0 0.0
    %3966 = vmatpush1.msra.mxu0 0.0
    %3967 = vmatprep.subr.mxu0 0.0
    %3968 = vmatpush1.msra.mxu0 0.0
    %3969 = vmatprep.subr.mxu0 0.0
    %3970 = vmatpush1.msra.mxu0 0.0
    %3971 = vmatprep.subr.mxu0 0.0
    %3972 = vmatpush1.msra.mxu0 0.0
    %3973 = vmatprep.subr.mxu0 0.0
    %3974 = vmatpush1.msra.mxu0 0.0
    %3975 = vmatprep.subr.mxu0 0.0
    %3976 = vmatpush1.msra.mxu0 0.0
    %3977 = vmatprep.subr.mxu0 0.0
    %3978 = vmatpush1.msra.mxu0 0.0
    %3979 = vmatprep.subr.mxu0 0.0
    %3980 = vmatpush1.msra.mxu0 0.0
    %3981 = vmatprep.subr.mxu0 0.0
    %3982 = vmatpush1.msra.mxu0 0.0
    %3983 = vmatprep.subr.mxu0 0.0
    %3984 = vmatpush1.msra.mxu0 0.0
    %3985 = vmatprep.subr.mxu0 0.0
    %3986 = vmatpush1.msra.mxu0 0.0
    %3987 = vmatprep.subr.mxu0 0.0
    %3988 = vmatpush1.msra.mxu0 0.0
    %3989 = vmatprep.subr.mxu0 0.0
    %3990 = vmatpush1.msra.mxu0 0.0
    %3991 = vmatprep.subr.mxu0 0.0
    %3992 = vmatpush1.msra.mxu0 0.0
    %3993 = vmatprep.mubr.f32.mxu0 0.0
    %3994 = vmatmul.mubr.f32.gmra.mrb[0].mxu0 %v3927
    %v3995 = vpop.f32.mrb[0].mxu0
    %v3996 = vadd.f32 %v3925, %v3995
    %v3997 = vpop.f32.mrb[0].mxu0
    %3998 = vdwg.mxu0
    %vm3999 = vcmask 25600
    %4000 = vst.msk [vmem:[#allocation5] sm:$0x3] %vm3999, %v3996
    // Predicated region
    $region34: #{tpu_custom_call.1} parent=1 // pred_check
      _
    $region35: #{tpu_custom_call.1} parent=1 // pred_check_branch
      %4002 = sbr.rel (0) target = $region37
    $region36: #{tpu_custom_call.1} parent=1 // pred_region
      %s4004 = ssub.s32 32, 32
      %4005 = vsyncadd [#allocation4], %s4004
      %s4007 = sshll.u32 [#allocation5], 4
      %s4008 = int_to_ptr.vmem [resolvable:$true] %s4007
      %4010 = dma.vmem_to_hbm [thread:$0]  %s4008, 32, %s7, [#allocation4]
    $region37: #{tpu_custom_call.1} parent=1 // pred_fallthru
      _
    // Predicated region
    $region38: #{tpu_custom_call.1} parent=1 // pred_check
      _
    $region39: #{tpu_custom_call.1} parent=1 // pred_check_branch
      %4012 = sbr.rel (0) target = $region41
    $region40: #{tpu_custom_call.1} parent=1 // pred_region
      %4013 = dma.done [#allocation4], 32
    $region41: #{tpu_custom_call.1} parent=1 // pred_fallthru
      _
    %4014 = vsyncpa [#allocation3], 1
    %4015 = vsyncpa [#allocation4], 1

</llo_original>
